<compile_context>
chip_gen: v5e
topology: v5e:2x2
jax: 0.10.0
libtpu: 0.0.40
codegen_flags: <defaults>
</compile_context>

<pallas_src>
import functools

import jax
import jax.numpy as jnp
from jax.experimental import pallas as pl
from jax.experimental.pallas import tpu as pltpu


def _mbconv_kernel(x_ref,
                   w_exp_ref, exp_scale_ref, exp_shift_ref,
                   w_dw_ref, dw_scale_ref, dw_shift_ref,
                   w_se1_ref, b_se1_ref, w_se2_ref, b_se2_ref,
                   w_pw_ref, pw_scale_ref, pw_shift_ref,
                   o_ref,
                   xp_ref, h1p_ref,
                   *, k_dw, pad_dw, use_residual):
    """Fused MBConv forward for one image (grid axis = batch).

    x_ref:   (1, H, W, Cin)
    w_exp:   (9, Cin, hidden)        3x3 expand conv weights (flattened taps)
    w_dw:    (k*k, hidden)           depthwise conv weights (flattened taps)
    w_se1/2: (hidden, red)/(red, hidden)  SE 1x1 convs (+ biases (1, .))
    w_pw:    (hidden, Cout)          1x1 projection conv
    *_scale/*_shift: (1, C)          folded eval-mode BatchNorm
    o_ref:   (1, Ho, Wo, Cout)
    xp_ref:  (H+2, W+2, Cin)         VMEM scratch: zero-padded input
    h1p_ref: (H+2p, W+2p, hidden)    VMEM scratch: zero-padded expanded act
    """
    _, H, W, Cin = x_ref.shape
    hidden = w_dw_ref.shape[1]
    _, Ho, Wo, Cout = o_ref.shape
    HW1 = H * W
    HW2 = Ho * Wo
    f32 = jnp.float32

    def sigmoid(v):
        return 1.0 / (1.0 + jnp.exp(-v))

    def silu(v):
        return v * sigmoid(v)

    # ---- expand conv: 3x3, stride 1, pad 1 (Cin -> hidden), folded BN + SiLU.
    # Zero-pad the input into VMEM scratch, then 9 shifted-slab matmuls of
    # (H*W, Cin) @ (Cin, hidden) accumulated in f32.
    xp_ref[...] = jnp.zeros_like(xp_ref)
    xp_ref[pl.ds(1, H), pl.ds(1, W), :] = x_ref[0]
    acc = jnp.zeros((HW1, hidden), f32)
    for i in range(3):
        for j in range(3):
            patch = xp_ref[pl.ds(i, H), pl.ds(j, W), :].reshape(HW1, Cin)
            acc = acc + jnp.dot(patch, w_exp_ref[i * 3 + j],
                                preferred_element_type=f32)
    h1 = silu(acc * exp_scale_ref[...] + exp_shift_ref[...])

    # ---- depthwise k x k conv (stride 1, pad pad_dw), folded BN + SiLU.
    # TODO(synk): stride > 1 (strided slab gather) is not wired in here.
    h1p_ref[...] = jnp.zeros_like(h1p_ref)
    h1p_ref[pl.ds(pad_dw, H), pl.ds(pad_dw, W), :] = h1.reshape(H, W, hidden)
    acc2 = jnp.zeros((HW2, hidden), f32)
    for i in range(k_dw):
        for j in range(k_dw):
            patch = h1p_ref[pl.ds(i, Ho), pl.ds(j, Wo), :].reshape(HW2, hidden)
            wij = w_dw_ref[pl.ds(i * k_dw + j, 1), :]          # (1, hidden)
            acc2 = acc2 + patch * wij
    h2 = silu(acc2 * dw_scale_ref[...] + dw_shift_ref[...])

    # ---- squeeze-excitation: global average pool + two tiny dense layers.
    pooled = jnp.mean(h2, axis=0, keepdims=True)               # (1, hidden)
    s = jnp.dot(pooled, w_se1_ref[...], preferred_element_type=f32)
    s = silu(s + b_se1_ref[...])
    s = jnp.dot(s, w_se2_ref[...], preferred_element_type=f32)
    s = sigmoid(s + b_se2_ref[...])                            # (1, hidden)
    h3 = h2 * s

    # ---- 1x1 projection conv + folded BN, residual, single full-tile store.
    out = jnp.dot(h3, w_pw_ref[...], preferred_element_type=f32)
    out = out * pw_scale_ref[...] + pw_shift_ref[...]
    if use_residual:
        # TODO(synk): training-mode stochastic depth (random per-sample drop)
        # is identity in eval mode and is not implemented here.
        out = out + x_ref[0].reshape(HW2, Cin)
    o_ref[0] = out.reshape(Ho, Wo, Cout).astype(o_ref.dtype)


def inverted_residual_forward(params, x_nchw, *, kernel_size, stride, padding):
    """InvertedResidualBlock.forward (eval mode), fully fused in one pallas_call."""
    if stride != 1:
        # TODO(synk): stride != 1 depthwise conv not supported by the fused kernel.
        raise NotImplementedError("stride != 1 not supported")

    x = jnp.transpose(x_nchw, (0, 2, 3, 1)).astype(jnp.float32)   # NCHW -> NHWC
    N, H, W, Cin = x.shape
    hidden = params["w_exp"].shape[-1]
    Cout = params["w_pw"].shape[-1]
    reduced = params["w_se1"].shape[-1]
    k = kernel_size
    Ho = H + 2 * padding - k + 1
    Wo = W + 2 * padding - k + 1
    use_residual = (Cin == Cout) and stride == 1 and (Ho, Wo) == (H, W)

    # Fold eval-mode BatchNorm into per-channel scale/shift.
    eps = 1e-5

    def fold(bn):
        gamma, beta, mean, var = bn
        scale = gamma / jnp.sqrt(var + eps)
        return scale.reshape(1, -1), (beta - mean * scale).reshape(1, -1)

    exp_scale, exp_shift = fold(params["bn1"])
    dw_scale, dw_shift = fold(params["bn2"])
    pw_scale, pw_shift = fold(params["bn3"])

    w_exp = params["w_exp"].reshape(9, Cin, hidden)        # (3,3,Cin,hidden) -> taps
    w_dw = params["w_dw_hwio"].reshape(k * k, hidden)      # (k,k,1,hidden)   -> taps
    b_se1 = params["b_se1"].reshape(1, reduced)
    b_se2 = params["b_se2"].reshape(1, hidden)

    weight_args = [w_exp, exp_scale, exp_shift,
                   w_dw, dw_scale, dw_shift,
                   params["w_se1"], b_se1, params["w_se2"], b_se2,
                   params["w_pw"], pw_scale, pw_shift]

    def full_spec(a):
        r = a.ndim
        return pl.BlockSpec(a.shape, lambda n, _r=r: (0,) * _r)

    in_specs = ([pl.BlockSpec((1, H, W, Cin), lambda n: (n, 0, 0, 0))]
                + [full_spec(a) for a in weight_args])

    kernel = functools.partial(_mbconv_kernel, k_dw=k, pad_dw=padding,
                               use_residual=use_residual)

    out = pl.pallas_call(
        kernel,
        out_shape=jax.ShapeDtypeStruct((N, Ho, Wo, Cout), jnp.float32),
        grid=(N,),
        in_specs=in_specs,
        out_specs=pl.BlockSpec((1, Ho, Wo, Cout), lambda n: (n, 0, 0, 0)),
        scratch_shapes=[
            pltpu.VMEM((H + 2, W + 2, Cin), jnp.float32),
            pltpu.VMEM((H + 2 * padding, W + 2 * padding, hidden), jnp.float32),
        ],
        compiler_params=pltpu.CompilerParams(
            dimension_semantics=("parallel",)),
    )(x, *weight_args)

    return jnp.transpose(out, (0, 3, 1, 2))                  # NHWC -> NCHW


def init_params(key, in_channels, out_channels, kernel_size, expand_ratio,
                reduction):
    """Deterministic params matching the PyTorch module's shapes (eval mode)."""
    hidden = in_channels * expand_ratio
    reduced = int(in_channels / reduction)
    k = kernel_size
    ks = jax.random.split(key, 16)

    def conv_w(kk, shape, fan_in):
        bound = 1.0 / (fan_in ** 0.5)
        return jax.random.uniform(kk, shape, jnp.float32, -bound, bound)

    def bn_params(k1, k2, k3, k4, c):
        gamma = jax.random.uniform(k1, (c,), jnp.float32, 0.5, 1.5)
        beta = 0.1 * jax.random.normal(k2, (c,), jnp.float32)
        mean = 0.1 * jax.random.normal(k3, (c,), jnp.float32)
        var = jax.random.uniform(k4, (c,), jnp.float32, 0.5, 1.5)
        return (gamma, beta, mean, var)

    return {
        "w_exp": conv_w(ks[0], (3, 3, in_channels, hidden), in_channels * 9),
        "bn1": bn_params(ks[1], ks[2], ks[3], ks[4], hidden),
        "w_dw_hwio": conv_w(ks[5], (k, k, 1, hidden), k * k),
        "bn2": bn_params(ks[6], ks[7], ks[8], ks[9], hidden),
        "w_se1": conv_w(ks[10], (hidden, reduced), hidden),
        "b_se1": conv_w(ks[11], (reduced,), hidden),
        "w_se2": conv_w(ks[12], (reduced, hidden), max(reduced, 1)),
        "b_se2": conv_w(ks[13], (hidden,), max(reduced, 1)),
        "w_pw": conv_w(ks[14], (hidden, out_channels), hidden),
        "bn3": bn_params(*jax.random.split(ks[15], 4), out_channels),
    }


def reference_forward(params, x_nchw, *, kernel_size, stride, padding):
    """Pure-JAX reference (lax.conv) of the eval-mode MBConv block."""
    eps = 1e-5
    x = jnp.transpose(x_nchw, (0, 2, 3, 1)).astype(jnp.float32)
    Cin = x.shape[-1]
    hidden = params["w_exp"].shape[-1]
    Cout = params["w_pw"].shape[-1]
    use_residual = (Cin == Cout) and stride == 1

    def bn(y, p):
        gamma, beta, mean, var = p
        return (y - mean) / jnp.sqrt(var + eps) * gamma + beta

    def conv(y, w, strides, pad, groups=1):
        dn = jax.lax.conv_dimension_numbers(y.shape, w.shape,
                                            ("NHWC", "HWIO", "NHWC"))
        return jax.lax.conv_general_dilated(y, w, strides, pad,
                                            dimension_numbers=dn,
                                            feature_group_count=groups)

    h = conv(x, params["w_exp"], (1, 1), [(1, 1), (1, 1)])
    h = jax.nn.silu(bn(h, params["bn1"]))
    h = conv(h, params["w_dw_hwio"], (stride, stride),
             [(padding, padding), (padding, padding)], groups=hidden)
    h = jax.nn.silu(bn(h, params["bn2"]))
    pooled = jnp.mean(h, axis=(1, 2), keepdims=True)
    s = jax.nn.silu(jnp.einsum("nijc,cr->nijr", pooled, params["w_se1"])
                    + params["b_se1"])
    s = jax.nn.sigmoid(jnp.einsum("nijr,rc->nijc", s, params["w_se2"])
                       + params["b_se2"])
    h = h * s
    h = jnp.einsum("nhwc,co->nhwo", h, params["w_pw"])
    h = bn(h, params["bn3"])
    if use_residual:
        h = h + x
    return jnp.transpose(h, (0, 3, 1, 2))


if __name__ == "__main__":
    in_channels = 4
    out_channels = 4
    kernel_size = 3
    stride = 1
    padding = 1
    expand_ratio = 4
    reduction = 4
    N, H, W = 2, 16, 16

    key = jax.random.PRNGKey(0)
    pkey, xkey = jax.random.split(key)
    params = init_params(pkey, in_channels, out_channels, kernel_size,
                         expand_ratio, reduction)
    x = jax.random.normal(xkey, (N, in_channels, H, W), jnp.float32)

    out = inverted_residual_forward(params, x, kernel_size=kernel_size,
                                    stride=stride, padding=padding)
    out = jax.block_until_ready(out)
    assert out.shape == (N, out_channels, H, W), out.shape

    ref = reference_forward(params, x, kernel_size=kernel_size,
                            stride=stride, padding=padding)
    max_err = float(jnp.max(jnp.abs(out - ref)))
    if max_err > 1e-3:
        raise AssertionError(f"Pallas output mismatch vs reference: {max_err}")

    print("KERNEL_OK")
</pallas_src>

<mosaic_0001>
module attributes {stable_mosaic.version = 11 : i64} {
  func.func @_mbconv_kernel(%arg0: i32, %arg1: memref<1x16x16x4xf32, #tpu.memory_space<vmem>>, %arg2: memref<9x4x16xf32, #tpu.memory_space<vmem>>, %arg3: memref<1x16xf32, #tpu.memory_space<vmem>>, %arg4: memref<1x16xf32, #tpu.memory_space<vmem>>, %arg5: memref<9x16xf32, #tpu.memory_space<vmem>>, %arg6: memref<1x16xf32, #tpu.memory_space<vmem>>, %arg7: memref<1x16xf32, #tpu.memory_space<vmem>>, %arg8: memref<16x1xf32, #tpu.memory_space<vmem>>, %arg9: memref<1x1xf32, #tpu.memory_space<vmem>>, %arg10: memref<1x16xf32, #tpu.memory_space<vmem>>, %arg11: memref<1x16xf32, #tpu.memory_space<vmem>>, %arg12: memref<16x4xf32, #tpu.memory_space<vmem>>, %arg13: memref<1x4xf32, #tpu.memory_space<vmem>>, %arg14: memref<1x4xf32, #tpu.memory_space<vmem>>, %arg15: memref<1x16x16x4xf32, #tpu.memory_space<vmem>>, %arg16: memref<18x18x4xf32, #tpu.memory_space<vmem>>, %arg17: memref<18x18x16xf32, #tpu.memory_space<vmem>>) attributes {dimension_semantics = [#tpu.dimension_semantics<parallel>], iteration_bounds = array<i64: 2>, scalar_prefetch = 0 : i64, scratch_operands = 2 : i64, tpu.core_type = #tpu.core_type<tc>, window_params = [{transform_indices = @transform_0, window_bounds = array<i64: 1, 16, 16, 4>}, {pipeline_mode = #tpu.pipeline_mode<synchronous>, transform_indices = @transform_1, window_bounds = array<i64: 9, 4, 16>}, {pipeline_mode = #tpu.pipeline_mode<synchronous>, transform_indices = @transform_2, window_bounds = array<i64: 1, 16>}, {pipeline_mode = #tpu.pipeline_mode<synchronous>, transform_indices = @transform_3, window_bounds = array<i64: 1, 16>}, {pipeline_mode = #tpu.pipeline_mode<synchronous>, transform_indices = @transform_4, window_bounds = array<i64: 9, 16>}, {pipeline_mode = #tpu.pipeline_mode<synchronous>, transform_indices = @transform_5, window_bounds = array<i64: 1, 16>}, {pipeline_mode = #tpu.pipeline_mode<synchronous>, transform_indices = @transform_6, window_bounds = array<i64: 1, 16>}, {pipeline_mode = #tpu.pipeline_mode<synchronous>, transform_indices = @transform_7, window_bounds = array<i64: 16, 1>}, {pipeline_mode = #tpu.pipeline_mode<synchronous>, transform_indices = @transform_8, window_bounds = array<i64: 1, 1>}, {pipeline_mode = #tpu.pipeline_mode<synchronous>, transform_indices = @transform_9, window_bounds = array<i64: 1, 16>}, {pipeline_mode = #tpu.pipeline_mode<synchronous>, transform_indices = @transform_10, window_bounds = array<i64: 1, 16>}, {pipeline_mode = #tpu.pipeline_mode<synchronous>, transform_indices = @transform_11, window_bounds = array<i64: 16, 4>}, {pipeline_mode = #tpu.pipeline_mode<synchronous>, transform_indices = @transform_12, window_bounds = array<i64: 1, 4>}, {pipeline_mode = #tpu.pipeline_mode<synchronous>, transform_indices = @transform_13, window_bounds = array<i64: 1, 4>}, {transform_indices = @transform_14, window_bounds = array<i64: 1, 16, 16, 4>}]} {
    %cst = arith.constant 0.000000e+00 : f32
    %0 = vector.broadcast %cst : f32 to vector<18x18x4xf32>
    %c0 = arith.constant 0 : index
    %c0_0 = arith.constant 0 : index
    %c0_1 = arith.constant 0 : index
    %1 = vector.load %arg16[%c0, %c0_0, %c0_1] : memref<18x18x4xf32, #tpu.memory_space<vmem>>, vector<18x18x4xf32>
    tpu.vector_store %arg16[%c0, %c0_0, %c0_1], %0 {strides = array<i32>} : memref<18x18x4xf32, #tpu.memory_space<vmem>>, vector<18x18x4xf32>,
    %c0_2 = arith.constant 0 : index
    %c0_3 = arith.constant 0 : index
    %c0_4 = arith.constant 0 : index
    %c0_5 = arith.constant 0 : index
    %2 = vector.load %arg1[%c0_2, %c0_3, %c0_4, %c0_5] : memref<1x16x16x4xf32, #tpu.memory_space<vmem>>, vector<1x16x16x4xf32>
    %3 = vector.shape_cast %2 : vector<1x16x16x4xf32> to vector<16x16x4xf32>
    %c1 = arith.constant 1 : index
    %c1_6 = arith.constant 1 : index
    %c0_7 = arith.constant 0 : index
    %4 = vector.load %arg16[%c1, %c1_6, %c0_7] : memref<18x18x4xf32, #tpu.memory_space<vmem>>, vector<16x16x4xf32>
    tpu.vector_store %arg16[%c1, %c1_6, %c0_7], %3 {strides = array<i32>} : memref<18x18x4xf32, #tpu.memory_space<vmem>>, vector<16x16x4xf32>,
    %cst_8 = arith.constant 0.000000e+00 : f32
    %5 = vector.broadcast %cst_8 : f32 to vector<256x16xf32>
    %c0_9 = arith.constant 0 : index
    %c0_10 = arith.constant 0 : index
    %c0_11 = arith.constant 0 : index
    %6 = vector.load %arg16[%c0_9, %c0_10, %c0_11] : memref<18x18x4xf32, #tpu.memory_space<vmem>>, vector<16x16x4xf32>
    %7 = vector.shape_cast %6 : vector<16x16x4xf32> to vector<256x4xf32>
    %c0_12 = arith.constant 0 : index
    %c0_13 = arith.constant 0 : index
    %c0_14 = arith.constant 0 : index
    %8 = vector.load %arg2[%c0_12, %c0_13, %c0_14] : memref<9x4x16xf32, #tpu.memory_space<vmem>>, vector<1x4x16xf32>
    %9 = vector.shape_cast %8 : vector<1x4x16xf32> to vector<4x16xf32>
    %cst_15 = arith.constant dense<0.000000e+00> : vector<256x16xf32>
    %10 = tpu.matmul %7, %9, %cst_15 {dimension_numbers = #tpu.dot_dimension_numbers<[1], [0], [0], [1], [0, 0, 1, 1], [], []>} : vector<256x4xf32>, vector<4x16xf32>, vector<256x16xf32> -> vector<256x16xf32>
    %11 = arith.addf %5, %10 : vector<256x16xf32>
    %c0_16 = arith.constant 0 : index
    %c1_17 = arith.constant 1 : index
    %c0_18 = arith.constant 0 : index
    %12 = vector.load %arg16[%c0_16, %c1_17, %c0_18] : memref<18x18x4xf32, #tpu.memory_space<vmem>>, vector<16x16x4xf32>
    %13 = vector.shape_cast %12 : vector<16x16x4xf32> to vector<256x4xf32>
    %c1_19 = arith.constant 1 : index
    %c0_20 = arith.constant 0 : index
    %c0_21 = arith.constant 0 : index
    %14 = vector.load %arg2[%c1_19, %c0_20, %c0_21] : memref<9x4x16xf32, #tpu.memory_space<vmem>>, vector<1x4x16xf32>
    %15 = vector.shape_cast %14 : vector<1x4x16xf32> to vector<4x16xf32>
    %cst_22 = arith.constant dense<0.000000e+00> : vector<256x16xf32>
    %16 = tpu.matmul %13, %15, %cst_22 {dimension_numbers = #tpu.dot_dimension_numbers<[1], [0], [0], [1], [0, 0, 1, 1], [], []>} : vector<256x4xf32>, vector<4x16xf32>, vector<256x16xf32> -> vector<256x16xf32>
    %17 = arith.addf %11, %16 : vector<256x16xf32>
    %c0_23 = arith.constant 0 : index
    %c2 = arith.constant 2 : index
    %c0_24 = arith.constant 0 : index
    %18 = vector.load %arg16[%c0_23, %c2, %c0_24] : memref<18x18x4xf32, #tpu.memory_space<vmem>>, vector<16x16x4xf32>
    %19 = vector.shape_cast %18 : vector<16x16x4xf32> to vector<256x4xf32>
    %c2_25 = arith.constant 2 : index
    %c0_26 = arith.constant 0 : index
    %c0_27 = arith.constant 0 : index
    %20 = vector.load %arg2[%c2_25, %c0_26, %c0_27] : memref<9x4x16xf32, #tpu.memory_space<vmem>>, vector<1x4x16xf32>
    %21 = vector.shape_cast %20 : vector<1x4x16xf32> to vector<4x16xf32>
    %cst_28 = arith.constant dense<0.000000e+00> : vector<256x16xf32>
    %22 = tpu.matmul %19, %21, %cst_28 {dimension_numbers = #tpu.dot_dimension_numbers<[1], [0], [0], [1], [0, 0, 1, 1], [], []>} : vector<256x4xf32>, vector<4x16xf32>, vector<256x16xf32> -> vector<256x16xf32>
    %23 = arith.addf %17, %22 : vector<256x16xf32>
    %c1_29 = arith.constant 1 : index
    %c0_30 = arith.constant 0 : index
    %c0_31 = arith.constant 0 : index
    %24 = vector.load %arg16[%c1_29, %c0_30, %c0_31] : memref<18x18x4xf32, #tpu.memory_space<vmem>>, vector<16x16x4xf32>
    %25 = vector.shape_cast %24 : vector<16x16x4xf32> to vector<256x4xf32>
    %c3 = arith.constant 3 : index
    %c0_32 = arith.constant 0 : index
    %c0_33 = arith.constant 0 : index
    %26 = vector.load %arg2[%c3, %c0_32, %c0_33] : memref<9x4x16xf32, #tpu.memory_space<vmem>>, vector<1x4x16xf32>
    %27 = vector.shape_cast %26 : vector<1x4x16xf32> to vector<4x16xf32>
    %cst_34 = arith.constant dense<0.000000e+00> : vector<256x16xf32>
    %28 = tpu.matmul %25, %27, %cst_34 {dimension_numbers = #tpu.dot_dimension_numbers<[1], [0], [0], [1], [0, 0, 1, 1], [], []>} : vector<256x4xf32>, vector<4x16xf32>, vector<256x16xf32> -> vector<256x16xf32>
    %29 = arith.addf %23, %28 : vector<256x16xf32>
    %c1_35 = arith.constant 1 : index
    %c1_36 = arith.constant 1 : index
    %c0_37 = arith.constant 0 : index
    %30 = vector.load %arg16[%c1_35, %c1_36, %c0_37] : memref<18x18x4xf32, #tpu.memory_space<vmem>>, vector<16x16x4xf32>
    %31 = vector.shape_cast %30 : vector<16x16x4xf32> to vector<256x4xf32>
    %c4 = arith.constant 4 : index
    %c0_38 = arith.constant 0 : index
    %c0_39 = arith.constant 0 : index
    %32 = vector.load %arg2[%c4, %c0_38, %c0_39] : memref<9x4x16xf32, #tpu.memory_space<vmem>>, vector<1x4x16xf32>
    %33 = vector.shape_cast %32 : vector<1x4x16xf32> to vector<4x16xf32>
    %cst_40 = arith.constant dense<0.000000e+00> : vector<256x16xf32>
    %34 = tpu.matmul %31, %33, %cst_40 {dimension_numbers = #tpu.dot_dimension_numbers<[1], [0], [0], [1], [0, 0, 1, 1], [], []>} : vector<256x4xf32>, vector<4x16xf32>, vector<256x16xf32> -> vector<256x16xf32>
    %35 = arith.addf %29, %34 : vector<256x16xf32>
    %c1_41 = arith.constant 1 : index
    %c2_42 = arith.constant 2 : index
    %c0_43 = arith.constant 0 : index
    %36 = vector.load %arg16[%c1_41, %c2_42, %c0_43] : memref<18x18x4xf32, #tpu.memory_space<vmem>>, vector<16x16x4xf32>
    %37 = vector.shape_cast %36 : vector<16x16x4xf32> to vector<256x4xf32>
    %c5 = arith.constant 5 : index
    %c0_44 = arith.constant 0 : index
    %c0_45 = arith.constant 0 : index
    %38 = vector.load %arg2[%c5, %c0_44, %c0_45] : memref<9x4x16xf32, #tpu.memory_space<vmem>>, vector<1x4x16xf32>
    %39 = vector.shape_cast %38 : vector<1x4x16xf32> to vector<4x16xf32>
    %cst_46 = arith.constant dense<0.000000e+00> : vector<256x16xf32>
    %40 = tpu.matmul %37, %39, %cst_46 {dimension_numbers = #tpu.dot_dimension_numbers<[1], [0], [0], [1], [0, 0, 1, 1], [], []>} : vector<256x4xf32>, vector<4x16xf32>, vector<256x16xf32> -> vector<256x16xf32>
    %41 = arith.addf %35, %40 : vector<256x16xf32>
    %c2_47 = arith.constant 2 : index
    %c0_48 = arith.constant 0 : index
    %c0_49 = arith.constant 0 : index
    %42 = vector.load %arg16[%c2_47, %c0_48, %c0_49] : memref<18x18x4xf32, #tpu.memory_space<vmem>>, vector<16x16x4xf32>
    %43 = vector.shape_cast %42 : vector<16x16x4xf32> to vector<256x4xf32>
    %c6 = arith.constant 6 : index
    %c0_50 = arith.constant 0 : index
    %c0_51 = arith.constant 0 : index
    %44 = vector.load %arg2[%c6, %c0_50, %c0_51] : memref<9x4x16xf32, #tpu.memory_space<vmem>>, vector<1x4x16xf32>
    %45 = vector.shape_cast %44 : vector<1x4x16xf32> to vector<4x16xf32>
    %cst_52 = arith.constant dense<0.000000e+00> : vector<256x16xf32>
    %46 = tpu.matmul %43, %45, %cst_52 {dimension_numbers = #tpu.dot_dimension_numbers<[1], [0], [0], [1], [0, 0, 1, 1], [], []>} : vector<256x4xf32>, vector<4x16xf32>, vector<256x16xf32> -> vector<256x16xf32>
    %47 = arith.addf %41, %46 : vector<256x16xf32>
    %c2_53 = arith.constant 2 : index
    %c1_54 = arith.constant 1 : index
    %c0_55 = arith.constant 0 : index
    %48 = vector.load %arg16[%c2_53, %c1_54, %c0_55] : memref<18x18x4xf32, #tpu.memory_space<vmem>>, vector<16x16x4xf32>
    %49 = vector.shape_cast %48 : vector<16x16x4xf32> to vector<256x4xf32>
    %c7 = arith.constant 7 : index
    %c0_56 = arith.constant 0 : index
    %c0_57 = arith.constant 0 : index
    %50 = vector.load %arg2[%c7, %c0_56, %c0_57] : memref<9x4x16xf32, #tpu.memory_space<vmem>>, vector<1x4x16xf32>
    %51 = vector.shape_cast %50 : vector<1x4x16xf32> to vector<4x16xf32>
    %cst_58 = arith.constant dense<0.000000e+00> : vector<256x16xf32>
    %52 = tpu.matmul %49, %51, %cst_58 {dimension_numbers = #tpu.dot_dimension_numbers<[1], [0], [0], [1], [0, 0, 1, 1], [], []>} : vector<256x4xf32>, vector<4x16xf32>, vector<256x16xf32> -> vector<256x16xf32>
    %53 = arith.addf %47, %52 : vector<256x16xf32>
    %c2_59 = arith.constant 2 : index
    %c2_60 = arith.constant 2 : index
    %c0_61 = arith.constant 0 : index
    %54 = vector.load %arg16[%c2_59, %c2_60, %c0_61] : memref<18x18x4xf32, #tpu.memory_space<vmem>>, vector<16x16x4xf32>
    %55 = vector.shape_cast %54 : vector<16x16x4xf32> to vector<256x4xf32>
    %c8 = arith.constant 8 : index
    %c0_62 = arith.constant 0 : index
    %c0_63 = arith.constant 0 : index
    %56 = vector.load %arg2[%c8, %c0_62, %c0_63] : memref<9x4x16xf32, #tpu.memory_space<vmem>>, vector<1x4x16xf32>
    %57 = vector.shape_cast %56 : vector<1x4x16xf32> to vector<4x16xf32>
    %cst_64 = arith.constant dense<0.000000e+00> : vector<256x16xf32>
    %58 = tpu.matmul %55, %57, %cst_64 {dimension_numbers = #tpu.dot_dimension_numbers<[1], [0], [0], [1], [0, 0, 1, 1], [], []>} : vector<256x4xf32>, vector<4x16xf32>, vector<256x16xf32> -> vector<256x16xf32>
    %59 = arith.addf %53, %58 : vector<256x16xf32>
    %c0_65 = arith.constant 0 : index
    %c0_66 = arith.constant 0 : index
    %60 = vector.load %arg3[%c0_65, %c0_66] : memref<1x16xf32, #tpu.memory_space<vmem>>, vector<1x16xf32>
    %61 = vector.broadcast %60 : vector<1x16xf32> to vector<256x16xf32>
    %62 = arith.mulf %59, %61 : vector<256x16xf32>
    %c0_67 = arith.constant 0 : index
    %c0_68 = arith.constant 0 : index
    %63 = vector.load %arg4[%c0_67, %c0_68] : memref<1x16xf32, #tpu.memory_space<vmem>>, vector<1x16xf32>
    %64 = vector.broadcast %63 : vector<1x16xf32> to vector<256x16xf32>
    %65 = arith.addf %62, %64 : vector<256x16xf32>
    %cst_69 = arith.constant 0.000000e+00 : f32
    %66 = vector.broadcast %cst_69 : f32 to vector<256x16xf32>
    %67 = arith.subf %66, %65 : vector<256x16xf32>
    %68 = math.exp %67 : vector<256x16xf32>
    %cst_70 = arith.constant 1.000000e+00 : f32
    %69 = vector.broadcast %cst_70 : f32 to vector<256x16xf32>
    %70 = arith.addf %69, %68 : vector<256x16xf32>
    %cst_71 = arith.constant 1.000000e+00 : f32
    %71 = vector.broadcast %cst_71 : f32 to vector<256x16xf32>
    %72 = arith.divf %71, %70 : vector<256x16xf32>
    %73 = arith.mulf %65, %72 : vector<256x16xf32>
    %cst_72 = arith.constant 0.000000e+00 : f32
    %74 = vector.broadcast %cst_72 : f32 to vector<18x18x16xf32>
    %c0_73 = arith.constant 0 : index
    %c0_74 = arith.constant 0 : index
    %c0_75 = arith.constant 0 : index
    %75 = vector.load %arg17[%c0_73, %c0_74, %c0_75] : memref<18x18x16xf32, #tpu.memory_space<vmem>>, vector<18x18x16xf32>
    tpu.vector_store %arg17[%c0_73, %c0_74, %c0_75], %74 {strides = array<i32>} : memref<18x18x16xf32, #tpu.memory_space<vmem>>, vector<18x18x16xf32>,
    %76 = vector.shape_cast %73 : vector<256x16xf32> to vector<16x16x16xf32>
    %c1_76 = arith.constant 1 : index
    %c1_77 = arith.constant 1 : index
    %c0_78 = arith.constant 0 : index
    %77 = vector.load %arg17[%c1_76, %c1_77, %c0_78] : memref<18x18x16xf32, #tpu.memory_space<vmem>>, vector<16x16x16xf32>
    tpu.vector_store %arg17[%c1_76, %c1_77, %c0_78], %76 {strides = array<i32>} : memref<18x18x16xf32, #tpu.memory_space<vmem>>, vector<16x16x16xf32>,
    %cst_79 = arith.constant 0.000000e+00 : f32
    %78 = vector.broadcast %cst_79 : f32 to vector<256x16xf32>
    %c0_80 = arith.constant 0 : index
    %c0_81 = arith.constant 0 : index
    %c0_82 = arith.constant 0 : index
    %79 = vector.load %arg17[%c0_80, %c0_81, %c0_82] : memref<18x18x16xf32, #tpu.memory_space<vmem>>, vector<16x16x16xf32>
    %80 = vector.shape_cast %79 : vector<16x16x16xf32> to vector<256x16xf32>
    %c0_83 = arith.constant 0 : index
    %c0_84 = arith.constant 0 : index
    %81 = vector.load %arg5[%c0_83, %c0_84] : memref<9x16xf32, #tpu.memory_space<vmem>>, vector<1x16xf32>
    %82 = vector.broadcast %81 : vector<1x16xf32> to vector<256x16xf32>
    %83 = arith.mulf %80, %82 : vector<256x16xf32>
    %84 = arith.addf %78, %83 : vector<256x16xf32>
    %c0_85 = arith.constant 0 : index
    %c1_86 = arith.constant 1 : index
    %c0_87 = arith.constant 0 : index
    %85 = vector.load %arg17[%c0_85, %c1_86, %c0_87] : memref<18x18x16xf32, #tpu.memory_space<vmem>>, vector<16x16x16xf32>
    %86 = vector.shape_cast %85 : vector<16x16x16xf32> to vector<256x16xf32>
    %c1_88 = arith.constant 1 : index
    %c0_89 = arith.constant 0 : index
    %87 = vector.load %arg5[%c1_88, %c0_89] : memref<9x16xf32, #tpu.memory_space<vmem>>, vector<1x16xf32>
    %88 = vector.broadcast %87 : vector<1x16xf32> to vector<256x16xf32>
    %89 = arith.mulf %86, %88 : vector<256x16xf32>
    %90 = arith.addf %84, %89 : vector<256x16xf32>
    %c0_90 = arith.constant 0 : index
    %c2_91 = arith.constant 2 : index
    %c0_92 = arith.constant 0 : index
    %91 = vector.load %arg17[%c0_90, %c2_91, %c0_92] : memref<18x18x16xf32, #tpu.memory_space<vmem>>, vector<16x16x16xf32>
    %92 = vector.shape_cast %91 : vector<16x16x16xf32> to vector<256x16xf32>
    %c2_93 = arith.constant 2 : index
    %c0_94 = arith.constant 0 : index
    %93 = vector.load %arg5[%c2_93, %c0_94] : memref<9x16xf32, #tpu.memory_space<vmem>>, vector<1x16xf32>
    %94 = vector.broadcast %93 : vector<1x16xf32> to vector<256x16xf32>
    %95 = arith.mulf %92, %94 : vector<256x16xf32>
    %96 = arith.addf %90, %95 : vector<256x16xf32>
    %c1_95 = arith.constant 1 : index
    %c0_96 = arith.constant 0 : index
    %c0_97 = arith.constant 0 : index
    %97 = vector.load %arg17[%c1_95, %c0_96, %c0_97] : memref<18x18x16xf32, #tpu.memory_space<vmem>>, vector<16x16x16xf32>
    %98 = vector.shape_cast %97 : vector<16x16x16xf32> to vector<256x16xf32>
    %c3_98 = arith.constant 3 : index
    %c0_99 = arith.constant 0 : index
    %99 = vector.load %arg5[%c3_98, %c0_99] : memref<9x16xf32, #tpu.memory_space<vmem>>, vector<1x16xf32>
    %100 = vector.broadcast %99 : vector<1x16xf32> to vector<256x16xf32>
    %101 = arith.mulf %98, %100 : vector<256x16xf32>
    %102 = arith.addf %96, %101 : vector<256x16xf32>
    %c1_100 = arith.constant 1 : index
    %c1_101 = arith.constant 1 : index
    %c0_102 = arith.constant 0 : index
    %103 = vector.load %arg17[%c1_100, %c1_101, %c0_102] : memref<18x18x16xf32, #tpu.memory_space<vmem>>, vector<16x16x16xf32>
    %104 = vector.shape_cast %103 : vector<16x16x16xf32> to vector<256x16xf32>
    %c4_103 = arith.constant 4 : index
    %c0_104 = arith.constant 0 : index
    %105 = vector.load %arg5[%c4_103, %c0_104] : memref<9x16xf32, #tpu.memory_space<vmem>>, vector<1x16xf32>
    %106 = vector.broadcast %105 : vector<1x16xf32> to vector<256x16xf32>
    %107 = arith.mulf %104, %106 : vector<256x16xf32>
    %108 = arith.addf %102, %107 : vector<256x16xf32>
    %c1_105 = arith.constant 1 : index
    %c2_106 = arith.constant 2 : index
    %c0_107 = arith.constant 0 : index
    %109 = vector.load %arg17[%c1_105, %c2_106, %c0_107] : memref<18x18x16xf32, #tpu.memory_space<vmem>>, vector<16x16x16xf32>
    %110 = vector.shape_cast %109 : vector<16x16x16xf32> to vector<256x16xf32>
    %c5_108 = arith.constant 5 : index
    %c0_109 = arith.constant 0 : index
    %111 = vector.load %arg5[%c5_108, %c0_109] : memref<9x16xf32, #tpu.memory_space<vmem>>, vector<1x16xf32>
    %112 = vector.broadcast %111 : vector<1x16xf32> to vector<256x16xf32>
    %113 = arith.mulf %110, %112 : vector<256x16xf32>
    %114 = arith.addf %108, %113 : vector<256x16xf32>
    %c2_110 = arith.constant 2 : index
    %c0_111 = arith.constant 0 : index
    %c0_112 = arith.constant 0 : index
    %115 = vector.load %arg17[%c2_110, %c0_111, %c0_112] : memref<18x18x16xf32, #tpu.memory_space<vmem>>, vector<16x16x16xf32>
    %116 = vector.shape_cast %115 : vector<16x16x16xf32> to vector<256x16xf32>
    %c6_113 = arith.constant 6 : index
    %c0_114 = arith.constant 0 : index
    %117 = vector.load %arg5[%c6_113, %c0_114] : memref<9x16xf32, #tpu.memory_space<vmem>>, vector<1x16xf32>
    %118 = vector.broadcast %117 : vector<1x16xf32> to vector<256x16xf32>
    %119 = arith.mulf %116, %118 : vector<256x16xf32>
    %120 = arith.addf %114, %119 : vector<256x16xf32>
    %c2_115 = arith.constant 2 : index
    %c1_116 = arith.constant 1 : index
    %c0_117 = arith.constant 0 : index
    %121 = vector.load %arg17[%c2_115, %c1_116, %c0_117] : memref<18x18x16xf32, #tpu.memory_space<vmem>>, vector<16x16x16xf32>
    %122 = vector.shape_cast %121 : vector<16x16x16xf32> to vector<256x16xf32>
    %c7_118 = arith.constant 7 : index
    %c0_119 = arith.constant 0 : index
    %123 = vector.load %arg5[%c7_118, %c0_119] : memref<9x16xf32, #tpu.memory_space<vmem>>, vector<1x16xf32>
    %124 = vector.broadcast %123 : vector<1x16xf32> to vector<256x16xf32>
    %125 = arith.mulf %122, %124 : vector<256x16xf32>
    %126 = arith.addf %120, %125 : vector<256x16xf32>
    %c2_120 = arith.constant 2 : index
    %c2_121 = arith.constant 2 : index
    %c0_122 = arith.constant 0 : index
    %127 = vector.load %arg17[%c2_120, %c2_121, %c0_122] : memref<18x18x16xf32, #tpu.memory_space<vmem>>, vector<16x16x16xf32>
    %128 = vector.shape_cast %127 : vector<16x16x16xf32> to vector<256x16xf32>
    %c8_123 = arith.constant 8 : index
    %c0_124 = arith.constant 0 : index
    %129 = vector.load %arg5[%c8_123, %c0_124] : memref<9x16xf32, #tpu.memory_space<vmem>>, vector<1x16xf32>
    %130 = vector.broadcast %129 : vector<1x16xf32> to vector<256x16xf32>
    %131 = arith.mulf %128, %130 : vector<256x16xf32>
    %132 = arith.addf %126, %131 : vector<256x16xf32>
    %c0_125 = arith.constant 0 : index
    %c0_126 = arith.constant 0 : index
    %133 = vector.load %arg6[%c0_125, %c0_126] : memref<1x16xf32, #tpu.memory_space<vmem>>, vector<1x16xf32>
    %134 = vector.broadcast %133 : vector<1x16xf32> to vector<256x16xf32>
    %135 = arith.mulf %132, %134 : vector<256x16xf32>
    %c0_127 = arith.constant 0 : index
    %c0_128 = arith.constant 0 : index
    %136 = vector.load %arg7[%c0_127, %c0_128] : memref<1x16xf32, #tpu.memory_space<vmem>>, vector<1x16xf32>
    %137 = vector.broadcast %136 : vector<1x16xf32> to vector<256x16xf32>
    %138 = arith.addf %135, %137 : vector<256x16xf32>
    %cst_129 = arith.constant 0.000000e+00 : f32
    %139 = vector.broadcast %cst_129 : f32 to vector<256x16xf32>
    %140 = arith.subf %139, %138 : vector<256x16xf32>
    %141 = math.exp %140 : vector<256x16xf32>
    %cst_130 = arith.constant 1.000000e+00 : f32
    %142 = vector.broadcast %cst_130 : f32 to vector<256x16xf32>
    %143 = arith.addf %142, %141 : vector<256x16xf32>
    %cst_131 = arith.constant 1.000000e+00 : f32
    %144 = vector.broadcast %cst_131 : f32 to vector<256x16xf32>
    %145 = arith.divf %144, %143 : vector<256x16xf32>
    %146 = arith.mulf %138, %145 : vector<256x16xf32>
    %cst_132 = arith.constant dense<0.000000e+00> : vector<16xf32>
    %147 = vector.multi_reduction <add>, %146, %cst_132 [0] : vector<256x16xf32> to vector<16xf32>
    %148 = vector.shape_cast %147 : vector<16xf32> to vector<1x16xf32>
    %cst_133 = arith.constant 2.560000e+02 : f32
    %149 = vector.broadcast %cst_133 : f32 to vector<1x16xf32>
    %150 = arith.divf %148, %149 : vector<1x16xf32>
    %c0_134 = arith.constant 0 : index
    %c0_135 = arith.constant 0 : index
    %151 = vector.load %arg8[%c0_134, %c0_135] : memref<16x1xf32, #tpu.memory_space<vmem>>, vector<16x1xf32>
    %cst_136 = arith.constant dense<0.000000e+00> : vector<1x1xf32>
    %152 = tpu.matmul %150, %151, %cst_136 {dimension_numbers = #tpu.dot_dimension_numbers<[1], [0], [0], [1], [0, 0, 1, 1], [], []>} : vector<1x16xf32>, vector<16x1xf32>, vector<1x1xf32> -> vector<1x1xf32>
    %c0_137 = arith.constant 0 : index
    %c0_138 = arith.constant 0 : index
    %153 = vector.load %arg9[%c0_137, %c0_138] : memref<1x1xf32, #tpu.memory_space<vmem>>, vector<1x1xf32>
    %154 = arith.addf %152, %153 : vector<1x1xf32>
    %cst_139 = arith.constant 0.000000e+00 : f32
    %155 = vector.broadcast %cst_139 : f32 to vector<1x1xf32>
    %156 = arith.subf %155, %154 : vector<1x1xf32>
    %157 = math.exp %156 : vector<1x1xf32>
    %cst_140 = arith.constant 1.000000e+00 : f32
    %158 = vector.broadcast %cst_140 : f32 to vector<1x1xf32>
    %159 = arith.addf %158, %157 : vector<1x1xf32>
    %cst_141 = arith.constant 1.000000e+00 : f32
    %160 = vector.broadcast %cst_141 : f32 to vector<1x1xf32>
    %161 = arith.divf %160, %159 : vector<1x1xf32>
    %162 = arith.mulf %154, %161 : vector<1x1xf32>
    %c0_142 = arith.constant 0 : index
    %c0_143 = arith.constant 0 : index
    %163 = vector.load %arg10[%c0_142, %c0_143] : memref<1x16xf32, #tpu.memory_space<vmem>>, vector<1x16xf32>
    %cst_144 = arith.constant dense<0.000000e+00> : vector<1x16xf32>
    %164 = tpu.matmul %162, %163, %cst_144 {dimension_numbers = #tpu.dot_dimension_numbers<[1], [0], [0], [1], [0, 0, 1, 1], [], []>} : vector<1x1xf32>, vector<1x16xf32>, vector<1x16xf32> -> vector<1x16xf32>
    %c0_145 = arith.constant 0 : index
    %c0_146 = arith.constant 0 : index
    %165 = vector.load %arg11[%c0_145, %c0_146] : memref<1x16xf32, #tpu.memory_space<vmem>>, vector<1x16xf32>
    %166 = arith.addf %164, %165 : vector<1x16xf32>
    %cst_147 = arith.constant 0.000000e+00 : f32
    %167 = vector.broadcast %cst_147 : f32 to vector<1x16xf32>
    %168 = arith.subf %167, %166 : vector<1x16xf32>
    %169 = math.exp %168 : vector<1x16xf32>
    %cst_148 = arith.constant 1.000000e+00 : f32
    %170 = vector.broadcast %cst_148 : f32 to vector<1x16xf32>
    %171 = arith.addf %170, %169 : vector<1x16xf32>
    %cst_149 = arith.constant 1.000000e+00 : f32
    %172 = vector.broadcast %cst_149 : f32 to vector<1x16xf32>
    %173 = arith.divf %172, %171 : vector<1x16xf32>
    %174 = vector.broadcast %173 : vector<1x16xf32> to vector<256x16xf32>
    %175 = arith.mulf %146, %174 : vector<256x16xf32>
    %c0_150 = arith.constant 0 : index
    %c0_151 = arith.constant 0 : index
    %176 = vector.load %arg12[%c0_150, %c0_151] : memref<16x4xf32, #tpu.memory_space<vmem>>, vector<16x4xf32>
    %cst_152 = arith.constant dense<0.000000e+00> : vector<256x4xf32>
    %177 = tpu.matmul %175, %176, %cst_152 {dimension_numbers = #tpu.dot_dimension_numbers<[1], [0], [0], [1], [0, 0, 1, 1], [], []>} : vector<256x16xf32>, vector<16x4xf32>, vector<256x4xf32> -> vector<256x4xf32>
    %c0_153 = arith.constant 0 : index
    %c0_154 = arith.constant 0 : index
    %178 = vector.load %arg13[%c0_153, %c0_154] : memref<1x4xf32, #tpu.memory_space<vmem>>, vector<1x4xf32>
    %179 = vector.broadcast %178 : vector<1x4xf32> to vector<256x4xf32>
    %180 = arith.mulf %177, %179 : vector<256x4xf32>
    %c0_155 = arith.constant 0 : index
    %c0_156 = arith.constant 0 : index
    %181 = vector.load %arg14[%c0_155, %c0_156] : memref<1x4xf32, #tpu.memory_space<vmem>>, vector<1x4xf32>
    %182 = vector.broadcast %181 : vector<1x4xf32> to vector<256x4xf32>
    %183 = arith.addf %180, %182 : vector<256x4xf32>
    %c0_157 = arith.constant 0 : index
    %c0_158 = arith.constant 0 : index
    %c0_159 = arith.constant 0 : index
    %c0_160 = arith.constant 0 : index
    %184 = vector.load %arg1[%c0_157, %c0_158, %c0_159, %c0_160] : memref<1x16x16x4xf32, #tpu.memory_space<vmem>>, vector<1x16x16x4xf32>
    %185 = vector.shape_cast %184 : vector<1x16x16x4xf32> to vector<16x16x4xf32>
    %186 = vector.shape_cast %185 : vector<16x16x4xf32> to vector<256x4xf32>
    %187 = arith.addf %183, %186 : vector<256x4xf32>
    %188 = vector.shape_cast %187 : vector<256x4xf32> to vector<16x16x4xf32>
    %c0_161 = arith.constant 0 : index
    %c0_162 = arith.constant 0 : index
    %c0_163 = arith.constant 0 : index
    %c0_164 = arith.constant 0 : index
    %189 = vector.load %arg15[%c0_161, %c0_162, %c0_163, %c0_164] : memref<1x16x16x4xf32, #tpu.memory_space<vmem>>, vector<1x16x16x4xf32>
    %190 = vector.shape_cast %189 : vector<1x16x16x4xf32> to vector<16x16x4xf32>
    %191 = vector.shape_cast %188 : vector<16x16x4xf32> to vector<1x16x16x4xf32>
    tpu.vector_store %arg15[%c0_161, %c0_162, %c0_163, %c0_164], %191 {strides = array<i32>} : memref<1x16x16x4xf32, #tpu.memory_space<vmem>>, vector<1x16x16x4xf32>,
    return
  }
  func.func @transform_0(%arg0: i32) -> (i32, i32, i32, i32) {
    %c0_i32 = arith.constant 0 : i32
    %c0_i32_0 = arith.constant 0 : i32
    %c0_i32_1 = arith.constant 0 : i32
    %c0_i32_2 = arith.constant 0 : i32
    return %arg0, %c0_i32, %c0_i32_0, %c0_i32_1 : i32, i32, i32, i32
  }
  func.func @transform_1(%arg0: i32) -> (i32, i32, i32) {
    %c0_i32 = arith.constant 0 : i32
    %c0_i32_0 = arith.constant 0 : i32
    %c0_i32_1 = arith.constant 0 : i32
    %c0_i32_2 = arith.constant 0 : i32
    return %c0_i32, %c0_i32_0, %c0_i32_1 : i32, i32, i32
  }
  func.func @transform_2(%arg0: i32) -> (i32, i32) {
    %c0_i32 = arith.constant 0 : i32
    %c0_i32_0 = arith.constant 0 : i32
    %c0_i32_1 = arith.constant 0 : i32
    return %c0_i32, %c0_i32_0 : i32, i32
  }
  func.func @transform_3(%arg0: i32) -> (i32, i32) {
    %c0_i32 = arith.constant 0 : i32
    %c0_i32_0 = arith.constant 0 : i32
    %c0_i32_1 = arith.constant 0 : i32
    return %c0_i32, %c0_i32_0 : i32, i32
  }
  func.func @transform_4(%arg0: i32) -> (i32, i32) {
    %c0_i32 = arith.constant 0 : i32
    %c0_i32_0 = arith.constant 0 : i32
    %c0_i32_1 = arith.constant 0 : i32
    return %c0_i32, %c0_i32_0 : i32, i32
  }
  func.func @transform_5(%arg0: i32) -> (i32, i32) {
    %c0_i32 = arith.constant 0 : i32
    %c0_i32_0 = arith.constant 0 : i32
    %c0_i32_1 = arith.constant 0 : i32
    return %c0_i32, %c0_i32_0 : i32, i32
  }
  func.func @transform_6(%arg0: i32) -> (i32, i32) {
    %c0_i32 = arith.constant 0 : i32
    %c0_i32_0 = arith.constant 0 : i32
    %c0_i32_1 = arith.constant 0 : i32
    return %c0_i32, %c0_i32_0 : i32, i32
  }
  func.func @transform_7(%arg0: i32) -> (i32, i32) {
    %c0_i32 = arith.constant 0 : i32
    %c0_i32_0 = arith.constant 0 : i32
    %c0_i32_1 = arith.constant 0 : i32
    return %c0_i32, %c0_i32_0 : i32, i32
  }
  func.func @transform_8(%arg0: i32) -> (i32, i32) {
    %c0_i32 = arith.constant 0 : i32
    %c0_i32_0 = arith.constant 0 : i32
    %c0_i32_1 = arith.constant 0 : i32
    return %c0_i32, %c0_i32_0 : i32, i32
  }
  func.func @transform_9(%arg0: i32) -> (i32, i32) {
    %c0_i32 = arith.constant 0 : i32
    %c0_i32_0 = arith.constant 0 : i32
    %c0_i32_1 = arith.constant 0 : i32
    return %c0_i32, %c0_i32_0 : i32, i32
  }
  func.func @transform_10(%arg0: i32) -> (i32, i32) {
    %c0_i32 = arith.constant 0 : i32
    %c0_i32_0 = arith.constant 0 : i32
    %c0_i32_1 = arith.constant 0 : i32
    return %c0_i32, %c0_i32_0 : i32, i32
  }
  func.func @transform_11(%arg0: i32) -> (i32, i32) {
    %c0_i32 = arith.constant 0 : i32
    %c0_i32_0 = arith.constant 0 : i32
    %c0_i32_1 = arith.constant 0 : i32
    return %c0_i32, %c0_i32_0 : i32, i32
  }
  func.func @transform_12(%arg0: i32) -> (i32, i32) {
    %c0_i32 = arith.constant 0 : i32
    %c0_i32_0 = arith.constant 0 : i32
    %c0_i32_1 = arith.constant 0 : i32
    return %c0_i32, %c0_i32_0 : i32, i32
  }
  func.func @transform_13(%arg0: i32) -> (i32, i32) {
    %c0_i32 = arith.constant 0 : i32
    %c0_i32_0 = arith.constant 0 : i32
    %c0_i32_1 = arith.constant 0 : i32
    return %c0_i32, %c0_i32_0 : i32, i32
  }
  func.func @transform_14(%arg0: i32) -> (i32, i32, i32, i32) {
    %c0_i32 = arith.constant 0 : i32
    %c0_i32_0 = arith.constant 0 : i32
    %c0_i32_1 = arith.constant 0 : i32
    %c0_i32_2 = arith.constant 0 : i32
    return %arg0, %c0_i32, %c0_i32_0, %c0_i32_1 : i32, i32, i32, i32
  }
}

</mosaic_0001>

<llo_original>
// kernel: tpu_custom_call.1
$region0: #{tpu_custom_call.1}
  #allocation0 [shape = 'u32[]', space=smem, size = 0x4, offset = 0x4, fixed_abs, tag = 'smem constant byte address 0x4 - core index']
  #allocation1 [shape = 'u32[72,128]{1,0:T(1,128)}', space=vmem, size = 0x9000, scoped, tag = 'internal scratch']
  #allocation2 [shape = 'f32[18,18,4]{2,1,0:T(8,128)}', space=vmem, size = 0x36000, scoped, tag = 'scratch operand']
  #allocation3 [shape = 'f32[18,18,16]{2,1,0:T(8,128)}', space=vmem, size = 0x36000, scoped, tag = 'scratch operand']
  #allocation4 [shape = 'f32[1,1]{1,0:T(1,128)S(1)}', space=vmem, size = 0x200, scoped, tag = 'scoped memory for tpu_custom_call.1']
  %s0 = inlined_call_operand.vmem [shape: f32[2,16,16,4], index: 0, kind: input, shape index: {}]
  %s1 = inlined_call_operand.vmem [shape: f32[9,4,16], index: 1, kind: input, shape index: {}]
  %s2 = inlined_call_operand.vmem [shape: f32[1,16], index: 2, kind: input, shape index: {}]
  %s3 = inlined_call_operand.vmem [shape: f32[1,16], index: 3, kind: input, shape index: {}]
  %s4 = inlined_call_operand.vmem [shape: f32[9,16], index: 4, kind: input, shape index: {}]
  %s5 = inlined_call_operand.vmem [shape: f32[1,16], index: 5, kind: input, shape index: {}]
  %s6 = inlined_call_operand.vmem [shape: f32[1,16], index: 6, kind: input, shape index: {}]
  %s7 = inlined_call_operand.vmem [shape: f32[16,1], index: 7, kind: input, shape index: {}]
  %s8 = inlined_call_operand.<no memory space> [shape: f32[1,1], index: 8, kind: input, shape index: {}]
  %s9 = inlined_call_operand.vmem [shape: f32[1,16], index: 9, kind: input, shape index: {}]
  %s10 = inlined_call_operand.vmem [shape: f32[1,16], index: 10, kind: input, shape index: {}]
  %s11 = inlined_call_operand.vmem [shape: f32[16,4], index: 11, kind: input, shape index: {}]
  %s12 = inlined_call_operand.vmem [shape: f32[1,4], index: 12, kind: input, shape index: {}]
  %s13 = inlined_call_operand.vmem [shape: f32[1,4], index: 13, kind: input, shape index: {}]
  %s14 = inlined_call_operand.vmem [shape: f32[2,16,16,4], index: 14, kind: output, shape index: {}]
  %s15 = sld [smem:[#allocation0]]
  $region89: #{tpu_custom_call.1} parent=0
    _
  %s17 = ssub.s32 1, %s15
  %s18 = scalar_select 0, %s17, %s15
  %v19 = vstv %s8
  %20 = vst [vmem:[#allocation4] sm:$0x1] %v19
  loop: start=0, step=1, limit=4
  $region2: #{tpu_custom_call.1} parent=0 // loop_pre_header
    _
  $region3: #{tpu_custom_call.1} parent=0 // loop_header
    %s22 = sphi 0, %s26
    %p23 = scmp.ge.s32.totalorder %s22, 4
    %s32 = sphi 0, %s34
    %s35 = sphi 0, %s32
    %s36 = sphi 0, %s35
    %s52 = sphi 0, %s36
    %s56 = sphi 0, %s56
    %s58 = sphi 0, %s56
    %s59 = sphi 0, %s58
    %s73 = sphi 0, %s59
    %s77 = sphi 0, %s77
    %s79 = sphi 0, %s77
    %s80 = sphi 0, %s79
    %s94 = sphi 0, %s80
    %s98 = sphi 0, %s98
    %s100 = sphi 0, %s98
    %s101 = sphi 0, %s100
    %s115 = sphi 0, %s101
    %s119 = sphi 0, %s119
    %s121 = sphi 0, %s119
    %s122 = sphi 0, %s121
    %s136 = sphi 0, %s122
    %s140 = sphi 0, %s140
    %s142 = sphi 0, %s140
    %s143 = sphi 0, %s142
    %s157 = sphi 0, %s143
    %s161 = sphi 0, %s161
    %s163 = sphi 0, %s161
    %s164 = sphi 0, %s163
    %s178 = sphi 0, %s164
    %s182 = sphi 0, %s182
    %s184 = sphi 0, %s182
    %s185 = sphi 0, %s184
    %s199 = sphi 0, %s185
    %s203 = sphi 0, %s203
    %s205 = sphi 0, %s203
    %s206 = sphi 0, %s205
    %s220 = sphi 0, %s206
    %s224 = sphi 0, %s224
    %s226 = sphi 0, %s224
    %s227 = sphi 0, %s226
    %s241 = sphi 0, %s227
    %s245 = sphi 0, %s245
    %s247 = sphi 0, %s245
    %s248 = sphi 0, %s247
    %s262 = sphi 0, %s248
    %s266 = sphi 0, %s266
    %s268 = sphi 0, %s266
    %s269 = sphi 0, %s268
    %s283 = sphi 0, %s269
    %s287 = sphi 0, %s287
    %s289 = sphi 0, %s287
    %s290 = sphi 0, %s289
    %s304 = sphi 0, %s290
    %s308 = sphi 0, %s308
    %s310 = sphi 0, %s308
    %s311 = sphi 0, %s310
    %s325 = sphi 0, %s311
    %s331 = sphi 0, %s333
    %s334 = sphi 0, %s331
    %s335 = sphi 0, %s334
    %s351 = sphi 0, %s335
  $region4: #{tpu_custom_call.1} parent=0 // loop_header_branch
    %25 = sbr.rel (%p23) target = $region8
  $region5: #{tpu_custom_call.1} parent=0 // loop_body
    %s27 = ssub.s32 %s22, 1
    %s28 = ssub.s32 %s22, 2
    %s29 = sadd.s32 %s22, 1
    %s30 = ssub.s32 %s22, %s29
    %p31 = scmp.eq.s32.totalorder %s30, 0
    %s33 = sadd.s32 %s32, 1
    %s34 = scalar_select %p31, %s32, %s33
    %p37 = pneg %p31
    %p38 = scmp.eq.s32.totalorder %s22, 1
    %p39 = por %p37, %p38
    %p40 = scmp.ne.s32.totalorder %s32, %s35
    %p41 = scmp.eq.s32.totalorder %s22, 0
    %p42 = por %p40, %p41
    %p43 = scmp.ne.s32.totalorder %s32, %s35
    %p44 = scmp.eq.s32.totalorder %s27, 1
    %p45 = por %p43, %p44
    %p46 = scmp.ne.s32.totalorder %s35, %s36
    %p47 = scmp.eq.s32.totalorder %s27, 0
    %p48 = por %p46, %p47
    %p49 = scmp.ne.s32.totalorder %s35, %s36
    %p50 = scmp.eq.s32.totalorder %s28, 1
    %p51 = por %p49, %p50
    %p53 = scmp.ne.s32.totalorder %s36, %s52
    %p54 = scmp.eq.s32.totalorder %s28, 0
    %p55 = por %p53, %p54
    %s57 = sadd.s32 %s56, 1
    %p60 = scmp.eq.s32.totalorder %s22, 1
    %p61 = scmp.ne.s32.totalorder %s56, %s58
    %p62 = scmp.eq.s32.totalorder %s22, 0
    %p63 = por %p61, %p62
    %p64 = scmp.ne.s32.totalorder %s56, %s58
    %p65 = scmp.eq.s32.totalorder %s27, 1
    %p66 = por %p64, %p65
    %p67 = scmp.ne.s32.totalorder %s58, %s59
    %p68 = scmp.eq.s32.totalorder %s27, 0
    %p69 = por %p67, %p68
    %p70 = scmp.ne.s32.totalorder %s58, %s59
    %p71 = scmp.eq.s32.totalorder %s28, 1
    %p72 = por %p70, %p71
    %p74 = scmp.ne.s32.totalorder %s59, %s73
    %p75 = scmp.eq.s32.totalorder %s28, 0
    %p76 = por %p74, %p75
    %s78 = sadd.s32 %s77, 1
    %p81 = scmp.eq.s32.totalorder %s22, 1
    %p82 = scmp.ne.s32.totalorder %s77, %s79
    %p83 = scmp.eq.s32.totalorder %s22, 0
    %p84 = por %p82, %p83
    %p85 = scmp.ne.s32.totalorder %s77, %s79
    %p86 = scmp.eq.s32.totalorder %s27, 1
    %p87 = por %p85, %p86
    %p88 = scmp.ne.s32.totalorder %s79, %s80
    %p89 = scmp.eq.s32.totalorder %s27, 0
    %p90 = por %p88, %p89
    %p91 = scmp.ne.s32.totalorder %s79, %s80
    %p92 = scmp.eq.s32.totalorder %s28, 1
    %p93 = por %p91, %p92
    %p95 = scmp.ne.s32.totalorder %s80, %s94
    %p96 = scmp.eq.s32.totalorder %s28, 0
    %p97 = por %p95, %p96
    %s99 = sadd.s32 %s98, 1
    %p102 = scmp.eq.s32.totalorder %s22, 1
    %p103 = scmp.ne.s32.totalorder %s98, %s100
    %p104 = scmp.eq.s32.totalorder %s22, 0
    %p105 = por %p103, %p104
    %p106 = scmp.ne.s32.totalorder %s98, %s100
    %p107 = scmp.eq.s32.totalorder %s27, 1
    %p108 = por %p106, %p107
    %p109 = scmp.ne.s32.totalorder %s100, %s101
    %p110 = scmp.eq.s32.totalorder %s27, 0
    %p111 = por %p109, %p110
    %p112 = scmp.ne.s32.totalorder %s100, %s101
    %p113 = scmp.eq.s32.totalorder %s28, 1
    %p114 = por %p112, %p113
    %p116 = scmp.ne.s32.totalorder %s101, %s115
    %p117 = scmp.eq.s32.totalorder %s28, 0
    %p118 = por %p116, %p117
    %s120 = sadd.s32 %s119, 1
    %p123 = scmp.eq.s32.totalorder %s22, 1
    %p124 = scmp.ne.s32.totalorder %s119, %s121
    %p125 = scmp.eq.s32.totalorder %s22, 0
    %p126 = por %p124, %p125
    %p127 = scmp.ne.s32.totalorder %s119, %s121
    %p128 = scmp.eq.s32.totalorder %s27, 1
    %p129 = por %p127, %p128
    %p130 = scmp.ne.s32.totalorder %s121, %s122
    %p131 = scmp.eq.s32.totalorder %s27, 0
    %p132 = por %p130, %p131
    %p133 = scmp.ne.s32.totalorder %s121, %s122
    %p134 = scmp.eq.s32.totalorder %s28, 1
    %p135 = por %p133, %p134
    %p137 = scmp.ne.s32.totalorder %s122, %s136
    %p138 = scmp.eq.s32.totalorder %s28, 0
    %p139 = por %p137, %p138
    %s141 = sadd.s32 %s140, 1
    %p144 = scmp.eq.s32.totalorder %s22, 1
    %p145 = scmp.ne.s32.totalorder %s140, %s142
    %p146 = scmp.eq.s32.totalorder %s22, 0
    %p147 = por %p145, %p146
    %p148 = scmp.ne.s32.totalorder %s140, %s142
    %p149 = scmp.eq.s32.totalorder %s27, 1
    %p150 = por %p148, %p149
    %p151 = scmp.ne.s32.totalorder %s142, %s143
    %p152 = scmp.eq.s32.totalorder %s27, 0
    %p153 = por %p151, %p152
    %p154 = scmp.ne.s32.totalorder %s142, %s143
    %p155 = scmp.eq.s32.totalorder %s28, 1
    %p156 = por %p154, %p155
    %p158 = scmp.ne.s32.totalorder %s143, %s157
    %p159 = scmp.eq.s32.totalorder %s28, 0
    %p160 = por %p158, %p159
    %s162 = sadd.s32 %s161, 1
    %p165 = scmp.eq.s32.totalorder %s22, 1
    %p166 = scmp.ne.s32.totalorder %s161, %s163
    %p167 = scmp.eq.s32.totalorder %s22, 0
    %p168 = por %p166, %p167
    %p169 = scmp.ne.s32.totalorder %s161, %s163
    %p170 = scmp.eq.s32.totalorder %s27, 1
    %p171 = por %p169, %p170
    %p172 = scmp.ne.s32.totalorder %s163, %s164
    %p173 = scmp.eq.s32.totalorder %s27, 0
    %p174 = por %p172, %p173
    %p175 = scmp.ne.s32.totalorder %s163, %s164
    %p176 = scmp.eq.s32.totalorder %s28, 1
    %p177 = por %p175, %p176
    %p179 = scmp.ne.s32.totalorder %s164, %s178
    %p180 = scmp.eq.s32.totalorder %s28, 0
    %p181 = por %p179, %p180
    %s183 = sadd.s32 %s182, 1
    %p186 = scmp.eq.s32.totalorder %s22, 1
    %p187 = scmp.ne.s32.totalorder %s182, %s184
    %p188 = scmp.eq.s32.totalorder %s22, 0
    %p189 = por %p187, %p188
    %p190 = scmp.ne.s32.totalorder %s182, %s184
    %p191 = scmp.eq.s32.totalorder %s27, 1
    %p192 = por %p190, %p191
    %p193 = scmp.ne.s32.totalorder %s184, %s185
    %p194 = scmp.eq.s32.totalorder %s27, 0
    %p195 = por %p193, %p194
    %p196 = scmp.ne.s32.totalorder %s184, %s185
    %p197 = scmp.eq.s32.totalorder %s28, 1
    %p198 = por %p196, %p197
    %p200 = scmp.ne.s32.totalorder %s185, %s199
    %p201 = scmp.eq.s32.totalorder %s28, 0
    %p202 = por %p200, %p201
    %s204 = sadd.s32 %s203, 1
    %p207 = scmp.eq.s32.totalorder %s22, 1
    %p208 = scmp.ne.s32.totalorder %s203, %s205
    %p209 = scmp.eq.s32.totalorder %s22, 0
    %p210 = por %p208, %p209
    %p211 = scmp.ne.s32.totalorder %s203, %s205
    %p212 = scmp.eq.s32.totalorder %s27, 1
    %p213 = por %p211, %p212
    %p214 = scmp.ne.s32.totalorder %s205, %s206
    %p215 = scmp.eq.s32.totalorder %s27, 0
    %p216 = por %p214, %p215
    %p217 = scmp.ne.s32.totalorder %s205, %s206
    %p218 = scmp.eq.s32.totalorder %s28, 1
    %p219 = por %p217, %p218
    %p221 = scmp.ne.s32.totalorder %s206, %s220
    %p222 = scmp.eq.s32.totalorder %s28, 0
    %p223 = por %p221, %p222
    %s225 = sadd.s32 %s224, 1
    %p228 = scmp.eq.s32.totalorder %s22, 1
    %p229 = scmp.ne.s32.totalorder %s224, %s226
    %p230 = scmp.eq.s32.totalorder %s22, 0
    %p231 = por %p229, %p230
    %p232 = scmp.ne.s32.totalorder %s224, %s226
    %p233 = scmp.eq.s32.totalorder %s27, 1
    %p234 = por %p232, %p233
    %p235 = scmp.ne.s32.totalorder %s226, %s227
    %p236 = scmp.eq.s32.totalorder %s27, 0
    %p237 = por %p235, %p236
    %p238 = scmp.ne.s32.totalorder %s226, %s227
    %p239 = scmp.eq.s32.totalorder %s28, 1
    %p240 = por %p238, %p239
    %p242 = scmp.ne.s32.totalorder %s227, %s241
    %p243 = scmp.eq.s32.totalorder %s28, 0
    %p244 = por %p242, %p243
    %s246 = sadd.s32 %s245, 1
    %p249 = scmp.eq.s32.totalorder %s22, 1
    %p250 = scmp.ne.s32.totalorder %s245, %s247
    %p251 = scmp.eq.s32.totalorder %s22, 0
    %p252 = por %p250, %p251
    %p253 = scmp.ne.s32.totalorder %s245, %s247
    %p254 = scmp.eq.s32.totalorder %s27, 1
    %p255 = por %p253, %p254
    %p256 = scmp.ne.s32.totalorder %s247, %s248
    %p257 = scmp.eq.s32.totalorder %s27, 0
    %p258 = por %p256, %p257
    %p259 = scmp.ne.s32.totalorder %s247, %s248
    %p260 = scmp.eq.s32.totalorder %s28, 1
    %p261 = por %p259, %p260
    %p263 = scmp.ne.s32.totalorder %s248, %s262
    %p264 = scmp.eq.s32.totalorder %s28, 0
    %p265 = por %p263, %p264
    %s267 = sadd.s32 %s266, 1
    %p270 = scmp.eq.s32.totalorder %s22, 1
    %p271 = scmp.ne.s32.totalorder %s266, %s268
    %p272 = scmp.eq.s32.totalorder %s22, 0
    %p273 = por %p271, %p272
    %p274 = scmp.ne.s32.totalorder %s266, %s268
    %p275 = scmp.eq.s32.totalorder %s27, 1
    %p276 = por %p274, %p275
    %p277 = scmp.ne.s32.totalorder %s268, %s269
    %p278 = scmp.eq.s32.totalorder %s27, 0
    %p279 = por %p277, %p278
    %p280 = scmp.ne.s32.totalorder %s268, %s269
    %p281 = scmp.eq.s32.totalorder %s28, 1
    %p282 = por %p280, %p281
    %p284 = scmp.ne.s32.totalorder %s269, %s283
    %p285 = scmp.eq.s32.totalorder %s28, 0
    %p286 = por %p284, %p285
    %s288 = sadd.s32 %s287, 1
    %p291 = scmp.eq.s32.totalorder %s22, 1
    %p292 = scmp.ne.s32.totalorder %s287, %s289
    %p293 = scmp.eq.s32.totalorder %s22, 0
    %p294 = por %p292, %p293
    %p295 = scmp.ne.s32.totalorder %s287, %s289
    %p296 = scmp.eq.s32.totalorder %s27, 1
    %p297 = por %p295, %p296
    %p298 = scmp.ne.s32.totalorder %s289, %s290
    %p299 = scmp.eq.s32.totalorder %s27, 0
    %p300 = por %p298, %p299
    %p301 = scmp.ne.s32.totalorder %s289, %s290
    %p302 = scmp.eq.s32.totalorder %s28, 1
    %p303 = por %p301, %p302
    %p305 = scmp.ne.s32.totalorder %s290, %s304
    %p306 = scmp.eq.s32.totalorder %s28, 0
    %p307 = por %p305, %p306
    %s309 = sadd.s32 %s308, 1
    %p312 = scmp.eq.s32.totalorder %s22, 1
    %p313 = scmp.ne.s32.totalorder %s308, %s310
    %p314 = scmp.eq.s32.totalorder %s22, 0
    %p315 = por %p313, %p314
    %p316 = scmp.ne.s32.totalorder %s308, %s310
    %p317 = scmp.eq.s32.totalorder %s27, 1
    %p318 = por %p316, %p317
    %p319 = scmp.ne.s32.totalorder %s310, %s311
    %p320 = scmp.eq.s32.totalorder %s27, 0
    %p321 = por %p319, %p320
    %p322 = scmp.ne.s32.totalorder %s310, %s311
    %p323 = scmp.eq.s32.totalorder %s28, 1
    %p324 = por %p322, %p323
    %p326 = scmp.ne.s32.totalorder %s311, %s325
    %p327 = scmp.eq.s32.totalorder %s28, 0
    %p328 = por %p326, %p327
    %s329 = ssub.s32 %s22, %s29
    %p330 = scmp.eq.s32.totalorder %s329, 0
    %s332 = sadd.s32 %s331, 1
    %s333 = scalar_select %p330, %s331, %s332
    %p336 = pneg %p330
    %p337 = scmp.eq.s32.totalorder %s22, 1
    %p338 = por %p336, %p337
    %p339 = scmp.ne.s32.totalorder %s331, %s334
    %p340 = scmp.eq.s32.totalorder %s22, 0
    %p341 = por %p339, %p340
    %p342 = scmp.ne.s32.totalorder %s331, %s334
    %p343 = scmp.eq.s32.totalorder %s27, 1
    %p344 = por %p342, %p343
    %p345 = scmp.ne.s32.totalorder %s334, %s335
    %p346 = scmp.eq.s32.totalorder %s27, 0
    %p347 = por %p345, %p346
    %p348 = scmp.ne.s32.totalorder %s334, %s335
    %p349 = scmp.eq.s32.totalorder %s28, 1
    %p350 = por %p348, %p349
    %p352 = scmp.ne.s32.totalorder %s335, %s351
    %p353 = scmp.eq.s32.totalorder %s28, 0
    %p354 = por %p352, %p353
    %p355 = scmp.le.s32.totalorder 1, %s22
    %p356 = scmp.lt.s32.totalorder %s22, 3
    %p357 = pnand %p355, %p356
    %p358 = pneg %p357
    // Predicated region
    $region9: #{tpu_custom_call.1} parent=5 // pred_check
      _
    $region10: #{tpu_custom_call.1} parent=5 // pred_check_branch
      %360 = sbr.rel (%p357) target = $region12
    $region11: #{tpu_custom_call.1} parent=5 // pred_region
      %s361 = ssub.s32 %s22, 1
      // Predicated region
      $region13: #{tpu_custom_call.1} parent=11 // pred_check
        %p362 = pneg %p69
      $region14: #{tpu_custom_call.1} parent=11 // pred_check_branch
        %364 = sbr.rel (%p362) target = $region16
      $region15: #{tpu_custom_call.1} parent=11 // pred_region
        _
      $region16: #{tpu_custom_call.1} parent=11 // pred_fallthru
        _
      // Predicated region
      $region17: #{tpu_custom_call.1} parent=11 // pred_check
        %p365 = pneg %p90
      $region18: #{tpu_custom_call.1} parent=11 // pred_check_branch
        %367 = sbr.rel (%p365) target = $region20
      $region19: #{tpu_custom_call.1} parent=11 // pred_region
        _
      $region20: #{tpu_custom_call.1} parent=11 // pred_fallthru
        _
      // Predicated region
      $region21: #{tpu_custom_call.1} parent=11 // pred_check
        %p368 = pneg %p111
      $region22: #{tpu_custom_call.1} parent=11 // pred_check_branch
        %370 = sbr.rel (%p368) target = $region24
      $region23: #{tpu_custom_call.1} parent=11 // pred_region
        _
      $region24: #{tpu_custom_call.1} parent=11 // pred_fallthru
        _
      // Predicated region
      $region25: #{tpu_custom_call.1} parent=11 // pred_check
        %p371 = pneg %p132
      $region26: #{tpu_custom_call.1} parent=11 // pred_check_branch
        %373 = sbr.rel (%p371) target = $region28
      $region27: #{tpu_custom_call.1} parent=11 // pred_region
        _
      $region28: #{tpu_custom_call.1} parent=11 // pred_fallthru
        _
      // Predicated region
      $region29: #{tpu_custom_call.1} parent=11 // pred_check
        %p374 = pneg %p153
      $region30: #{tpu_custom_call.1} parent=11 // pred_check_branch
        %376 = sbr.rel (%p374) target = $region32
      $region31: #{tpu_custom_call.1} parent=11 // pred_region
        _
      $region32: #{tpu_custom_call.1} parent=11 // pred_fallthru
        _
      // Predicated region
      $region33: #{tpu_custom_call.1} parent=11 // pred_check
        %p377 = pneg %p174
      $region34: #{tpu_custom_call.1} parent=11 // pred_check_branch
        %379 = sbr.rel (%p377) target = $region36
      $region35: #{tpu_custom_call.1} parent=11 // pred_region
        _
      $region36: #{tpu_custom_call.1} parent=11 // pred_fallthru
        _
      // Predicated region
      $region37: #{tpu_custom_call.1} parent=11 // pred_check
        %p380 = pneg %p195
      $region38: #{tpu_custom_call.1} parent=11 // pred_check_branch
        %382 = sbr.rel (%p380) target = $region40
      $region39: #{tpu_custom_call.1} parent=11 // pred_region
        _
      $region40: #{tpu_custom_call.1} parent=11 // pred_fallthru
        _
      // Predicated region
      $region41: #{tpu_custom_call.1} parent=11 // pred_check
        %p383 = pneg %p216
      $region42: #{tpu_custom_call.1} parent=11 // pred_check_branch
        %385 = sbr.rel (%p383) target = $region44
      $region43: #{tpu_custom_call.1} parent=11 // pred_region
        _
      $region44: #{tpu_custom_call.1} parent=11 // pred_fallthru
        _
      // Predicated region
      $region45: #{tpu_custom_call.1} parent=11 // pred_check
        %p386 = pneg %p237
      $region46: #{tpu_custom_call.1} parent=11 // pred_check_branch
        %388 = sbr.rel (%p386) target = $region48
      $region47: #{tpu_custom_call.1} parent=11 // pred_region
        _
      $region48: #{tpu_custom_call.1} parent=11 // pred_fallthru
        _
      // Predicated region
      $region49: #{tpu_custom_call.1} parent=11 // pred_check
        %p389 = pneg %p258
      $region50: #{tpu_custom_call.1} parent=11 // pred_check_branch
        %391 = sbr.rel (%p389) target = $region52
      $region51: #{tpu_custom_call.1} parent=11 // pred_region
        _
      $region52: #{tpu_custom_call.1} parent=11 // pred_fallthru
        _
      // Predicated region
      $region53: #{tpu_custom_call.1} parent=11 // pred_check
        %p392 = pneg %p279
      $region54: #{tpu_custom_call.1} parent=11 // pred_check_branch
        %394 = sbr.rel (%p392) target = $region56
      $region55: #{tpu_custom_call.1} parent=11 // pred_region
        _
      $region56: #{tpu_custom_call.1} parent=11 // pred_fallthru
        _
      // Predicated region
      $region57: #{tpu_custom_call.1} parent=11 // pred_check
        %p395 = pneg %p300
      $region58: #{tpu_custom_call.1} parent=11 // pred_check_branch
        %397 = sbr.rel (%p395) target = $region60
      $region59: #{tpu_custom_call.1} parent=11 // pred_region
        _
      $region60: #{tpu_custom_call.1} parent=11 // pred_fallthru
        _
      // Predicated region
      $region61: #{tpu_custom_call.1} parent=11 // pred_check
        %p398 = pneg %p321
      $region62: #{tpu_custom_call.1} parent=11 // pred_check_branch
        %400 = sbr.rel (%p398) target = $region64
      $region63: #{tpu_custom_call.1} parent=11 // pred_region
        _
      $region64: #{tpu_custom_call.1} parent=11 // pred_fallthru
        _
    $region12: #{tpu_custom_call.1} parent=5 // pred_fallthru
      _
    %p401 = scmp.lt.s32.totalorder %s22, 2
    // Predicated region
    $region65: #{tpu_custom_call.1} parent=5 // pred_check
      %p402 = pneg %p401
    $region66: #{tpu_custom_call.1} parent=5 // pred_check_branch
      %404 = sbr.rel (%p402) target = $region68
    $region67: #{tpu_custom_call.1} parent=5 // pred_region
      // Predicated region
      $region69: #{tpu_custom_call.1} parent=67 // pred_check
        %p405 = pneg %p42
      $region70: #{tpu_custom_call.1} parent=67 // pred_check_branch
        %407 = sbr.rel (%p405) target = $region72
      $region71: #{tpu_custom_call.1} parent=67 // pred_region
        %p408 = scmp.lt.s32.totalorder %s22, 1
        %s409 = scalar_select %p408, %s22, 1
        %s410 = smul.addr %s409, 32
        %s411 = smul.addr %s410, 8
        %s412 = scalar_lea.vmem %s0, %s411
      $region72: #{tpu_custom_call.1} parent=67 // pred_fallthru
        _
    $region68: #{tpu_custom_call.1} parent=5 // pred_fallthru
      _
    %p413 = scmp.le.s32.totalorder 1, %s22
    %p414 = scmp.lt.s32.totalorder %s22, 3
    %p415 = pnand %p413, %p414
    %p416 = pneg %p415
    // Predicated region
    $region73: #{tpu_custom_call.1} parent=5 // pred_check
      _
    $region74: #{tpu_custom_call.1} parent=5 // pred_check_branch
      %418 = sbr.rel (%p415) target = $region76
    $region75: #{tpu_custom_call.1} parent=5 // pred_region
      %s419 = ssub.s32 %s22, 1
      %p420 = scmp.lt.s32.totalorder %s27, 1
      %s421 = scalar_select %p420, %s27, 1
      %s422 = smul.addr %s421, 32
      %s423 = smul.addr %s422, 8
      %s424 = scalar_lea.vmem %s0, %s423
      %p425 = pneg %p48
      %p426 = pneg %p45
      %p427 = pneg %p69
      %p428 = pneg %p66
      %p429 = pneg %p90
      %p430 = pneg %p87
      %p431 = pneg %p111
      %p432 = pneg %p108
      %p433 = pneg %p132
      %p434 = pneg %p129
      %p435 = pneg %p153
      %p436 = pneg %p150
      %p437 = pneg %p174
      %p438 = pneg %p171
      %p439 = pneg %p195
      %p440 = pneg %p192
      %p441 = pneg %p216
      %p442 = pneg %p213
      %p443 = pneg %p237
      %p444 = pneg %p234
      %p445 = pneg %p258
      %p446 = pneg %p255
      %p447 = pneg %p279
      %p448 = pneg %p276
      %p449 = pneg %p300
      %p450 = pneg %p297
      %p451 = pneg %p321
      %p452 = pneg %p318
      %p453 = pneg %p347
      %p454 = pneg %p344
      %p455 = scmp.lt.s32.totalorder %s27, 1
      %s456 = scalar_select %p455, %s27, 1
      %s457 = smul.addr %s456, 32
      %s458 = smul.addr %s457, 8
      %s459 = scalar_lea.vmem %s14, %s458
      %p460 = scmp.lt.s32.totalorder %s27, 1
      %s461 = scalar_select %p460, %s27, 1
      %s462 = smul.addr %s461, 32
      %s463 = smul.addr %s462, 8
      %s464 = scalar_lea.vmem %s0, %s463
      %p465 = scmp.lt.s32.totalorder %s27, 1
      %s466 = scalar_select %p465, %s27, 1
      %s467 = smul.addr %s466, 32
      %s468 = smul.addr %s467, 8
      %s469 = scalar_lea.vmem %s14, %s468
      %vm470 = vcmask 31744
      %471 = vst.msk [vmem:[#allocation2] sm:$0xff] %vm470, 0.0
      %472 = vst.msk [vmem:[#allocation2 + $0x8] sm:$0xff] %vm470, 0.0
      %vm473 = vcmask 25600
      %474 = vst.msk [vmem:[#allocation2 + $0x10] sm:$0x3] %vm473, 0.0
      %475 = vst.msk [vmem:[#allocation2 + $0x18] sm:$0xff] %vm470, 0.0
      %476 = vst.msk [vmem:[#allocation2 + $0x20] sm:$0xff] %vm470, 0.0
      %477 = vst.msk [vmem:[#allocation2 + $0x28] sm:$0x3] %vm473, 0.0
      %478 = vst.msk [vmem:[#allocation2 + $0x30] sm:$0xff] %vm470, 0.0
      %479 = vst.msk [vmem:[#allocation2 + $0x38] sm:$0xff] %vm470, 0.0
      %480 = vst.msk [vmem:[#allocation2 + $0x40] sm:$0x3] %vm473, 0.0
      %481 = vst.msk [vmem:[#allocation2 + $0x48] sm:$0xff] %vm470, 0.0
      %482 = vst.msk [vmem:[#allocation2 + $0x50] sm:$0xff] %vm470, 0.0
      %483 = vst.msk [vmem:[#allocation2 + $0x58] sm:$0x3] %vm473, 0.0
      %484 = vst.msk [vmem:[#allocation2 + $0x60] sm:$0xff] %vm470, 0.0
      %485 = vst.msk [vmem:[#allocation2 + $0x68] sm:$0xff] %vm470, 0.0
      %486 = vst.msk [vmem:[#allocation2 + $0x70] sm:$0x3] %vm473, 0.0
      %487 = vst.msk [vmem:[#allocation2 + $0x78] sm:$0xff] %vm470, 0.0
      %488 = vst.msk [vmem:[#allocation2 + $0x80] sm:$0xff] %vm470, 0.0
      %489 = vst.msk [vmem:[#allocation2 + $0x88] sm:$0x3] %vm473, 0.0
      %490 = vst.msk [vmem:[#allocation2 + $0x90] sm:$0xff] %vm470, 0.0
      %491 = vst.msk [vmem:[#allocation2 + $0x98] sm:$0xff] %vm470, 0.0
      %492 = vst.msk [vmem:[#allocation2 + $0xa0] sm:$0x3] %vm473, 0.0
      %493 = vst.msk [vmem:[#allocation2 + $0xa8] sm:$0xff] %vm470, 0.0
      %494 = vst.msk [vmem:[#allocation2 + $0xb0] sm:$0xff] %vm470, 0.0
      %495 = vst.msk [vmem:[#allocation2 + $0xb8] sm:$0x3] %vm473, 0.0
      %496 = vst.msk [vmem:[#allocation2 + $0xc0] sm:$0xff] %vm470, 0.0
      %497 = vst.msk [vmem:[#allocation2 + $0xc8] sm:$0xff] %vm470, 0.0
      %498 = vst.msk [vmem:[#allocation2 + $0xd0] sm:$0x3] %vm473, 0.0
      %499 = vst.msk [vmem:[#allocation2 + $0xd8] sm:$0xff] %vm470, 0.0
      %500 = vst.msk [vmem:[#allocation2 + $0xe0] sm:$0xff] %vm470, 0.0
      %501 = vst.msk [vmem:[#allocation2 + $0xe8] sm:$0x3] %vm473, 0.0
      %502 = vst.msk [vmem:[#allocation2 + $0xf0] sm:$0xff] %vm470, 0.0
      %503 = vst.msk [vmem:[#allocation2 + $0xf8] sm:$0xff] %vm470, 0.0
      %504 = vst.msk [vmem:[#allocation2 + $0x100] sm:$0x3] %vm473, 0.0
      %505 = vst.msk [vmem:[#allocation2 + $0x108] sm:$0xff] %vm470, 0.0
      %506 = vst.msk [vmem:[#allocation2 + $0x110] sm:$0xff] %vm470, 0.0
      %507 = vst.msk [vmem:[#allocation2 + $0x118] sm:$0x3] %vm473, 0.0
      %508 = vst.msk [vmem:[#allocation2 + $0x120] sm:$0xff] %vm470, 0.0
      %509 = vst.msk [vmem:[#allocation2 + $0x128] sm:$0xff] %vm470, 0.0
      %510 = vst.msk [vmem:[#allocation2 + $0x130] sm:$0x3] %vm473, 0.0
      %511 = vst.msk [vmem:[#allocation2 + $0x138] sm:$0xff] %vm470, 0.0
      %512 = vst.msk [vmem:[#allocation2 + $0x140] sm:$0xff] %vm470, 0.0
      %513 = vst.msk [vmem:[#allocation2 + $0x148] sm:$0x3] %vm473, 0.0
      %514 = vst.msk [vmem:[#allocation2 + $0x150] sm:$0xff] %vm470, 0.0
      %515 = vst.msk [vmem:[#allocation2 + $0x158] sm:$0xff] %vm470, 0.0
      %516 = vst.msk [vmem:[#allocation2 + $0x160] sm:$0x3] %vm473, 0.0
      %517 = vst.msk [vmem:[#allocation2 + $0x168] sm:$0xff] %vm470, 0.0
      %518 = vst.msk [vmem:[#allocation2 + $0x170] sm:$0xff] %vm470, 0.0
      %519 = vst.msk [vmem:[#allocation2 + $0x178] sm:$0x3] %vm473, 0.0
      %520 = vst.msk [vmem:[#allocation2 + $0x180] sm:$0xff] %vm470, 0.0
      %521 = vst.msk [vmem:[#allocation2 + $0x188] sm:$0xff] %vm470, 0.0
      %522 = vst.msk [vmem:[#allocation2 + $0x190] sm:$0x3] %vm473, 0.0
      %523 = vst.msk [vmem:[#allocation2 + $0x198] sm:$0xff] %vm470, 0.0
      %524 = vst.msk [vmem:[#allocation2 + $0x1a0] sm:$0xff] %vm470, 0.0
      %525 = vst.msk [vmem:[#allocation2 + $0x1a8] sm:$0x3] %vm473, 0.0
      %v526 = vld [vmem:[%s464] sm:$0xff]
      %v527 = vld [vmem:[%s464 + $0x8] sm:$0xff]
      %v528 = vld [vmem:[%s464 + $0x10] sm:$0xff]
      %v529 = vld [vmem:[%s464 + $0x18] sm:$0xff]
      %v530 = vld [vmem:[%s464 + $0x20] sm:$0xff]
      %v531 = vld [vmem:[%s464 + $0x28] sm:$0xff]
      %v532 = vld [vmem:[%s464 + $0x30] sm:$0xff]
      %v533 = vld [vmem:[%s464 + $0x38] sm:$0xff]
      %v534 = vld [vmem:[%s464 + $0x40] sm:$0xff]
      %v535 = vld [vmem:[%s464 + $0x48] sm:$0xff]
      %v536 = vld [vmem:[%s464 + $0x50] sm:$0xff]
      %v537 = vld [vmem:[%s464 + $0x58] sm:$0xff]
      %v538 = vld [vmem:[%s464 + $0x60] sm:$0xff]
      %v539 = vld [vmem:[%s464 + $0x68] sm:$0xff]
      %v540 = vld [vmem:[%s464 + $0x70] sm:$0xff]
      %v541 = vld [vmem:[%s464 + $0x78] sm:$0xff]
      %v542 = vld [vmem:[%s464 + $0x80] sm:$0xff]
      %v543 = vld [vmem:[%s464 + $0x88] sm:$0xff]
      %v544 = vld [vmem:[%s464 + $0x90] sm:$0xff]
      %v545 = vld [vmem:[%s464 + $0x98] sm:$0xff]
      %v546 = vld [vmem:[%s464 + $0xa0] sm:$0xff]
      %v547 = vld [vmem:[%s464 + $0xa8] sm:$0xff]
      %v548 = vld [vmem:[%s464 + $0xb0] sm:$0xff]
      %v549 = vld [vmem:[%s464 + $0xb8] sm:$0xff]
      %v550 = vld [vmem:[%s464 + $0xc0] sm:$0xff]
      %v551 = vld [vmem:[%s464 + $0xc8] sm:$0xff]
      %v552 = vld [vmem:[%s464 + $0xd0] sm:$0xff]
      %v553 = vld [vmem:[%s464 + $0xd8] sm:$0xff]
      %v554 = vld [vmem:[%s464 + $0xe0] sm:$0xff]
      %v555 = vld [vmem:[%s464 + $0xe8] sm:$0xff]
      %v556 = vld [vmem:[%s464 + $0xf0] sm:$0xff]
      %v557 = vld [vmem:[%s464 + $0xf8] sm:$0xff]
      %s558 = scalar_lea.vmem [#allocation2], 24
      %559 = vst.msk [vmem:[%s558 + $0x1] sm:$0xff] %vm470, %v526
      %560 = vst.msk [vmem:[%s558 + $0x9] sm:$0xff] %vm470, %v527
      %561 = vst.msk [vmem:[%s558 + $0x19] sm:$0xff] %vm470, %v528
      %562 = vst.msk [vmem:[%s558 + $0x21] sm:$0xff] %vm470, %v529
      %563 = vst.msk [vmem:[%s558 + $0x31] sm:$0xff] %vm470, %v530
      %564 = vst.msk [vmem:[%s558 + $0x39] sm:$0xff] %vm470, %v531
      %565 = vst.msk [vmem:[%s558 + $0x49] sm:$0xff] %vm470, %v532
      %566 = vst.msk [vmem:[%s558 + $0x51] sm:$0xff] %vm470, %v533
      %567 = vst.msk [vmem:[%s558 + $0x61] sm:$0xff] %vm470, %v534
      %568 = vst.msk [vmem:[%s558 + $0x69] sm:$0xff] %vm470, %v535
      %569 = vst.msk [vmem:[%s558 + $0x79] sm:$0xff] %vm470, %v536
      %570 = vst.msk [vmem:[%s558 + $0x81] sm:$0xff] %vm470, %v537
      %571 = vst.msk [vmem:[%s558 + $0x91] sm:$0xff] %vm470, %v538
      %572 = vst.msk [vmem:[%s558 + $0x99] sm:$0xff] %vm470, %v539
      %573 = vst.msk [vmem:[%s558 + $0xa9] sm:$0xff] %vm470, %v540
      %574 = vst.msk [vmem:[%s558 + $0xb1] sm:$0xff] %vm470, %v541
      %575 = vst.msk [vmem:[%s558 + $0xc1] sm:$0xff] %vm470, %v542
      %576 = vst.msk [vmem:[%s558 + $0xc9] sm:$0xff] %vm470, %v543
      %577 = vst.msk [vmem:[%s558 + $0xd9] sm:$0xff] %vm470, %v544
      %578 = vst.msk [vmem:[%s558 + $0xe1] sm:$0xff] %vm470, %v545
      %579 = vst.msk [vmem:[%s558 + $0xf1] sm:$0xff] %vm470, %v546
      %580 = vst.msk [vmem:[%s558 + $0xf9] sm:$0xff] %vm470, %v547
      %581 = vst.msk [vmem:[%s558 + $0x109] sm:$0xff] %vm470, %v548
      %582 = vst.msk [vmem:[%s558 + $0x111] sm:$0xff] %vm470, %v549
      %583 = vst.msk [vmem:[%s558 + $0x121] sm:$0xff] %vm470, %v550
      %584 = vst.msk [vmem:[%s558 + $0x129] sm:$0xff] %vm470, %v551
      %585 = vst.msk [vmem:[%s558 + $0x139] sm:$0xff] %vm470, %v552
      %586 = vst.msk [vmem:[%s558 + $0x141] sm:$0xff] %vm470, %v553
      %587 = vst.msk [vmem:[%s558 + $0x151] sm:$0xff] %vm470, %v554
      %588 = vst.msk [vmem:[%s558 + $0x159] sm:$0xff] %vm470, %v555
      %589 = vst.msk [vmem:[%s558 + $0x169] sm:$0xff] %vm470, %v556
      %590 = vst.msk [vmem:[%s558 + $0x171] sm:$0xff] %vm470, %v557
      %v591 = vld [vmem:[#allocation2] sm:$0xff]
      %v592 = vld [vmem:[#allocation2 + $0x8] sm:$0xff]
      %v593 = vld [vmem:[#allocation2 + $0x18] sm:$0xff]
      %v594 = vld [vmem:[#allocation2 + $0x20] sm:$0xff]
      %v595 = vld [vmem:[#allocation2 + $0x30] sm:$0xff]
      %v596 = vld [vmem:[#allocation2 + $0x38] sm:$0xff]
      %v597 = vld [vmem:[#allocation2 + $0x48] sm:$0xff]
      %v598 = vld [vmem:[#allocation2 + $0x50] sm:$0xff]
      %v599 = vld [vmem:[#allocation2 + $0x60] sm:$0xff]
      %v600 = vld [vmem:[#allocation2 + $0x68] sm:$0xff]
      %v601 = vld [vmem:[#allocation2 + $0x78] sm:$0xff]
      %v602 = vld [vmem:[#allocation2 + $0x80] sm:$0xff]
      %v603 = vld [vmem:[#allocation2 + $0x90] sm:$0xff]
      %v604 = vld [vmem:[#allocation2 + $0x98] sm:$0xff]
      %v605 = vld [vmem:[#allocation2 + $0xa8] sm:$0xff]
      %v606 = vld [vmem:[#allocation2 + $0xb0] sm:$0xff]
      %v607 = vld [vmem:[#allocation2 + $0xc0] sm:$0xff]
      %v608 = vld [vmem:[#allocation2 + $0xc8] sm:$0xff]
      %v609 = vld [vmem:[#allocation2 + $0xd8] sm:$0xff]
      %v610 = vld [vmem:[#allocation2 + $0xe0] sm:$0xff]
      %v611 = vld [vmem:[#allocation2 + $0xf0] sm:$0xff]
      %v612 = vld [vmem:[#allocation2 + $0xf8] sm:$0xff]
      %v613 = vld [vmem:[#allocation2 + $0x108] sm:$0xff]
      %v614 = vld [vmem:[#allocation2 + $0x110] sm:$0xff]
      %v615 = vld [vmem:[#allocation2 + $0x120] sm:$0xff]
      %v616 = vld [vmem:[#allocation2 + $0x128] sm:$0xff]
      %v617 = vld [vmem:[#allocation2 + $0x138] sm:$0xff]
      %v618 = vld [vmem:[#allocation2 + $0x140] sm:$0xff]
      %v619 = vld [vmem:[#allocation2 + $0x150] sm:$0xff]
      %v620 = vld [vmem:[#allocation2 + $0x158] sm:$0xff]
      %v621 = vld [vmem:[#allocation2 + $0x168] sm:$0xff]
      %v622 = vld [vmem:[#allocation2 + $0x170] sm:$0xff]
      %v623 = vld [vmem:[%s1] sm:$0xf]
      %v624 = vld [vmem:[#allocation2 + $0x1] sm:$0xff]
      %v625 = vld [vmem:[#allocation2 + $0x9] sm:$0xff]
      %v626 = vld [vmem:[#allocation2 + $0x19] sm:$0xff]
      %v627 = vld [vmem:[#allocation2 + $0x21] sm:$0xff]
      %v628 = vld [vmem:[#allocation2 + $0x31] sm:$0xff]
      %v629 = vld [vmem:[#allocation2 + $0x39] sm:$0xff]
      %v630 = vld [vmem:[#allocation2 + $0x49] sm:$0xff]
      %v631 = vld [vmem:[#allocation2 + $0x51] sm:$0xff]
      %v632 = vld [vmem:[#allocation2 + $0x61] sm:$0xff]
      %v633 = vld [vmem:[#allocation2 + $0x69] sm:$0xff]
      %v634 = vld [vmem:[#allocation2 + $0x79] sm:$0xff]
      %v635 = vld [vmem:[#allocation2 + $0x81] sm:$0xff]
      %v636 = vld [vmem:[#allocation2 + $0x91] sm:$0xff]
      %v637 = vld [vmem:[#allocation2 + $0x99] sm:$0xff]
      %v638 = vld [vmem:[#allocation2 + $0xa9] sm:$0xff]
      %v639 = vld [vmem:[#allocation2 + $0xb1] sm:$0xff]
      %v640 = vld [vmem:[#allocation2 + $0xc1] sm:$0xff]
      %v641 = vld [vmem:[#allocation2 + $0xc9] sm:$0xff]
      %v642 = vld [vmem:[#allocation2 + $0xd9] sm:$0xff]
      %v643 = vld [vmem:[#allocation2 + $0xe1] sm:$0xff]
      %v644 = vld [vmem:[#allocation2 + $0xf1] sm:$0xff]
      %v645 = vld [vmem:[#allocation2 + $0xf9] sm:$0xff]
      %v646 = vld [vmem:[#allocation2 + $0x109] sm:$0xff]
      %v647 = vld [vmem:[#allocation2 + $0x111] sm:$0xff]
      %v648 = vld [vmem:[#allocation2 + $0x121] sm:$0xff]
      %v649 = vld [vmem:[#allocation2 + $0x129] sm:$0xff]
      %v650 = vld [vmem:[#allocation2 + $0x139] sm:$0xff]
      %v651 = vld [vmem:[#allocation2 + $0x141] sm:$0xff]
      %v652 = vld [vmem:[#allocation2 + $0x151] sm:$0xff]
      %v653 = vld [vmem:[#allocation2 + $0x159] sm:$0xff]
      %v654 = vld [vmem:[#allocation2 + $0x169] sm:$0xff]
      %v655 = vld [vmem:[#allocation2 + $0x171] sm:$0xff]
      %s656 = scalar_lea.vmem %s1, 4
      %v657 = vld [vmem:[%s656] sm:$0xf]
      %v659 = vsel %vm470, %v624, 0
      %v662 = vsel %vm470, %v625, 0
      %v665 = vsel %vm470, %v626, 0
      %v668 = vsel %vm470, %v627, 0
      %v671 = vsel %vm470, %v628, 0
      %v674 = vsel %vm470, %v629, 0
      %v677 = vsel %vm470, %v630, 0
      %v680 = vsel %vm470, %v631, 0
      %v683 = vsel %vm470, %v632, 0
      %v686 = vsel %vm470, %v633, 0
      %v689 = vsel %vm470, %v634, 0
      %v692 = vsel %vm470, %v635, 0
      %v695 = vsel %vm470, %v636, 0
      %v698 = vsel %vm470, %v637, 0
      %v701 = vsel %vm470, %v638, 0
      %v704 = vsel %vm470, %v639, 0
      %v707 = vsel %vm470, %v640, 0
      %v710 = vsel %vm470, %v641, 0
      %v713 = vsel %vm470, %v642, 0
      %v716 = vsel %vm470, %v643, 0
      %v719 = vsel %vm470, %v644, 0
      %v722 = vsel %vm470, %v645, 0
      %v725 = vsel %vm470, %v646, 0
      %v728 = vsel %vm470, %v647, 0
      %v731 = vsel %vm470, %v648, 0
      %v734 = vsel %vm470, %v649, 0
      %v737 = vsel %vm470, %v650, 0
      %v740 = vsel %vm470, %v651, 0
      %v743 = vsel %vm470, %v652, 0
      %v746 = vsel %vm470, %v653, 0
      %v749 = vsel %vm470, %v654, 0
      %v752 = vsel %vm470, %v655, 0
      %vm754 = vcmask 1043456
      %v756 = vsel %vm754, %v657, 0
      %758 = vmatpush.msra.mxu0 0.0
      %759 = vmatpush.msra.mxu0 0.0
      %760 = vmatpush.msra.mxu0 0.0
      %761 = vmatpush.msra.mxu0 0.0
      %762 = vmatpush.msra.mxu0 0.0
      %763 = vmatpush.msra.mxu0 0.0
      %764 = vmatpush.msra.mxu0 0.0
      %765 = vmatpush.msra.mxu0 0.0
      %766 = vmatpush.msra.mxu0 0.0
      %767 = vmatpush.msra.mxu0 0.0
      %768 = vmatpush.msra.mxu0 0.0
      %769 = vmatpush.msra.mxu0 0.0
      %770 = vmatpush.msra.mxu0 0.0
      %771 = vmatpush.msra.mxu0 0.0
      %772 = vmatpush.msra.mxu0 0.0
      %773 = vmatpush.msra.mxu0 %v756
      %774 = vmatmul.f32.gmra.mxu0 %v659
      %v775 = vpop.f32.mrf.mxu0
      %v776 = vadd.f32 0.0, %v775
      %777 = vmatmul.f32.gmra.mxu0 %v662
      %v778 = vpop.f32.mrf.mxu0
      %v779 = vadd.f32 0.0, %v778
      %780 = vmatmul.f32.gmra.mxu0 %v665
      %v781 = vpop.f32.mrf.mxu0
      %v782 = vadd.f32 0.0, %v781
      %783 = vmatmul.f32.gmra.mxu0 %v668
      %v784 = vpop.f32.mrf.mxu0
      %v785 = vadd.f32 0.0, %v784
      %786 = vmatmul.f32.gmra.mxu0 %v671
      %v787 = vpop.f32.mrf.mxu0
      %v788 = vadd.f32 0.0, %v787
      %789 = vmatmul.f32.gmra.mxu0 %v674
      %v790 = vpop.f32.mrf.mxu0
      %v791 = vadd.f32 0.0, %v790
      %792 = vmatmul.f32.gmra.mxu0 %v677
      %v793 = vpop.f32.mrf.mxu0
      %v794 = vadd.f32 0.0, %v793
      %795 = vmatmul.f32.gmra.mxu0 %v680
      %v796 = vpop.f32.mrf.mxu0
      %v797 = vadd.f32 0.0, %v796
      %798 = vmatmul.f32.gmra.mxu0 %v683
      %v799 = vpop.f32.mrf.mxu0
      %v800 = vadd.f32 0.0, %v799
      %801 = vmatmul.f32.gmra.mxu0 %v686
      %v802 = vpop.f32.mrf.mxu0
      %v803 = vadd.f32 0.0, %v802
      %804 = vmatmul.f32.gmra.mxu0 %v689
      %v805 = vpop.f32.mrf.mxu0
      %v806 = vadd.f32 0.0, %v805
      %807 = vmatmul.f32.gmra.mxu0 %v692
      %v808 = vpop.f32.mrf.mxu0
      %v809 = vadd.f32 0.0, %v808
      %810 = vmatmul.f32.gmra.mxu0 %v695
      %v811 = vpop.f32.mrf.mxu0
      %v812 = vadd.f32 0.0, %v811
      %813 = vmatmul.f32.gmra.mxu0 %v698
      %v814 = vpop.f32.mrf.mxu0
      %v815 = vadd.f32 0.0, %v814
      %816 = vmatmul.f32.gmra.mxu0 %v701
      %v817 = vpop.f32.mrf.mxu0
      %v818 = vadd.f32 0.0, %v817
      %819 = vmatmul.f32.gmra.mxu0 %v704
      %v820 = vpop.f32.mrf.mxu0
      %v821 = vadd.f32 0.0, %v820
      %822 = vmatmul.f32.gmra.mxu0 %v707
      %v823 = vpop.f32.mrf.mxu0
      %v824 = vadd.f32 0.0, %v823
      %825 = vmatmul.f32.gmra.mxu0 %v710
      %v826 = vpop.f32.mrf.mxu0
      %v827 = vadd.f32 0.0, %v826
      %828 = vmatmul.f32.gmra.mxu0 %v713
      %v829 = vpop.f32.mrf.mxu0
      %v830 = vadd.f32 0.0, %v829
      %831 = vmatmul.f32.gmra.mxu0 %v716
      %v832 = vpop.f32.mrf.mxu0
      %v833 = vadd.f32 0.0, %v832
      %834 = vmatmul.f32.gmra.mxu0 %v719
      %v835 = vpop.f32.mrf.mxu0
      %v836 = vadd.f32 0.0, %v835
      %837 = vmatmul.f32.gmra.mxu0 %v722
      %v838 = vpop.f32.mrf.mxu0
      %v839 = vadd.f32 0.0, %v838
      %840 = vmatmul.f32.gmra.mxu0 %v725
      %v841 = vpop.f32.mrf.mxu0
      %v842 = vadd.f32 0.0, %v841
      %843 = vmatmul.f32.gmra.mxu0 %v728
      %v844 = vpop.f32.mrf.mxu0
      %v845 = vadd.f32 0.0, %v844
      %846 = vmatmul.f32.gmra.mxu0 %v731
      %v847 = vpop.f32.mrf.mxu0
      %v848 = vadd.f32 0.0, %v847
      %849 = vmatmul.f32.gmra.mxu0 %v734
      %v850 = vpop.f32.mrf.mxu0
      %v851 = vadd.f32 0.0, %v850
      %852 = vmatmul.f32.gmra.mxu0 %v737
      %v853 = vpop.f32.mrf.mxu0
      %v854 = vadd.f32 0.0, %v853
      %855 = vmatmul.f32.gmra.mxu0 %v740
      %v856 = vpop.f32.mrf.mxu0
      %v857 = vadd.f32 0.0, %v856
      %858 = vmatmul.f32.gmra.mxu0 %v743
      %v859 = vpop.f32.mrf.mxu0
      %v860 = vadd.f32 0.0, %v859
      %861 = vmatmul.f32.gmra.mxu0 %v746
      %v862 = vpop.f32.mrf.mxu0
      %v863 = vadd.f32 0.0, %v862
      %864 = vmatmul.f32.gmra.mxu0 %v749
      %v865 = vpop.f32.mrf.mxu0
      %v866 = vadd.f32 0.0, %v865
      %867 = vmatmul.f32.gmra.mxu0 %v752
      %v868 = vpop.f32.mrf.mxu0
      %v869 = vadd.f32 0.0, %v868
      %870 = vdwg.mxu0
      %v872 = vsel %vm470, %v591, 0
      %v875 = vsel %vm470, %v592, 0
      %v878 = vsel %vm470, %v593, 0
      %v881 = vsel %vm470, %v594, 0
      %v884 = vsel %vm470, %v595, 0
      %v887 = vsel %vm470, %v596, 0
      %v890 = vsel %vm470, %v597, 0
      %v893 = vsel %vm470, %v598, 0
      %v896 = vsel %vm470, %v599, 0
      %v899 = vsel %vm470, %v600, 0
      %v902 = vsel %vm470, %v601, 0
      %v905 = vsel %vm470, %v602, 0
      %v908 = vsel %vm470, %v603, 0
      %v911 = vsel %vm470, %v604, 0
      %v914 = vsel %vm470, %v605, 0
      %v917 = vsel %vm470, %v606, 0
      %v920 = vsel %vm470, %v607, 0
      %v923 = vsel %vm470, %v608, 0
      %v926 = vsel %vm470, %v609, 0
      %v929 = vsel %vm470, %v610, 0
      %v932 = vsel %vm470, %v611, 0
      %v935 = vsel %vm470, %v612, 0
      %v938 = vsel %vm470, %v613, 0
      %v941 = vsel %vm470, %v614, 0
      %v944 = vsel %vm470, %v615, 0
      %v947 = vsel %vm470, %v616, 0
      %v950 = vsel %vm470, %v617, 0
      %v953 = vsel %vm470, %v618, 0
      %v956 = vsel %vm470, %v619, 0
      %v959 = vsel %vm470, %v620, 0
      %v962 = vsel %vm470, %v621, 0
      %v965 = vsel %vm470, %v622, 0
      %v968 = vsel %vm754, %v623, 0
      %970 = vmatpush.msra.mxu0 0.0
      %971 = vmatpush.msra.mxu0 0.0
      %972 = vmatpush.msra.mxu0 0.0
      %973 = vmatpush.msra.mxu0 0.0
      %974 = vmatpush.msra.mxu0 0.0
      %975 = vmatpush.msra.mxu0 0.0
      %976 = vmatpush.msra.mxu0 0.0
      %977 = vmatpush.msra.mxu0 0.0
      %978 = vmatpush.msra.mxu0 0.0
      %979 = vmatpush.msra.mxu0 0.0
      %980 = vmatpush.msra.mxu0 0.0
      %981 = vmatpush.msra.mxu0 0.0
      %982 = vmatpush.msra.mxu0 0.0
      %983 = vmatpush.msra.mxu0 0.0
      %984 = vmatpush.msra.mxu0 0.0
      %985 = vmatpush.msra.mxu0 %v968
      %986 = vmatmul.f32.gmra.mxu0 %v872
      %v987 = vpop.f32.mrf.mxu0
      %v988 = vadd.f32 %v776, %v987
      %989 = vmatmul.f32.gmra.mxu0 %v875
      %v990 = vpop.f32.mrf.mxu0
      %v991 = vadd.f32 %v779, %v990
      %992 = vmatmul.f32.gmra.mxu0 %v878
      %v993 = vpop.f32.mrf.mxu0
      %v994 = vadd.f32 %v782, %v993
      %995 = vmatmul.f32.gmra.mxu0 %v881
      %v996 = vpop.f32.mrf.mxu0
      %v997 = vadd.f32 %v785, %v996
      %998 = vmatmul.f32.gmra.mxu0 %v884
      %v999 = vpop.f32.mrf.mxu0
      %v1000 = vadd.f32 %v788, %v999
      %1001 = vmatmul.f32.gmra.mxu0 %v887
      %v1002 = vpop.f32.mrf.mxu0
      %v1003 = vadd.f32 %v791, %v1002
      %1004 = vmatmul.f32.gmra.mxu0 %v890
      %v1005 = vpop.f32.mrf.mxu0
      %v1006 = vadd.f32 %v794, %v1005
      %1007 = vmatmul.f32.gmra.mxu0 %v893
      %v1008 = vpop.f32.mrf.mxu0
      %v1009 = vadd.f32 %v797, %v1008
      %1010 = vmatmul.f32.gmra.mxu0 %v896
      %v1011 = vpop.f32.mrf.mxu0
      %v1012 = vadd.f32 %v800, %v1011
      %1013 = vmatmul.f32.gmra.mxu0 %v899
      %v1014 = vpop.f32.mrf.mxu0
      %v1015 = vadd.f32 %v803, %v1014
      %1016 = vmatmul.f32.gmra.mxu0 %v902
      %v1017 = vpop.f32.mrf.mxu0
      %v1018 = vadd.f32 %v806, %v1017
      %1019 = vmatmul.f32.gmra.mxu0 %v905
      %v1020 = vpop.f32.mrf.mxu0
      %v1021 = vadd.f32 %v809, %v1020
      %1022 = vmatmul.f32.gmra.mxu0 %v908
      %v1023 = vpop.f32.mrf.mxu0
      %v1024 = vadd.f32 %v812, %v1023
      %1025 = vmatmul.f32.gmra.mxu0 %v911
      %v1026 = vpop.f32.mrf.mxu0
      %v1027 = vadd.f32 %v815, %v1026
      %1028 = vmatmul.f32.gmra.mxu0 %v914
      %v1029 = vpop.f32.mrf.mxu0
      %v1030 = vadd.f32 %v818, %v1029
      %1031 = vmatmul.f32.gmra.mxu0 %v917
      %v1032 = vpop.f32.mrf.mxu0
      %v1033 = vadd.f32 %v821, %v1032
      %1034 = vmatmul.f32.gmra.mxu0 %v920
      %v1035 = vpop.f32.mrf.mxu0
      %v1036 = vadd.f32 %v824, %v1035
      %1037 = vmatmul.f32.gmra.mxu0 %v923
      %v1038 = vpop.f32.mrf.mxu0
      %v1039 = vadd.f32 %v827, %v1038
      %1040 = vmatmul.f32.gmra.mxu0 %v926
      %v1041 = vpop.f32.mrf.mxu0
      %v1042 = vadd.f32 %v830, %v1041
      %1043 = vmatmul.f32.gmra.mxu0 %v929
      %v1044 = vpop.f32.mrf.mxu0
      %v1045 = vadd.f32 %v833, %v1044
      %1046 = vmatmul.f32.gmra.mxu0 %v932
      %v1047 = vpop.f32.mrf.mxu0
      %v1048 = vadd.f32 %v836, %v1047
      %1049 = vmatmul.f32.gmra.mxu0 %v935
      %v1050 = vpop.f32.mrf.mxu0
      %v1051 = vadd.f32 %v839, %v1050
      %1052 = vmatmul.f32.gmra.mxu0 %v938
      %v1053 = vpop.f32.mrf.mxu0
      %v1054 = vadd.f32 %v842, %v1053
      %1055 = vmatmul.f32.gmra.mxu0 %v941
      %v1056 = vpop.f32.mrf.mxu0
      %v1057 = vadd.f32 %v845, %v1056
      %1058 = vmatmul.f32.gmra.mxu0 %v944
      %v1059 = vpop.f32.mrf.mxu0
      %v1060 = vadd.f32 %v848, %v1059
      %1061 = vmatmul.f32.gmra.mxu0 %v947
      %v1062 = vpop.f32.mrf.mxu0
      %v1063 = vadd.f32 %v851, %v1062
      %1064 = vmatmul.f32.gmra.mxu0 %v950
      %v1065 = vpop.f32.mrf.mxu0
      %v1066 = vadd.f32 %v854, %v1065
      %1067 = vmatmul.f32.gmra.mxu0 %v953
      %v1068 = vpop.f32.mrf.mxu0
      %v1069 = vadd.f32 %v857, %v1068
      %1070 = vmatmul.f32.gmra.mxu0 %v956
      %v1071 = vpop.f32.mrf.mxu0
      %v1072 = vadd.f32 %v860, %v1071
      %1073 = vmatmul.f32.gmra.mxu0 %v959
      %v1074 = vpop.f32.mrf.mxu0
      %v1075 = vadd.f32 %v863, %v1074
      %1076 = vmatmul.f32.gmra.mxu0 %v962
      %v1077 = vpop.f32.mrf.mxu0
      %v1078 = vadd.f32 %v866, %v1077
      %1079 = vmatmul.f32.gmra.mxu0 %v965
      %v1080 = vpop.f32.mrf.mxu0
      %v1081 = vadd.f32 %v869, %v1080
      %1082 = vdwg.mxu0
      %v1083 = vld [vmem:[#allocation2 + $0x2] sm:$0xff]
      %v1084 = vld [vmem:[#allocation2 + $0xa] sm:$0xff]
      %v1085 = vld [vmem:[#allocation2 + $0x1a] sm:$0xff]
      %v1086 = vld [vmem:[#allocation2 + $0x22] sm:$0xff]
      %v1087 = vld [vmem:[#allocation2 + $0x32] sm:$0xff]
      %v1088 = vld [vmem:[#allocation2 + $0x3a] sm:$0xff]
      %v1089 = vld [vmem:[#allocation2 + $0x4a] sm:$0xff]
      %v1090 = vld [vmem:[#allocation2 + $0x52] sm:$0xff]
      %v1091 = vld [vmem:[#allocation2 + $0x62] sm:$0xff]
      %v1092 = vld [vmem:[#allocation2 + $0x6a] sm:$0xff]
      %v1093 = vld [vmem:[#allocation2 + $0x7a] sm:$0xff]
      %v1094 = vld [vmem:[#allocation2 + $0x82] sm:$0xff]
      %v1095 = vld [vmem:[#allocation2 + $0x92] sm:$0xff]
      %v1096 = vld [vmem:[#allocation2 + $0x9a] sm:$0xff]
      %v1097 = vld [vmem:[#allocation2 + $0xaa] sm:$0xff]
      %v1098 = vld [vmem:[#allocation2 + $0xb2] sm:$0xff]
      %v1099 = vld [vmem:[#allocation2 + $0xc2] sm:$0xff]
      %v1100 = vld [vmem:[#allocation2 + $0xca] sm:$0xff]
      %v1101 = vld [vmem:[#allocation2 + $0xda] sm:$0xff]
      %v1102 = vld [vmem:[#allocation2 + $0xe2] sm:$0xff]
      %v1103 = vld [vmem:[#allocation2 + $0xf2] sm:$0xff]
      %v1104 = vld [vmem:[#allocation2 + $0xfa] sm:$0xff]
      %v1105 = vld [vmem:[#allocation2 + $0x10a] sm:$0xff]
      %v1106 = vld [vmem:[#allocation2 + $0x112] sm:$0xff]
      %v1107 = vld [vmem:[#allocation2 + $0x122] sm:$0xff]
      %v1108 = vld [vmem:[#allocation2 + $0x12a] sm:$0xff]
      %v1109 = vld [vmem:[#allocation2 + $0x13a] sm:$0xff]
      %v1110 = vld [vmem:[#allocation2 + $0x142] sm:$0xff]
      %v1111 = vld [vmem:[#allocation2 + $0x152] sm:$0xff]
      %v1112 = vld [vmem:[#allocation2 + $0x15a] sm:$0xff]
      %v1113 = vld [vmem:[#allocation2 + $0x16a] sm:$0xff]
      %v1114 = vld [vmem:[#allocation2 + $0x172] sm:$0xff]
      %s1115 = scalar_lea.vmem %s1, 8
      %v1116 = vld [vmem:[%s1115] sm:$0xf]
      %v1118 = vsel %vm470, %v1083, 0
      %v1121 = vsel %vm470, %v1084, 0
      %v1124 = vsel %vm470, %v1085, 0
      %v1127 = vsel %vm470, %v1086, 0
      %v1130 = vsel %vm470, %v1087, 0
      %v1133 = vsel %vm470, %v1088, 0
      %v1136 = vsel %vm470, %v1089, 0
      %v1139 = vsel %vm470, %v1090, 0
      %v1142 = vsel %vm470, %v1091, 0
      %v1145 = vsel %vm470, %v1092, 0
      %v1148 = vsel %vm470, %v1093, 0
      %v1151 = vsel %vm470, %v1094, 0
      %v1154 = vsel %vm470, %v1095, 0
      %v1157 = vsel %vm470, %v1096, 0
      %v1160 = vsel %vm470, %v1097, 0
      %v1163 = vsel %vm470, %v1098, 0
      %v1166 = vsel %vm470, %v1099, 0
      %v1169 = vsel %vm470, %v1100, 0
      %v1172 = vsel %vm470, %v1101, 0
      %v1175 = vsel %vm470, %v1102, 0
      %v1178 = vsel %vm470, %v1103, 0
      %v1181 = vsel %vm470, %v1104, 0
      %v1184 = vsel %vm470, %v1105, 0
      %v1187 = vsel %vm470, %v1106, 0
      %v1190 = vsel %vm470, %v1107, 0
      %v1193 = vsel %vm470, %v1108, 0
      %v1196 = vsel %vm470, %v1109, 0
      %v1199 = vsel %vm470, %v1110, 0
      %v1202 = vsel %vm470, %v1111, 0
      %v1205 = vsel %vm470, %v1112, 0
      %v1208 = vsel %vm470, %v1113, 0
      %v1211 = vsel %vm470, %v1114, 0
      %v1214 = vsel %vm754, %v1116, 0
      %1216 = vmatpush.msra.mxu0 0.0
      %1217 = vmatpush.msra.mxu0 0.0
      %1218 = vmatpush.msra.mxu0 0.0
      %1219 = vmatpush.msra.mxu0 0.0
      %1220 = vmatpush.msra.mxu0 0.0
      %1221 = vmatpush.msra.mxu0 0.0
      %1222 = vmatpush.msra.mxu0 0.0
      %1223 = vmatpush.msra.mxu0 0.0
      %1224 = vmatpush.msra.mxu0 0.0
      %1225 = vmatpush.msra.mxu0 0.0
      %1226 = vmatpush.msra.mxu0 0.0
      %1227 = vmatpush.msra.mxu0 0.0
      %1228 = vmatpush.msra.mxu0 0.0
      %1229 = vmatpush.msra.mxu0 0.0
      %1230 = vmatpush.msra.mxu0 0.0
      %1231 = vmatpush.msra.mxu0 %v1214
      %1232 = vmatmul.f32.gmra.mxu0 %v1118
      %v1233 = vpop.f32.mrf.mxu0
      %v1234 = vadd.f32 0.0, %v1233
      %1235 = vmatmul.f32.gmra.mxu0 %v1121
      %v1236 = vpop.f32.mrf.mxu0
      %v1237 = vadd.f32 0.0, %v1236
      %1238 = vmatmul.f32.gmra.mxu0 %v1124
      %v1239 = vpop.f32.mrf.mxu0
      %v1240 = vadd.f32 0.0, %v1239
      %1241 = vmatmul.f32.gmra.mxu0 %v1127
      %v1242 = vpop.f32.mrf.mxu0
      %v1243 = vadd.f32 0.0, %v1242
      %1244 = vmatmul.f32.gmra.mxu0 %v1130
      %v1245 = vpop.f32.mrf.mxu0
      %v1246 = vadd.f32 0.0, %v1245
      %1247 = vmatmul.f32.gmra.mxu0 %v1133
      %v1248 = vpop.f32.mrf.mxu0
      %v1249 = vadd.f32 0.0, %v1248
      %1250 = vmatmul.f32.gmra.mxu0 %v1136
      %v1251 = vpop.f32.mrf.mxu0
      %v1252 = vadd.f32 0.0, %v1251
      %1253 = vmatmul.f32.gmra.mxu0 %v1139
      %v1254 = vpop.f32.mrf.mxu0
      %v1255 = vadd.f32 0.0, %v1254
      %1256 = vmatmul.f32.gmra.mxu0 %v1142
      %v1257 = vpop.f32.mrf.mxu0
      %v1258 = vadd.f32 0.0, %v1257
      %1259 = vmatmul.f32.gmra.mxu0 %v1145
      %v1260 = vpop.f32.mrf.mxu0
      %v1261 = vadd.f32 0.0, %v1260
      %1262 = vmatmul.f32.gmra.mxu0 %v1148
      %v1263 = vpop.f32.mrf.mxu0
      %v1264 = vadd.f32 0.0, %v1263
      %1265 = vmatmul.f32.gmra.mxu0 %v1151
      %v1266 = vpop.f32.mrf.mxu0
      %v1267 = vadd.f32 0.0, %v1266
      %1268 = vmatmul.f32.gmra.mxu0 %v1154
      %v1269 = vpop.f32.mrf.mxu0
      %v1270 = vadd.f32 0.0, %v1269
      %1271 = vmatmul.f32.gmra.mxu0 %v1157
      %v1272 = vpop.f32.mrf.mxu0
      %v1273 = vadd.f32 0.0, %v1272
      %1274 = vmatmul.f32.gmra.mxu0 %v1160
      %v1275 = vpop.f32.mrf.mxu0
      %v1276 = vadd.f32 0.0, %v1275
      %1277 = vmatmul.f32.gmra.mxu0 %v1163
      %v1278 = vpop.f32.mrf.mxu0
      %v1279 = vadd.f32 0.0, %v1278
      %1280 = vmatmul.f32.gmra.mxu0 %v1166
      %v1281 = vpop.f32.mrf.mxu0
      %v1282 = vadd.f32 0.0, %v1281
      %1283 = vmatmul.f32.gmra.mxu0 %v1169
      %v1284 = vpop.f32.mrf.mxu0
      %v1285 = vadd.f32 0.0, %v1284
      %1286 = vmatmul.f32.gmra.mxu0 %v1172
      %v1287 = vpop.f32.mrf.mxu0
      %v1288 = vadd.f32 0.0, %v1287
      %1289 = vmatmul.f32.gmra.mxu0 %v1175
      %v1290 = vpop.f32.mrf.mxu0
      %v1291 = vadd.f32 0.0, %v1290
      %1292 = vmatmul.f32.gmra.mxu0 %v1178
      %v1293 = vpop.f32.mrf.mxu0
      %v1294 = vadd.f32 0.0, %v1293
      %1295 = vmatmul.f32.gmra.mxu0 %v1181
      %v1296 = vpop.f32.mrf.mxu0
      %v1297 = vadd.f32 0.0, %v1296
      %1298 = vmatmul.f32.gmra.mxu0 %v1184
      %v1299 = vpop.f32.mrf.mxu0
      %v1300 = vadd.f32 0.0, %v1299
      %1301 = vmatmul.f32.gmra.mxu0 %v1187
      %v1302 = vpop.f32.mrf.mxu0
      %v1303 = vadd.f32 0.0, %v1302
      %1304 = vmatmul.f32.gmra.mxu0 %v1190
      %v1305 = vpop.f32.mrf.mxu0
      %v1306 = vadd.f32 0.0, %v1305
      %1307 = vmatmul.f32.gmra.mxu0 %v1193
      %v1308 = vpop.f32.mrf.mxu0
      %v1309 = vadd.f32 0.0, %v1308
      %1310 = vmatmul.f32.gmra.mxu0 %v1196
      %v1311 = vpop.f32.mrf.mxu0
      %v1312 = vadd.f32 0.0, %v1311
      %1313 = vmatmul.f32.gmra.mxu0 %v1199
      %v1314 = vpop.f32.mrf.mxu0
      %v1315 = vadd.f32 0.0, %v1314
      %1316 = vmatmul.f32.gmra.mxu0 %v1202
      %v1317 = vpop.f32.mrf.mxu0
      %v1318 = vadd.f32 0.0, %v1317
      %1319 = vmatmul.f32.gmra.mxu0 %v1205
      %v1320 = vpop.f32.mrf.mxu0
      %v1321 = vadd.f32 0.0, %v1320
      %1322 = vmatmul.f32.gmra.mxu0 %v1208
      %v1323 = vpop.f32.mrf.mxu0
      %v1324 = vadd.f32 0.0, %v1323
      %1325 = vmatmul.f32.gmra.mxu0 %v1211
      %v1326 = vpop.f32.mrf.mxu0
      %v1327 = vadd.f32 0.0, %v1326
      %1328 = vdwg.mxu0
      %v1329 = vadd.f32 %v988, %v1234
      %v1330 = vadd.f32 %v991, %v1237
      %v1331 = vadd.f32 %v994, %v1240
      %v1332 = vadd.f32 %v997, %v1243
      %v1333 = vadd.f32 %v1000, %v1246
      %v1334 = vadd.f32 %v1003, %v1249
      %v1335 = vadd.f32 %v1006, %v1252
      %v1336 = vadd.f32 %v1009, %v1255
      %v1337 = vadd.f32 %v1012, %v1258
      %v1338 = vadd.f32 %v1015, %v1261
      %v1339 = vadd.f32 %v1018, %v1264
      %v1340 = vadd.f32 %v1021, %v1267
      %v1341 = vadd.f32 %v1024, %v1270
      %v1342 = vadd.f32 %v1027, %v1273
      %v1343 = vadd.f32 %v1030, %v1276
      %v1344 = vadd.f32 %v1033, %v1279
      %v1345 = vadd.f32 %v1036, %v1282
      %v1346 = vadd.f32 %v1039, %v1285
      %v1347 = vadd.f32 %v1042, %v1288
      %v1348 = vadd.f32 %v1045, %v1291
      %v1349 = vadd.f32 %v1048, %v1294
      %v1350 = vadd.f32 %v1051, %v1297
      %v1351 = vadd.f32 %v1054, %v1300
      %v1352 = vadd.f32 %v1057, %v1303
      %v1353 = vadd.f32 %v1060, %v1306
      %v1354 = vadd.f32 %v1063, %v1309
      %v1355 = vadd.f32 %v1066, %v1312
      %v1356 = vadd.f32 %v1069, %v1315
      %v1357 = vadd.f32 %v1072, %v1318
      %v1358 = vadd.f32 %v1075, %v1321
      %v1359 = vadd.f32 %v1078, %v1324
      %v1360 = vadd.f32 %v1081, %v1327
      %v1361 = vld [vmem:[%s558] sm:$0xff]
      %v1362 = vld [vmem:[%s558 + $0x8] sm:$0xff]
      %v1363 = vld [vmem:[%s558 + $0x18] sm:$0xff]
      %v1364 = vld [vmem:[%s558 + $0x20] sm:$0xff]
      %v1365 = vld [vmem:[%s558 + $0x30] sm:$0xff]
      %v1366 = vld [vmem:[%s558 + $0x38] sm:$0xff]
      %v1367 = vld [vmem:[%s558 + $0x48] sm:$0xff]
      %v1368 = vld [vmem:[%s558 + $0x50] sm:$0xff]
      %v1369 = vld [vmem:[%s558 + $0x60] sm:$0xff]
      %v1370 = vld [vmem:[%s558 + $0x68] sm:$0xff]
      %v1371 = vld [vmem:[%s558 + $0x78] sm:$0xff]
      %v1372 = vld [vmem:[%s558 + $0x80] sm:$0xff]
      %v1373 = vld [vmem:[%s558 + $0x90] sm:$0xff]
      %v1374 = vld [vmem:[%s558 + $0x98] sm:$0xff]
      %v1375 = vld [vmem:[%s558 + $0xa8] sm:$0xff]
      %v1376 = vld [vmem:[%s558 + $0xb0] sm:$0xff]
      %v1377 = vld [vmem:[%s558 + $0xc0] sm:$0xff]
      %v1378 = vld [vmem:[%s558 + $0xc8] sm:$0xff]
      %v1379 = vld [vmem:[%s558 + $0xd8] sm:$0xff]
      %v1380 = vld [vmem:[%s558 + $0xe0] sm:$0xff]
      %v1381 = vld [vmem:[%s558 + $0xf0] sm:$0xff]
      %v1382 = vld [vmem:[%s558 + $0xf8] sm:$0xff]
      %v1383 = vld [vmem:[%s558 + $0x108] sm:$0xff]
      %v1384 = vld [vmem:[%s558 + $0x110] sm:$0xff]
      %v1385 = vld [vmem:[%s558 + $0x120] sm:$0xff]
      %v1386 = vld [vmem:[%s558 + $0x128] sm:$0xff]
      %v1387 = vld [vmem:[%s558 + $0x138] sm:$0xff]
      %v1388 = vld [vmem:[%s558 + $0x140] sm:$0xff]
      %v1389 = vld [vmem:[%s558 + $0x150] sm:$0xff]
      %v1390 = vld [vmem:[%s558 + $0x158] sm:$0xff]
      %v1391 = vld [vmem:[%s558 + $0x168] sm:$0xff]
      %v1392 = vld [vmem:[%s558 + $0x170] sm:$0xff]
      %s1393 = scalar_lea.vmem %s1, 12
      %v1394 = vld [vmem:[%s1393] sm:$0xf]
      %v1396 = vsel %vm470, %v1361, 0
      %v1399 = vsel %vm470, %v1362, 0
      %v1402 = vsel %vm470, %v1363, 0
      %v1405 = vsel %vm470, %v1364, 0
      %v1408 = vsel %vm470, %v1365, 0
      %v1411 = vsel %vm470, %v1366, 0
      %v1414 = vsel %vm470, %v1367, 0
      %v1417 = vsel %vm470, %v1368, 0
      %v1420 = vsel %vm470, %v1369, 0
      %v1423 = vsel %vm470, %v1370, 0
      %v1426 = vsel %vm470, %v1371, 0
      %v1429 = vsel %vm470, %v1372, 0
      %v1432 = vsel %vm470, %v1373, 0
      %v1435 = vsel %vm470, %v1374, 0
      %v1438 = vsel %vm470, %v1375, 0
      %v1441 = vsel %vm470, %v1376, 0
      %v1444 = vsel %vm470, %v1377, 0
      %v1447 = vsel %vm470, %v1378, 0
      %v1450 = vsel %vm470, %v1379, 0
      %v1453 = vsel %vm470, %v1380, 0
      %v1456 = vsel %vm470, %v1381, 0
      %v1459 = vsel %vm470, %v1382, 0
      %v1462 = vsel %vm470, %v1383, 0
      %v1465 = vsel %vm470, %v1384, 0
      %v1468 = vsel %vm470, %v1385, 0
      %v1471 = vsel %vm470, %v1386, 0
      %v1474 = vsel %vm470, %v1387, 0
      %v1477 = vsel %vm470, %v1388, 0
      %v1480 = vsel %vm470, %v1389, 0
      %v1483 = vsel %vm470, %v1390, 0
      %v1486 = vsel %vm470, %v1391, 0
      %v1489 = vsel %vm470, %v1392, 0
      %v1492 = vsel %vm754, %v1394, 0
      %1494 = vmatpush.msra.mxu0 0.0
      %1495 = vmatpush.msra.mxu0 0.0
      %1496 = vmatpush.msra.mxu0 0.0
      %1497 = vmatpush.msra.mxu0 0.0
      %1498 = vmatpush.msra.mxu0 0.0
      %1499 = vmatpush.msra.mxu0 0.0
      %1500 = vmatpush.msra.mxu0 0.0
      %1501 = vmatpush.msra.mxu0 0.0
      %1502 = vmatpush.msra.mxu0 0.0
      %1503 = vmatpush.msra.mxu0 0.0
      %1504 = vmatpush.msra.mxu0 0.0
      %1505 = vmatpush.msra.mxu0 0.0
      %1506 = vmatpush.msra.mxu0 0.0
      %1507 = vmatpush.msra.mxu0 0.0
      %1508 = vmatpush.msra.mxu0 0.0
      %1509 = vmatpush.msra.mxu0 %v1492
      %1510 = vmatmul.f32.gmra.mxu0 %v1396
      %v1511 = vpop.f32.mrf.mxu0
      %v1512 = vadd.f32 0.0, %v1511
      %1513 = vmatmul.f32.gmra.mxu0 %v1399
      %v1514 = vpop.f32.mrf.mxu0
      %v1515 = vadd.f32 0.0, %v1514
      %1516 = vmatmul.f32.gmra.mxu0 %v1402
      %v1517 = vpop.f32.mrf.mxu0
      %v1518 = vadd.f32 0.0, %v1517
      %1519 = vmatmul.f32.gmra.mxu0 %v1405
      %v1520 = vpop.f32.mrf.mxu0
      %v1521 = vadd.f32 0.0, %v1520
      %1522 = vmatmul.f32.gmra.mxu0 %v1408
      %v1523 = vpop.f32.mrf.mxu0
      %v1524 = vadd.f32 0.0, %v1523
      %1525 = vmatmul.f32.gmra.mxu0 %v1411
      %v1526 = vpop.f32.mrf.mxu0
      %v1527 = vadd.f32 0.0, %v1526
      %1528 = vmatmul.f32.gmra.mxu0 %v1414
      %v1529 = vpop.f32.mrf.mxu0
      %v1530 = vadd.f32 0.0, %v1529
      %1531 = vmatmul.f32.gmra.mxu0 %v1417
      %v1532 = vpop.f32.mrf.mxu0
      %v1533 = vadd.f32 0.0, %v1532
      %1534 = vmatmul.f32.gmra.mxu0 %v1420
      %v1535 = vpop.f32.mrf.mxu0
      %v1536 = vadd.f32 0.0, %v1535
      %1537 = vmatmul.f32.gmra.mxu0 %v1423
      %v1538 = vpop.f32.mrf.mxu0
      %v1539 = vadd.f32 0.0, %v1538
      %1540 = vmatmul.f32.gmra.mxu0 %v1426
      %v1541 = vpop.f32.mrf.mxu0
      %v1542 = vadd.f32 0.0, %v1541
      %1543 = vmatmul.f32.gmra.mxu0 %v1429
      %v1544 = vpop.f32.mrf.mxu0
      %v1545 = vadd.f32 0.0, %v1544
      %1546 = vmatmul.f32.gmra.mxu0 %v1432
      %v1547 = vpop.f32.mrf.mxu0
      %v1548 = vadd.f32 0.0, %v1547
      %1549 = vmatmul.f32.gmra.mxu0 %v1435
      %v1550 = vpop.f32.mrf.mxu0
      %v1551 = vadd.f32 0.0, %v1550
      %1552 = vmatmul.f32.gmra.mxu0 %v1438
      %v1553 = vpop.f32.mrf.mxu0
      %v1554 = vadd.f32 0.0, %v1553
      %1555 = vmatmul.f32.gmra.mxu0 %v1441
      %v1556 = vpop.f32.mrf.mxu0
      %v1557 = vadd.f32 0.0, %v1556
      %1558 = vmatmul.f32.gmra.mxu0 %v1444
      %v1559 = vpop.f32.mrf.mxu0
      %v1560 = vadd.f32 0.0, %v1559
      %1561 = vmatmul.f32.gmra.mxu0 %v1447
      %v1562 = vpop.f32.mrf.mxu0
      %v1563 = vadd.f32 0.0, %v1562
      %1564 = vmatmul.f32.gmra.mxu0 %v1450
      %v1565 = vpop.f32.mrf.mxu0
      %v1566 = vadd.f32 0.0, %v1565
      %1567 = vmatmul.f32.gmra.mxu0 %v1453
      %v1568 = vpop.f32.mrf.mxu0
      %v1569 = vadd.f32 0.0, %v1568
      %1570 = vmatmul.f32.gmra.mxu0 %v1456
      %v1571 = vpop.f32.mrf.mxu0
      %v1572 = vadd.f32 0.0, %v1571
      %1573 = vmatmul.f32.gmra.mxu0 %v1459
      %v1574 = vpop.f32.mrf.mxu0
      %v1575 = vadd.f32 0.0, %v1574
      %1576 = vmatmul.f32.gmra.mxu0 %v1462
      %v1577 = vpop.f32.mrf.mxu0
      %v1578 = vadd.f32 0.0, %v1577
      %1579 = vmatmul.f32.gmra.mxu0 %v1465
      %v1580 = vpop.f32.mrf.mxu0
      %v1581 = vadd.f32 0.0, %v1580
      %1582 = vmatmul.f32.gmra.mxu0 %v1468
      %v1583 = vpop.f32.mrf.mxu0
      %v1584 = vadd.f32 0.0, %v1583
      %1585 = vmatmul.f32.gmra.mxu0 %v1471
      %v1586 = vpop.f32.mrf.mxu0
      %v1587 = vadd.f32 0.0, %v1586
      %1588 = vmatmul.f32.gmra.mxu0 %v1474
      %v1589 = vpop.f32.mrf.mxu0
      %v1590 = vadd.f32 0.0, %v1589
      %1591 = vmatmul.f32.gmra.mxu0 %v1477
      %v1592 = vpop.f32.mrf.mxu0
      %v1593 = vadd.f32 0.0, %v1592
      %1594 = vmatmul.f32.gmra.mxu0 %v1480
      %v1595 = vpop.f32.mrf.mxu0
      %v1596 = vadd.f32 0.0, %v1595
      %1597 = vmatmul.f32.gmra.mxu0 %v1483
      %v1598 = vpop.f32.mrf.mxu0
      %v1599 = vadd.f32 0.0, %v1598
      %1600 = vmatmul.f32.gmra.mxu0 %v1486
      %v1601 = vpop.f32.mrf.mxu0
      %v1602 = vadd.f32 0.0, %v1601
      %1603 = vmatmul.f32.gmra.mxu0 %v1489
      %v1604 = vpop.f32.mrf.mxu0
      %v1605 = vadd.f32 0.0, %v1604
      %1606 = vdwg.mxu0
      %v1607 = vadd.f32 %v1329, %v1512
      %v1608 = vadd.f32 %v1330, %v1515
      %v1609 = vadd.f32 %v1331, %v1518
      %v1610 = vadd.f32 %v1332, %v1521
      %v1611 = vadd.f32 %v1333, %v1524
      %v1612 = vadd.f32 %v1334, %v1527
      %v1613 = vadd.f32 %v1335, %v1530
      %v1614 = vadd.f32 %v1336, %v1533
      %v1615 = vadd.f32 %v1337, %v1536
      %v1616 = vadd.f32 %v1338, %v1539
      %v1617 = vadd.f32 %v1339, %v1542
      %v1618 = vadd.f32 %v1340, %v1545
      %v1619 = vadd.f32 %v1341, %v1548
      %v1620 = vadd.f32 %v1342, %v1551
      %v1621 = vadd.f32 %v1343, %v1554
      %v1622 = vadd.f32 %v1344, %v1557
      %v1623 = vadd.f32 %v1345, %v1560
      %v1624 = vadd.f32 %v1346, %v1563
      %v1625 = vadd.f32 %v1347, %v1566
      %v1626 = vadd.f32 %v1348, %v1569
      %v1627 = vadd.f32 %v1349, %v1572
      %v1628 = vadd.f32 %v1350, %v1575
      %v1629 = vadd.f32 %v1351, %v1578
      %v1630 = vadd.f32 %v1352, %v1581
      %v1631 = vadd.f32 %v1353, %v1584
      %v1632 = vadd.f32 %v1354, %v1587
      %v1633 = vadd.f32 %v1355, %v1590
      %v1634 = vadd.f32 %v1356, %v1593
      %v1635 = vadd.f32 %v1357, %v1596
      %v1636 = vadd.f32 %v1358, %v1599
      %v1637 = vadd.f32 %v1359, %v1602
      %v1638 = vadd.f32 %v1360, %v1605
      %v1639 = vld [vmem:[%s558 + $0x1] sm:$0xff]
      %v1640 = vld [vmem:[%s558 + $0x9] sm:$0xff]
      %v1641 = vld [vmem:[%s558 + $0x19] sm:$0xff]
      %v1642 = vld [vmem:[%s558 + $0x21] sm:$0xff]
      %v1643 = vld [vmem:[%s558 + $0x31] sm:$0xff]
      %v1644 = vld [vmem:[%s558 + $0x39] sm:$0xff]
      %v1645 = vld [vmem:[%s558 + $0x49] sm:$0xff]
      %v1646 = vld [vmem:[%s558 + $0x51] sm:$0xff]
      %v1647 = vld [vmem:[%s558 + $0x61] sm:$0xff]
      %v1648 = vld [vmem:[%s558 + $0x69] sm:$0xff]
      %v1649 = vld [vmem:[%s558 + $0x79] sm:$0xff]
      %v1650 = vld [vmem:[%s558 + $0x81] sm:$0xff]
      %v1651 = vld [vmem:[%s558 + $0x91] sm:$0xff]
      %v1652 = vld [vmem:[%s558 + $0x99] sm:$0xff]
      %v1653 = vld [vmem:[%s558 + $0xa9] sm:$0xff]
      %v1654 = vld [vmem:[%s558 + $0xb1] sm:$0xff]
      %v1655 = vld [vmem:[%s558 + $0xc1] sm:$0xff]
      %v1656 = vld [vmem:[%s558 + $0xc9] sm:$0xff]
      %v1657 = vld [vmem:[%s558 + $0xd9] sm:$0xff]
      %v1658 = vld [vmem:[%s558 + $0xe1] sm:$0xff]
      %v1659 = vld [vmem:[%s558 + $0xf1] sm:$0xff]
      %v1660 = vld [vmem:[%s558 + $0xf9] sm:$0xff]
      %v1661 = vld [vmem:[%s558 + $0x109] sm:$0xff]
      %v1662 = vld [vmem:[%s558 + $0x111] sm:$0xff]
      %v1663 = vld [vmem:[%s558 + $0x121] sm:$0xff]
      %v1664 = vld [vmem:[%s558 + $0x129] sm:$0xff]
      %v1665 = vld [vmem:[%s558 + $0x139] sm:$0xff]
      %v1666 = vld [vmem:[%s558 + $0x141] sm:$0xff]
      %v1667 = vld [vmem:[%s558 + $0x151] sm:$0xff]
      %v1668 = vld [vmem:[%s558 + $0x159] sm:$0xff]
      %v1669 = vld [vmem:[%s558 + $0x169] sm:$0xff]
      %v1670 = vld [vmem:[%s558 + $0x171] sm:$0xff]
      %s1671 = scalar_lea.vmem %s1, 16
      %v1672 = vld [vmem:[%s1671] sm:$0xf]
      %v1674 = vsel %vm470, %v1639, 0
      %v1677 = vsel %vm470, %v1640, 0
      %v1680 = vsel %vm470, %v1641, 0
      %v1683 = vsel %vm470, %v1642, 0
      %v1686 = vsel %vm470, %v1643, 0
      %v1689 = vsel %vm470, %v1644, 0
      %v1692 = vsel %vm470, %v1645, 0
      %v1695 = vsel %vm470, %v1646, 0
      %v1698 = vsel %vm470, %v1647, 0
      %v1701 = vsel %vm470, %v1648, 0
      %v1704 = vsel %vm470, %v1649, 0
      %v1707 = vsel %vm470, %v1650, 0
      %v1710 = vsel %vm470, %v1651, 0
      %v1713 = vsel %vm470, %v1652, 0
      %v1716 = vsel %vm470, %v1653, 0
      %v1719 = vsel %vm470, %v1654, 0
      %v1722 = vsel %vm470, %v1655, 0
      %v1725 = vsel %vm470, %v1656, 0
      %v1728 = vsel %vm470, %v1657, 0
      %v1731 = vsel %vm470, %v1658, 0
      %v1734 = vsel %vm470, %v1659, 0
      %v1737 = vsel %vm470, %v1660, 0
      %v1740 = vsel %vm470, %v1661, 0
      %v1743 = vsel %vm470, %v1662, 0
      %v1746 = vsel %vm470, %v1663, 0
      %v1749 = vsel %vm470, %v1664, 0
      %v1752 = vsel %vm470, %v1665, 0
      %v1755 = vsel %vm470, %v1666, 0
      %v1758 = vsel %vm470, %v1667, 0
      %v1761 = vsel %vm470, %v1668, 0
      %v1764 = vsel %vm470, %v1669, 0
      %v1767 = vsel %vm470, %v1670, 0
      %v1770 = vsel %vm754, %v1672, 0
      %1772 = vmatpush.msra.mxu0 0.0
      %1773 = vmatpush.msra.mxu0 0.0
      %1774 = vmatpush.msra.mxu0 0.0
      %1775 = vmatpush.msra.mxu0 0.0
      %1776 = vmatpush.msra.mxu0 0.0
      %1777 = vmatpush.msra.mxu0 0.0
      %1778 = vmatpush.msra.mxu0 0.0
      %1779 = vmatpush.msra.mxu0 0.0
      %1780 = vmatpush.msra.mxu0 0.0
      %1781 = vmatpush.msra.mxu0 0.0
      %1782 = vmatpush.msra.mxu0 0.0
      %1783 = vmatpush.msra.mxu0 0.0
      %1784 = vmatpush.msra.mxu0 0.0
      %1785 = vmatpush.msra.mxu0 0.0
      %1786 = vmatpush.msra.mxu0 0.0
      %1787 = vmatpush.msra.mxu0 %v1770
      %1788 = vmatmul.f32.gmra.mxu0 %v1674
      %v1789 = vpop.f32.mrf.mxu0
      %v1790 = vadd.f32 0.0, %v1789
      %1791 = vmatmul.f32.gmra.mxu0 %v1677
      %v1792 = vpop.f32.mrf.mxu0
      %v1793 = vadd.f32 0.0, %v1792
      %1794 = vmatmul.f32.gmra.mxu0 %v1680
      %v1795 = vpop.f32.mrf.mxu0
      %v1796 = vadd.f32 0.0, %v1795
      %1797 = vmatmul.f32.gmra.mxu0 %v1683
      %v1798 = vpop.f32.mrf.mxu0
      %v1799 = vadd.f32 0.0, %v1798
      %1800 = vmatmul.f32.gmra.mxu0 %v1686
      %v1801 = vpop.f32.mrf.mxu0
      %v1802 = vadd.f32 0.0, %v1801
      %1803 = vmatmul.f32.gmra.mxu0 %v1689
      %v1804 = vpop.f32.mrf.mxu0
      %v1805 = vadd.f32 0.0, %v1804
      %1806 = vmatmul.f32.gmra.mxu0 %v1692
      %v1807 = vpop.f32.mrf.mxu0
      %v1808 = vadd.f32 0.0, %v1807
      %1809 = vmatmul.f32.gmra.mxu0 %v1695
      %v1810 = vpop.f32.mrf.mxu0
      %v1811 = vadd.f32 0.0, %v1810
      %1812 = vmatmul.f32.gmra.mxu0 %v1698
      %v1813 = vpop.f32.mrf.mxu0
      %v1814 = vadd.f32 0.0, %v1813
      %1815 = vmatmul.f32.gmra.mxu0 %v1701
      %v1816 = vpop.f32.mrf.mxu0
      %v1817 = vadd.f32 0.0, %v1816
      %1818 = vmatmul.f32.gmra.mxu0 %v1704
      %v1819 = vpop.f32.mrf.mxu0
      %v1820 = vadd.f32 0.0, %v1819
      %1821 = vmatmul.f32.gmra.mxu0 %v1707
      %v1822 = vpop.f32.mrf.mxu0
      %v1823 = vadd.f32 0.0, %v1822
      %1824 = vmatmul.f32.gmra.mxu0 %v1710
      %v1825 = vpop.f32.mrf.mxu0
      %v1826 = vadd.f32 0.0, %v1825
      %1827 = vmatmul.f32.gmra.mxu0 %v1713
      %v1828 = vpop.f32.mrf.mxu0
      %v1829 = vadd.f32 0.0, %v1828
      %1830 = vmatmul.f32.gmra.mxu0 %v1716
      %v1831 = vpop.f32.mrf.mxu0
      %v1832 = vadd.f32 0.0, %v1831
      %1833 = vmatmul.f32.gmra.mxu0 %v1719
      %v1834 = vpop.f32.mrf.mxu0
      %v1835 = vadd.f32 0.0, %v1834
      %1836 = vmatmul.f32.gmra.mxu0 %v1722
      %v1837 = vpop.f32.mrf.mxu0
      %v1838 = vadd.f32 0.0, %v1837
      %1839 = vmatmul.f32.gmra.mxu0 %v1725
      %v1840 = vpop.f32.mrf.mxu0
      %v1841 = vadd.f32 0.0, %v1840
      %1842 = vmatmul.f32.gmra.mxu0 %v1728
      %v1843 = vpop.f32.mrf.mxu0
      %v1844 = vadd.f32 0.0, %v1843
      %1845 = vmatmul.f32.gmra.mxu0 %v1731
      %v1846 = vpop.f32.mrf.mxu0
      %v1847 = vadd.f32 0.0, %v1846
      %1848 = vmatmul.f32.gmra.mxu0 %v1734
      %v1849 = vpop.f32.mrf.mxu0
      %v1850 = vadd.f32 0.0, %v1849
      %1851 = vmatmul.f32.gmra.mxu0 %v1737
      %v1852 = vpop.f32.mrf.mxu0
      %v1853 = vadd.f32 0.0, %v1852
      %1854 = vmatmul.f32.gmra.mxu0 %v1740
      %v1855 = vpop.f32.mrf.mxu0
      %v1856 = vadd.f32 0.0, %v1855
      %1857 = vmatmul.f32.gmra.mxu0 %v1743
      %v1858 = vpop.f32.mrf.mxu0
      %v1859 = vadd.f32 0.0, %v1858
      %1860 = vmatmul.f32.gmra.mxu0 %v1746
      %v1861 = vpop.f32.mrf.mxu0
      %v1862 = vadd.f32 0.0, %v1861
      %1863 = vmatmul.f32.gmra.mxu0 %v1749
      %v1864 = vpop.f32.mrf.mxu0
      %v1865 = vadd.f32 0.0, %v1864
      %1866 = vmatmul.f32.gmra.mxu0 %v1752
      %v1867 = vpop.f32.mrf.mxu0
      %v1868 = vadd.f32 0.0, %v1867
      %1869 = vmatmul.f32.gmra.mxu0 %v1755
      %v1870 = vpop.f32.mrf.mxu0
      %v1871 = vadd.f32 0.0, %v1870
      %1872 = vmatmul.f32.gmra.mxu0 %v1758
      %v1873 = vpop.f32.mrf.mxu0
      %v1874 = vadd.f32 0.0, %v1873
      %1875 = vmatmul.f32.gmra.mxu0 %v1761
      %v1876 = vpop.f32.mrf.mxu0
      %v1877 = vadd.f32 0.0, %v1876
      %1878 = vmatmul.f32.gmra.mxu0 %v1764
      %v1879 = vpop.f32.mrf.mxu0
      %v1880 = vadd.f32 0.0, %v1879
      %1881 = vmatmul.f32.gmra.mxu0 %v1767
      %v1882 = vpop.f32.mrf.mxu0
      %v1883 = vadd.f32 0.0, %v1882
      %1884 = vdwg.mxu0
      %v1885 = vadd.f32 %v1607, %v1790
      %v1886 = vadd.f32 %v1608, %v1793
      %v1887 = vadd.f32 %v1609, %v1796
      %v1888 = vadd.f32 %v1610, %v1799
      %v1889 = vadd.f32 %v1611, %v1802
      %v1890 = vadd.f32 %v1612, %v1805
      %v1891 = vadd.f32 %v1613, %v1808
      %v1892 = vadd.f32 %v1614, %v1811
      %v1893 = vadd.f32 %v1615, %v1814
      %v1894 = vadd.f32 %v1616, %v1817
      %v1895 = vadd.f32 %v1617, %v1820
      %v1896 = vadd.f32 %v1618, %v1823
      %v1897 = vadd.f32 %v1619, %v1826
      %v1898 = vadd.f32 %v1620, %v1829
      %v1899 = vadd.f32 %v1621, %v1832
      %v1900 = vadd.f32 %v1622, %v1835
      %v1901 = vadd.f32 %v1623, %v1838
      %v1902 = vadd.f32 %v1624, %v1841
      %v1903 = vadd.f32 %v1625, %v1844
      %v1904 = vadd.f32 %v1626, %v1847
      %v1905 = vadd.f32 %v1627, %v1850
      %v1906 = vadd.f32 %v1628, %v1853
      %v1907 = vadd.f32 %v1629, %v1856
      %v1908 = vadd.f32 %v1630, %v1859
      %v1909 = vadd.f32 %v1631, %v1862
      %v1910 = vadd.f32 %v1632, %v1865
      %v1911 = vadd.f32 %v1633, %v1868
      %v1912 = vadd.f32 %v1634, %v1871
      %v1913 = vadd.f32 %v1635, %v1874
      %v1914 = vadd.f32 %v1636, %v1877
      %v1915 = vadd.f32 %v1637, %v1880
      %v1916 = vadd.f32 %v1638, %v1883
      %v1917 = vld [vmem:[%s558 + $0x2] sm:$0xff]
      %v1918 = vld [vmem:[%s558 + $0xa] sm:$0xff]
      %v1919 = vld [vmem:[%s558 + $0x1a] sm:$0xff]
      %v1920 = vld [vmem:[%s558 + $0x22] sm:$0xff]
      %v1921 = vld [vmem:[%s558 + $0x32] sm:$0xff]
      %v1922 = vld [vmem:[%s558 + $0x3a] sm:$0xff]
      %v1923 = vld [vmem:[%s558 + $0x4a] sm:$0xff]
      %v1924 = vld [vmem:[%s558 + $0x52] sm:$0xff]
      %v1925 = vld [vmem:[%s558 + $0x62] sm:$0xff]
      %v1926 = vld [vmem:[%s558 + $0x6a] sm:$0xff]
      %v1927 = vld [vmem:[%s558 + $0x7a] sm:$0xff]
      %v1928 = vld [vmem:[%s558 + $0x82] sm:$0xff]
      %v1929 = vld [vmem:[%s558 + $0x92] sm:$0xff]
      %v1930 = vld [vmem:[%s558 + $0x9a] sm:$0xff]
      %v1931 = vld [vmem:[%s558 + $0xaa] sm:$0xff]
      %v1932 = vld [vmem:[%s558 + $0xb2] sm:$0xff]
      %v1933 = vld [vmem:[%s558 + $0xc2] sm:$0xff]
      %v1934 = vld [vmem:[%s558 + $0xca] sm:$0xff]
      %v1935 = vld [vmem:[%s558 + $0xda] sm:$0xff]
      %v1936 = vld [vmem:[%s558 + $0xe2] sm:$0xff]
      %v1937 = vld [vmem:[%s558 + $0xf2] sm:$0xff]
      %v1938 = vld [vmem:[%s558 + $0xfa] sm:$0xff]
      %v1939 = vld [vmem:[%s558 + $0x10a] sm:$0xff]
      %v1940 = vld [vmem:[%s558 + $0x112] sm:$0xff]
      %v1941 = vld [vmem:[%s558 + $0x122] sm:$0xff]
      %v1942 = vld [vmem:[%s558 + $0x12a] sm:$0xff]
      %v1943 = vld [vmem:[%s558 + $0x13a] sm:$0xff]
      %v1944 = vld [vmem:[%s558 + $0x142] sm:$0xff]
      %v1945 = vld [vmem:[%s558 + $0x152] sm:$0xff]
      %v1946 = vld [vmem:[%s558 + $0x15a] sm:$0xff]
      %v1947 = vld [vmem:[%s558 + $0x16a] sm:$0xff]
      %v1948 = vld [vmem:[%s558 + $0x172] sm:$0xff]
      %s1949 = scalar_lea.vmem %s1, 20
      %v1950 = vld [vmem:[%s1949] sm:$0xf]
      %v1952 = vsel %vm470, %v1917, 0
      %v1955 = vsel %vm470, %v1918, 0
      %v1958 = vsel %vm470, %v1919, 0
      %v1961 = vsel %vm470, %v1920, 0
      %v1964 = vsel %vm470, %v1921, 0
      %v1967 = vsel %vm470, %v1922, 0
      %v1970 = vsel %vm470, %v1923, 0
      %v1973 = vsel %vm470, %v1924, 0
      %v1976 = vsel %vm470, %v1925, 0
      %v1979 = vsel %vm470, %v1926, 0
      %v1982 = vsel %vm470, %v1927, 0
      %v1985 = vsel %vm470, %v1928, 0
      %v1988 = vsel %vm470, %v1929, 0
      %v1991 = vsel %vm470, %v1930, 0
      %v1994 = vsel %vm470, %v1931, 0
      %v1997 = vsel %vm470, %v1932, 0
      %v2000 = vsel %vm470, %v1933, 0
      %v2003 = vsel %vm470, %v1934, 0
      %v2006 = vsel %vm470, %v1935, 0
      %v2009 = vsel %vm470, %v1936, 0
      %v2012 = vsel %vm470, %v1937, 0
      %v2015 = vsel %vm470, %v1938, 0
      %v2018 = vsel %vm470, %v1939, 0
      %v2021 = vsel %vm470, %v1940, 0
      %v2024 = vsel %vm470, %v1941, 0
      %v2027 = vsel %vm470, %v1942, 0
      %v2030 = vsel %vm470, %v1943, 0
      %v2033 = vsel %vm470, %v1944, 0
      %v2036 = vsel %vm470, %v1945, 0
      %v2039 = vsel %vm470, %v1946, 0
      %v2042 = vsel %vm470, %v1947, 0
      %v2045 = vsel %vm470, %v1948, 0
      %v2048 = vsel %vm754, %v1950, 0
      %2050 = vmatpush.msra.mxu0 0.0
      %2051 = vmatpush.msra.mxu0 0.0
      %2052 = vmatpush.msra.mxu0 0.0
      %2053 = vmatpush.msra.mxu0 0.0
      %2054 = vmatpush.msra.mxu0 0.0
      %2055 = vmatpush.msra.mxu0 0.0
      %2056 = vmatpush.msra.mxu0 0.0
      %2057 = vmatpush.msra.mxu0 0.0
      %2058 = vmatpush.msra.mxu0 0.0
      %2059 = vmatpush.msra.mxu0 0.0
      %2060 = vmatpush.msra.mxu0 0.0
      %2061 = vmatpush.msra.mxu0 0.0
      %2062 = vmatpush.msra.mxu0 0.0
      %2063 = vmatpush.msra.mxu0 0.0
      %2064 = vmatpush.msra.mxu0 0.0
      %2065 = vmatpush.msra.mxu0 %v2048
      %2066 = vmatmul.f32.gmra.mxu0 %v1952
      %v2067 = vpop.f32.mrf.mxu0
      %v2068 = vadd.f32 0.0, %v2067
      %2069 = vmatmul.f32.gmra.mxu0 %v1955
      %v2070 = vpop.f32.mrf.mxu0
      %v2071 = vadd.f32 0.0, %v2070
      %2072 = vmatmul.f32.gmra.mxu0 %v1958
      %v2073 = vpop.f32.mrf.mxu0
      %v2074 = vadd.f32 0.0, %v2073
      %2075 = vmatmul.f32.gmra.mxu0 %v1961
      %v2076 = vpop.f32.mrf.mxu0
      %v2077 = vadd.f32 0.0, %v2076
      %2078 = vmatmul.f32.gmra.mxu0 %v1964
      %v2079 = vpop.f32.mrf.mxu0
      %v2080 = vadd.f32 0.0, %v2079
      %2081 = vmatmul.f32.gmra.mxu0 %v1967
      %v2082 = vpop.f32.mrf.mxu0
      %v2083 = vadd.f32 0.0, %v2082
      %2084 = vmatmul.f32.gmra.mxu0 %v1970
      %v2085 = vpop.f32.mrf.mxu0
      %v2086 = vadd.f32 0.0, %v2085
      %2087 = vmatmul.f32.gmra.mxu0 %v1973
      %v2088 = vpop.f32.mrf.mxu0
      %v2089 = vadd.f32 0.0, %v2088
      %2090 = vmatmul.f32.gmra.mxu0 %v1976
      %v2091 = vpop.f32.mrf.mxu0
      %v2092 = vadd.f32 0.0, %v2091
      %2093 = vmatmul.f32.gmra.mxu0 %v1979
      %v2094 = vpop.f32.mrf.mxu0
      %v2095 = vadd.f32 0.0, %v2094
      %2096 = vmatmul.f32.gmra.mxu0 %v1982
      %v2097 = vpop.f32.mrf.mxu0
      %v2098 = vadd.f32 0.0, %v2097
      %2099 = vmatmul.f32.gmra.mxu0 %v1985
      %v2100 = vpop.f32.mrf.mxu0
      %v2101 = vadd.f32 0.0, %v2100
      %2102 = vmatmul.f32.gmra.mxu0 %v1988
      %v2103 = vpop.f32.mrf.mxu0
      %v2104 = vadd.f32 0.0, %v2103
      %2105 = vmatmul.f32.gmra.mxu0 %v1991
      %v2106 = vpop.f32.mrf.mxu0
      %v2107 = vadd.f32 0.0, %v2106
      %2108 = vmatmul.f32.gmra.mxu0 %v1994
      %v2109 = vpop.f32.mrf.mxu0
      %v2110 = vadd.f32 0.0, %v2109
      %2111 = vmatmul.f32.gmra.mxu0 %v1997
      %v2112 = vpop.f32.mrf.mxu0
      %v2113 = vadd.f32 0.0, %v2112
      %2114 = vmatmul.f32.gmra.mxu0 %v2000
      %v2115 = vpop.f32.mrf.mxu0
      %v2116 = vadd.f32 0.0, %v2115
      %2117 = vmatmul.f32.gmra.mxu0 %v2003
      %v2118 = vpop.f32.mrf.mxu0
      %v2119 = vadd.f32 0.0, %v2118
      %2120 = vmatmul.f32.gmra.mxu0 %v2006
      %v2121 = vpop.f32.mrf.mxu0
      %v2122 = vadd.f32 0.0, %v2121
      %2123 = vmatmul.f32.gmra.mxu0 %v2009
      %v2124 = vpop.f32.mrf.mxu0
      %v2125 = vadd.f32 0.0, %v2124
      %2126 = vmatmul.f32.gmra.mxu0 %v2012
      %v2127 = vpop.f32.mrf.mxu0
      %v2128 = vadd.f32 0.0, %v2127
      %2129 = vmatmul.f32.gmra.mxu0 %v2015
      %v2130 = vpop.f32.mrf.mxu0
      %v2131 = vadd.f32 0.0, %v2130
      %2132 = vmatmul.f32.gmra.mxu0 %v2018
      %v2133 = vpop.f32.mrf.mxu0
      %v2134 = vadd.f32 0.0, %v2133
      %2135 = vmatmul.f32.gmra.mxu0 %v2021
      %v2136 = vpop.f32.mrf.mxu0
      %v2137 = vadd.f32 0.0, %v2136
      %2138 = vmatmul.f32.gmra.mxu0 %v2024
      %v2139 = vpop.f32.mrf.mxu0
      %v2140 = vadd.f32 0.0, %v2139
      %2141 = vmatmul.f32.gmra.mxu0 %v2027
      %v2142 = vpop.f32.mrf.mxu0
      %v2143 = vadd.f32 0.0, %v2142
      %2144 = vmatmul.f32.gmra.mxu0 %v2030
      %v2145 = vpop.f32.mrf.mxu0
      %v2146 = vadd.f32 0.0, %v2145
      %2147 = vmatmul.f32.gmra.mxu0 %v2033
      %v2148 = vpop.f32.mrf.mxu0
      %v2149 = vadd.f32 0.0, %v2148
      %2150 = vmatmul.f32.gmra.mxu0 %v2036
      %v2151 = vpop.f32.mrf.mxu0
      %v2152 = vadd.f32 0.0, %v2151
      %2153 = vmatmul.f32.gmra.mxu0 %v2039
      %v2154 = vpop.f32.mrf.mxu0
      %v2155 = vadd.f32 0.0, %v2154
      %2156 = vmatmul.f32.gmra.mxu0 %v2042
      %v2157 = vpop.f32.mrf.mxu0
      %v2158 = vadd.f32 0.0, %v2157
      %2159 = vmatmul.f32.gmra.mxu0 %v2045
      %v2160 = vpop.f32.mrf.mxu0
      %v2161 = vadd.f32 0.0, %v2160
      %2162 = vdwg.mxu0
      %v2163 = vadd.f32 %v1885, %v2068
      %v2164 = vadd.f32 %v1886, %v2071
      %v2165 = vadd.f32 %v1887, %v2074
      %v2166 = vadd.f32 %v1888, %v2077
      %v2167 = vadd.f32 %v1889, %v2080
      %v2168 = vadd.f32 %v1890, %v2083
      %v2169 = vadd.f32 %v1891, %v2086
      %v2170 = vadd.f32 %v1892, %v2089
      %v2171 = vadd.f32 %v1893, %v2092
      %v2172 = vadd.f32 %v1894, %v2095
      %v2173 = vadd.f32 %v1895, %v2098
      %v2174 = vadd.f32 %v1896, %v2101
      %v2175 = vadd.f32 %v1897, %v2104
      %v2176 = vadd.f32 %v1898, %v2107
      %v2177 = vadd.f32 %v1899, %v2110
      %v2178 = vadd.f32 %v1900, %v2113
      %v2179 = vadd.f32 %v1901, %v2116
      %v2180 = vadd.f32 %v1902, %v2119
      %v2181 = vadd.f32 %v1903, %v2122
      %v2182 = vadd.f32 %v1904, %v2125
      %v2183 = vadd.f32 %v1905, %v2128
      %v2184 = vadd.f32 %v1906, %v2131
      %v2185 = vadd.f32 %v1907, %v2134
      %v2186 = vadd.f32 %v1908, %v2137
      %v2187 = vadd.f32 %v1909, %v2140
      %v2188 = vadd.f32 %v1910, %v2143
      %v2189 = vadd.f32 %v1911, %v2146
      %v2190 = vadd.f32 %v1912, %v2149
      %v2191 = vadd.f32 %v1913, %v2152
      %v2192 = vadd.f32 %v1914, %v2155
      %v2193 = vadd.f32 %v1915, %v2158
      %v2194 = vadd.f32 %v1916, %v2161
      %s2195 = scalar_lea.vmem [#allocation2], 48
      %v2196 = vld [vmem:[%s2195] sm:$0xff]
      %v2197 = vld [vmem:[%s2195 + $0x8] sm:$0xff]
      %v2198 = vld [vmem:[%s2195 + $0x18] sm:$0xff]
      %v2199 = vld [vmem:[%s2195 + $0x20] sm:$0xff]
      %v2200 = vld [vmem:[%s2195 + $0x30] sm:$0xff]
      %v2201 = vld [vmem:[%s2195 + $0x38] sm:$0xff]
      %v2202 = vld [vmem:[%s2195 + $0x48] sm:$0xff]
      %v2203 = vld [vmem:[%s2195 + $0x50] sm:$0xff]
      %v2204 = vld [vmem:[%s2195 + $0x60] sm:$0xff]
      %v2205 = vld [vmem:[%s2195 + $0x68] sm:$0xff]
      %v2206 = vld [vmem:[%s2195 + $0x78] sm:$0xff]
      %v2207 = vld [vmem:[%s2195 + $0x80] sm:$0xff]
      %v2208 = vld [vmem:[%s2195 + $0x90] sm:$0xff]
      %v2209 = vld [vmem:[%s2195 + $0x98] sm:$0xff]
      %v2210 = vld [vmem:[%s2195 + $0xa8] sm:$0xff]
      %v2211 = vld [vmem:[%s2195 + $0xb0] sm:$0xff]
      %v2212 = vld [vmem:[%s2195 + $0xc0] sm:$0xff]
      %v2213 = vld [vmem:[%s2195 + $0xc8] sm:$0xff]
      %v2214 = vld [vmem:[%s2195 + $0xd8] sm:$0xff]
      %v2215 = vld [vmem:[%s2195 + $0xe0] sm:$0xff]
      %v2216 = vld [vmem:[%s2195 + $0xf0] sm:$0xff]
      %v2217 = vld [vmem:[%s2195 + $0xf8] sm:$0xff]
      %v2218 = vld [vmem:[%s2195 + $0x108] sm:$0xff]
      %v2219 = vld [vmem:[%s2195 + $0x110] sm:$0xff]
      %v2220 = vld [vmem:[%s2195 + $0x120] sm:$0xff]
      %v2221 = vld [vmem:[%s2195 + $0x128] sm:$0xff]
      %v2222 = vld [vmem:[%s2195 + $0x138] sm:$0xff]
      %v2223 = vld [vmem:[%s2195 + $0x140] sm:$0xff]
      %v2224 = vld [vmem:[%s2195 + $0x150] sm:$0xff]
      %v2225 = vld [vmem:[%s2195 + $0x158] sm:$0xff]
      %v2226 = vld [vmem:[%s2195 + $0x168] sm:$0xff]
      %v2227 = vld [vmem:[%s2195 + $0x170] sm:$0xff]
      %s2228 = scalar_lea.vmem %s1, 24
      %v2229 = vld [vmem:[%s2228] sm:$0xf]
      %v2231 = vsel %vm470, %v2196, 0
      %v2234 = vsel %vm470, %v2197, 0
      %v2237 = vsel %vm470, %v2198, 0
      %v2240 = vsel %vm470, %v2199, 0
      %v2243 = vsel %vm470, %v2200, 0
      %v2246 = vsel %vm470, %v2201, 0
      %v2249 = vsel %vm470, %v2202, 0
      %v2252 = vsel %vm470, %v2203, 0
      %v2255 = vsel %vm470, %v2204, 0
      %v2258 = vsel %vm470, %v2205, 0
      %v2261 = vsel %vm470, %v2206, 0
      %v2264 = vsel %vm470, %v2207, 0
      %v2267 = vsel %vm470, %v2208, 0
      %v2270 = vsel %vm470, %v2209, 0
      %v2273 = vsel %vm470, %v2210, 0
      %v2276 = vsel %vm470, %v2211, 0
      %v2279 = vsel %vm470, %v2212, 0
      %v2282 = vsel %vm470, %v2213, 0
      %v2285 = vsel %vm470, %v2214, 0
      %v2288 = vsel %vm470, %v2215, 0
      %v2291 = vsel %vm470, %v2216, 0
      %v2294 = vsel %vm470, %v2217, 0
      %v2297 = vsel %vm470, %v2218, 0
      %v2300 = vsel %vm470, %v2219, 0
      %v2303 = vsel %vm470, %v2220, 0
      %v2306 = vsel %vm470, %v2221, 0
      %v2309 = vsel %vm470, %v2222, 0
      %v2312 = vsel %vm470, %v2223, 0
      %v2315 = vsel %vm470, %v2224, 0
      %v2318 = vsel %vm470, %v2225, 0
      %v2321 = vsel %vm470, %v2226, 0
      %v2324 = vsel %vm470, %v2227, 0
      %v2327 = vsel %vm754, %v2229, 0
      %2329 = vmatpush.msra.mxu0 0.0
      %2330 = vmatpush.msra.mxu0 0.0
      %2331 = vmatpush.msra.mxu0 0.0
      %2332 = vmatpush.msra.mxu0 0.0
      %2333 = vmatpush.msra.mxu0 0.0
      %2334 = vmatpush.msra.mxu0 0.0
      %2335 = vmatpush.msra.mxu0 0.0
      %2336 = vmatpush.msra.mxu0 0.0
      %2337 = vmatpush.msra.mxu0 0.0
      %2338 = vmatpush.msra.mxu0 0.0
      %2339 = vmatpush.msra.mxu0 0.0
      %2340 = vmatpush.msra.mxu0 0.0
      %2341 = vmatpush.msra.mxu0 0.0
      %2342 = vmatpush.msra.mxu0 0.0
      %2343 = vmatpush.msra.mxu0 0.0
      %2344 = vmatpush.msra.mxu0 %v2327
      %2345 = vmatmul.f32.gmra.mxu0 %v2231
      %v2346 = vpop.f32.mrf.mxu0
      %v2347 = vadd.f32 0.0, %v2346
      %2348 = vmatmul.f32.gmra.mxu0 %v2234
      %v2349 = vpop.f32.mrf.mxu0
      %v2350 = vadd.f32 0.0, %v2349
      %2351 = vmatmul.f32.gmra.mxu0 %v2237
      %v2352 = vpop.f32.mrf.mxu0
      %v2353 = vadd.f32 0.0, %v2352
      %2354 = vmatmul.f32.gmra.mxu0 %v2240
      %v2355 = vpop.f32.mrf.mxu0
      %v2356 = vadd.f32 0.0, %v2355
      %2357 = vmatmul.f32.gmra.mxu0 %v2243
      %v2358 = vpop.f32.mrf.mxu0
      %v2359 = vadd.f32 0.0, %v2358
      %2360 = vmatmul.f32.gmra.mxu0 %v2246
      %v2361 = vpop.f32.mrf.mxu0
      %v2362 = vadd.f32 0.0, %v2361
      %2363 = vmatmul.f32.gmra.mxu0 %v2249
      %v2364 = vpop.f32.mrf.mxu0
      %v2365 = vadd.f32 0.0, %v2364
      %2366 = vmatmul.f32.gmra.mxu0 %v2252
      %v2367 = vpop.f32.mrf.mxu0
      %v2368 = vadd.f32 0.0, %v2367
      %2369 = vmatmul.f32.gmra.mxu0 %v2255
      %v2370 = vpop.f32.mrf.mxu0
      %v2371 = vadd.f32 0.0, %v2370
      %2372 = vmatmul.f32.gmra.mxu0 %v2258
      %v2373 = vpop.f32.mrf.mxu0
      %v2374 = vadd.f32 0.0, %v2373
      %2375 = vmatmul.f32.gmra.mxu0 %v2261
      %v2376 = vpop.f32.mrf.mxu0
      %v2377 = vadd.f32 0.0, %v2376
      %2378 = vmatmul.f32.gmra.mxu0 %v2264
      %v2379 = vpop.f32.mrf.mxu0
      %v2380 = vadd.f32 0.0, %v2379
      %2381 = vmatmul.f32.gmra.mxu0 %v2267
      %v2382 = vpop.f32.mrf.mxu0
      %v2383 = vadd.f32 0.0, %v2382
      %2384 = vmatmul.f32.gmra.mxu0 %v2270
      %v2385 = vpop.f32.mrf.mxu0
      %v2386 = vadd.f32 0.0, %v2385
      %2387 = vmatmul.f32.gmra.mxu0 %v2273
      %v2388 = vpop.f32.mrf.mxu0
      %v2389 = vadd.f32 0.0, %v2388
      %2390 = vmatmul.f32.gmra.mxu0 %v2276
      %v2391 = vpop.f32.mrf.mxu0
      %v2392 = vadd.f32 0.0, %v2391
      %2393 = vmatmul.f32.gmra.mxu0 %v2279
      %v2394 = vpop.f32.mrf.mxu0
      %v2395 = vadd.f32 0.0, %v2394
      %2396 = vmatmul.f32.gmra.mxu0 %v2282
      %v2397 = vpop.f32.mrf.mxu0
      %v2398 = vadd.f32 0.0, %v2397
      %2399 = vmatmul.f32.gmra.mxu0 %v2285
      %v2400 = vpop.f32.mrf.mxu0
      %v2401 = vadd.f32 0.0, %v2400
      %2402 = vmatmul.f32.gmra.mxu0 %v2288
      %v2403 = vpop.f32.mrf.mxu0
      %v2404 = vadd.f32 0.0, %v2403
      %2405 = vmatmul.f32.gmra.mxu0 %v2291
      %v2406 = vpop.f32.mrf.mxu0
      %v2407 = vadd.f32 0.0, %v2406
      %2408 = vmatmul.f32.gmra.mxu0 %v2294
      %v2409 = vpop.f32.mrf.mxu0
      %v2410 = vadd.f32 0.0, %v2409
      %2411 = vmatmul.f32.gmra.mxu0 %v2297
      %v2412 = vpop.f32.mrf.mxu0
      %v2413 = vadd.f32 0.0, %v2412
      %2414 = vmatmul.f32.gmra.mxu0 %v2300
      %v2415 = vpop.f32.mrf.mxu0
      %v2416 = vadd.f32 0.0, %v2415
      %2417 = vmatmul.f32.gmra.mxu0 %v2303
      %v2418 = vpop.f32.mrf.mxu0
      %v2419 = vadd.f32 0.0, %v2418
      %2420 = vmatmul.f32.gmra.mxu0 %v2306
      %v2421 = vpop.f32.mrf.mxu0
      %v2422 = vadd.f32 0.0, %v2421
      %2423 = vmatmul.f32.gmra.mxu0 %v2309
      %v2424 = vpop.f32.mrf.mxu0
      %v2425 = vadd.f32 0.0, %v2424
      %2426 = vmatmul.f32.gmra.mxu0 %v2312
      %v2427 = vpop.f32.mrf.mxu0
      %v2428 = vadd.f32 0.0, %v2427
      %2429 = vmatmul.f32.gmra.mxu0 %v2315
      %v2430 = vpop.f32.mrf.mxu0
      %v2431 = vadd.f32 0.0, %v2430
      %2432 = vmatmul.f32.gmra.mxu0 %v2318
      %v2433 = vpop.f32.mrf.mxu0
      %v2434 = vadd.f32 0.0, %v2433
      %2435 = vmatmul.f32.gmra.mxu0 %v2321
      %v2436 = vpop.f32.mrf.mxu0
      %v2437 = vadd.f32 0.0, %v2436
      %2438 = vmatmul.f32.gmra.mxu0 %v2324
      %v2439 = vpop.f32.mrf.mxu0
      %v2440 = vadd.f32 0.0, %v2439
      %2441 = vdwg.mxu0
      %v2442 = vadd.f32 %v2163, %v2347
      %v2443 = vadd.f32 %v2164, %v2350
      %v2444 = vadd.f32 %v2165, %v2353
      %v2445 = vadd.f32 %v2166, %v2356
      %v2446 = vadd.f32 %v2167, %v2359
      %v2447 = vadd.f32 %v2168, %v2362
      %v2448 = vadd.f32 %v2169, %v2365
      %v2449 = vadd.f32 %v2170, %v2368
      %v2450 = vadd.f32 %v2171, %v2371
      %v2451 = vadd.f32 %v2172, %v2374
      %v2452 = vadd.f32 %v2173, %v2377
      %v2453 = vadd.f32 %v2174, %v2380
      %v2454 = vadd.f32 %v2175, %v2383
      %v2455 = vadd.f32 %v2176, %v2386
      %v2456 = vadd.f32 %v2177, %v2389
      %v2457 = vadd.f32 %v2178, %v2392
      %v2458 = vadd.f32 %v2179, %v2395
      %v2459 = vadd.f32 %v2180, %v2398
      %v2460 = vadd.f32 %v2181, %v2401
      %v2461 = vadd.f32 %v2182, %v2404
      %v2462 = vadd.f32 %v2183, %v2407
      %v2463 = vadd.f32 %v2184, %v2410
      %v2464 = vadd.f32 %v2185, %v2413
      %v2465 = vadd.f32 %v2186, %v2416
      %v2466 = vadd.f32 %v2187, %v2419
      %v2467 = vadd.f32 %v2188, %v2422
      %v2468 = vadd.f32 %v2189, %v2425
      %v2469 = vadd.f32 %v2190, %v2428
      %v2470 = vadd.f32 %v2191, %v2431
      %v2471 = vadd.f32 %v2192, %v2434
      %v2472 = vadd.f32 %v2193, %v2437
      %v2473 = vadd.f32 %v2194, %v2440
      %v2474 = vld [vmem:[%s2195 + $0x1] sm:$0xff]
      %v2475 = vld [vmem:[%s2195 + $0x9] sm:$0xff]
      %v2476 = vld [vmem:[%s2195 + $0x19] sm:$0xff]
      %v2477 = vld [vmem:[%s2195 + $0x21] sm:$0xff]
      %v2478 = vld [vmem:[%s2195 + $0x31] sm:$0xff]
      %v2479 = vld [vmem:[%s2195 + $0x39] sm:$0xff]
      %v2480 = vld [vmem:[%s2195 + $0x49] sm:$0xff]
      %v2481 = vld [vmem:[%s2195 + $0x51] sm:$0xff]
      %v2482 = vld [vmem:[%s2195 + $0x61] sm:$0xff]
      %v2483 = vld [vmem:[%s2195 + $0x69] sm:$0xff]
      %v2484 = vld [vmem:[%s2195 + $0x79] sm:$0xff]
      %v2485 = vld [vmem:[%s2195 + $0x81] sm:$0xff]
      %v2486 = vld [vmem:[%s2195 + $0x91] sm:$0xff]
      %v2487 = vld [vmem:[%s2195 + $0x99] sm:$0xff]
      %v2488 = vld [vmem:[%s2195 + $0xa9] sm:$0xff]
      %v2489 = vld [vmem:[%s2195 + $0xb1] sm:$0xff]
      %v2490 = vld [vmem:[%s2195 + $0xc1] sm:$0xff]
      %v2491 = vld [vmem:[%s2195 + $0xc9] sm:$0xff]
      %v2492 = vld [vmem:[%s2195 + $0xd9] sm:$0xff]
      %v2493 = vld [vmem:[%s2195 + $0xe1] sm:$0xff]
      %v2494 = vld [vmem:[%s2195 + $0xf1] sm:$0xff]
      %v2495 = vld [vmem:[%s2195 + $0xf9] sm:$0xff]
      %v2496 = vld [vmem:[%s2195 + $0x109] sm:$0xff]
      %v2497 = vld [vmem:[%s2195 + $0x111] sm:$0xff]
      %v2498 = vld [vmem:[%s2195 + $0x121] sm:$0xff]
      %v2499 = vld [vmem:[%s2195 + $0x129] sm:$0xff]
      %v2500 = vld [vmem:[%s2195 + $0x139] sm:$0xff]
      %v2501 = vld [vmem:[%s2195 + $0x141] sm:$0xff]
      %v2502 = vld [vmem:[%s2195 + $0x151] sm:$0xff]
      %v2503 = vld [vmem:[%s2195 + $0x159] sm:$0xff]
      %v2504 = vld [vmem:[%s2195 + $0x169] sm:$0xff]
      %v2505 = vld [vmem:[%s2195 + $0x171] sm:$0xff]
      %s2506 = scalar_lea.vmem %s1, 28
      %v2507 = vld [vmem:[%s2506] sm:$0xf]
      %v2509 = vsel %vm470, %v2474, 0
      %v2512 = vsel %vm470, %v2475, 0
      %v2515 = vsel %vm470, %v2476, 0
      %v2518 = vsel %vm470, %v2477, 0
      %v2521 = vsel %vm470, %v2478, 0
      %v2524 = vsel %vm470, %v2479, 0
      %v2527 = vsel %vm470, %v2480, 0
      %v2530 = vsel %vm470, %v2481, 0
      %v2533 = vsel %vm470, %v2482, 0
      %v2536 = vsel %vm470, %v2483, 0
      %v2539 = vsel %vm470, %v2484, 0
      %v2542 = vsel %vm470, %v2485, 0
      %v2545 = vsel %vm470, %v2486, 0
      %v2548 = vsel %vm470, %v2487, 0
      %v2551 = vsel %vm470, %v2488, 0
      %v2554 = vsel %vm470, %v2489, 0
      %v2557 = vsel %vm470, %v2490, 0
      %v2560 = vsel %vm470, %v2491, 0
      %v2563 = vsel %vm470, %v2492, 0
      %v2566 = vsel %vm470, %v2493, 0
      %v2569 = vsel %vm470, %v2494, 0
      %v2572 = vsel %vm470, %v2495, 0
      %v2575 = vsel %vm470, %v2496, 0
      %v2578 = vsel %vm470, %v2497, 0
      %v2581 = vsel %vm470, %v2498, 0
      %v2584 = vsel %vm470, %v2499, 0
      %v2587 = vsel %vm470, %v2500, 0
      %v2590 = vsel %vm470, %v2501, 0
      %v2593 = vsel %vm470, %v2502, 0
      %v2596 = vsel %vm470, %v2503, 0
      %v2599 = vsel %vm470, %v2504, 0
      %v2602 = vsel %vm470, %v2505, 0
      %v2605 = vsel %vm754, %v2507, 0
      %2607 = vmatpush.msra.mxu0 0.0
      %2608 = vmatpush.msra.mxu0 0.0
      %2609 = vmatpush.msra.mxu0 0.0
      %2610 = vmatpush.msra.mxu0 0.0
      %2611 = vmatpush.msra.mxu0 0.0
      %2612 = vmatpush.msra.mxu0 0.0
      %2613 = vmatpush.msra.mxu0 0.0
      %2614 = vmatpush.msra.mxu0 0.0
      %2615 = vmatpush.msra.mxu0 0.0
      %2616 = vmatpush.msra.mxu0 0.0
      %2617 = vmatpush.msra.mxu0 0.0
      %2618 = vmatpush.msra.mxu0 0.0
      %2619 = vmatpush.msra.mxu0 0.0
      %2620 = vmatpush.msra.mxu0 0.0
      %2621 = vmatpush.msra.mxu0 0.0
      %2622 = vmatpush.msra.mxu0 %v2605
      %2623 = vmatmul.f32.gmra.mxu0 %v2509
      %v2624 = vpop.f32.mrf.mxu0
      %v2625 = vadd.f32 0.0, %v2624
      %2626 = vmatmul.f32.gmra.mxu0 %v2512
      %v2627 = vpop.f32.mrf.mxu0
      %v2628 = vadd.f32 0.0, %v2627
      %2629 = vmatmul.f32.gmra.mxu0 %v2515
      %v2630 = vpop.f32.mrf.mxu0
      %v2631 = vadd.f32 0.0, %v2630
      %2632 = vmatmul.f32.gmra.mxu0 %v2518
      %v2633 = vpop.f32.mrf.mxu0
      %v2634 = vadd.f32 0.0, %v2633
      %2635 = vmatmul.f32.gmra.mxu0 %v2521
      %v2636 = vpop.f32.mrf.mxu0
      %v2637 = vadd.f32 0.0, %v2636
      %2638 = vmatmul.f32.gmra.mxu0 %v2524
      %v2639 = vpop.f32.mrf.mxu0
      %v2640 = vadd.f32 0.0, %v2639
      %2641 = vmatmul.f32.gmra.mxu0 %v2527
      %v2642 = vpop.f32.mrf.mxu0
      %v2643 = vadd.f32 0.0, %v2642
      %2644 = vmatmul.f32.gmra.mxu0 %v2530
      %v2645 = vpop.f32.mrf.mxu0
      %v2646 = vadd.f32 0.0, %v2645
      %2647 = vmatmul.f32.gmra.mxu0 %v2533
      %v2648 = vpop.f32.mrf.mxu0
      %v2649 = vadd.f32 0.0, %v2648
      %2650 = vmatmul.f32.gmra.mxu0 %v2536
      %v2651 = vpop.f32.mrf.mxu0
      %v2652 = vadd.f32 0.0, %v2651
      %2653 = vmatmul.f32.gmra.mxu0 %v2539
      %v2654 = vpop.f32.mrf.mxu0
      %v2655 = vadd.f32 0.0, %v2654
      %2656 = vmatmul.f32.gmra.mxu0 %v2542
      %v2657 = vpop.f32.mrf.mxu0
      %v2658 = vadd.f32 0.0, %v2657
      %2659 = vmatmul.f32.gmra.mxu0 %v2545
      %v2660 = vpop.f32.mrf.mxu0
      %v2661 = vadd.f32 0.0, %v2660
      %2662 = vmatmul.f32.gmra.mxu0 %v2548
      %v2663 = vpop.f32.mrf.mxu0
      %v2664 = vadd.f32 0.0, %v2663
      %2665 = vmatmul.f32.gmra.mxu0 %v2551
      %v2666 = vpop.f32.mrf.mxu0
      %v2667 = vadd.f32 0.0, %v2666
      %2668 = vmatmul.f32.gmra.mxu0 %v2554
      %v2669 = vpop.f32.mrf.mxu0
      %v2670 = vadd.f32 0.0, %v2669
      %2671 = vmatmul.f32.gmra.mxu0 %v2557
      %v2672 = vpop.f32.mrf.mxu0
      %v2673 = vadd.f32 0.0, %v2672
      %2674 = vmatmul.f32.gmra.mxu0 %v2560
      %v2675 = vpop.f32.mrf.mxu0
      %v2676 = vadd.f32 0.0, %v2675
      %2677 = vmatmul.f32.gmra.mxu0 %v2563
      %v2678 = vpop.f32.mrf.mxu0
      %v2679 = vadd.f32 0.0, %v2678
      %2680 = vmatmul.f32.gmra.mxu0 %v2566
      %v2681 = vpop.f32.mrf.mxu0
      %v2682 = vadd.f32 0.0, %v2681
      %2683 = vmatmul.f32.gmra.mxu0 %v2569
      %v2684 = vpop.f32.mrf.mxu0
      %v2685 = vadd.f32 0.0, %v2684
      %2686 = vmatmul.f32.gmra.mxu0 %v2572
      %v2687 = vpop.f32.mrf.mxu0
      %v2688 = vadd.f32 0.0, %v2687
      %2689 = vmatmul.f32.gmra.mxu0 %v2575
      %v2690 = vpop.f32.mrf.mxu0
      %v2691 = vadd.f32 0.0, %v2690
      %2692 = vmatmul.f32.gmra.mxu0 %v2578
      %v2693 = vpop.f32.mrf.mxu0
      %v2694 = vadd.f32 0.0, %v2693
      %2695 = vmatmul.f32.gmra.mxu0 %v2581
      %v2696 = vpop.f32.mrf.mxu0
      %v2697 = vadd.f32 0.0, %v2696
      %2698 = vmatmul.f32.gmra.mxu0 %v2584
      %v2699 = vpop.f32.mrf.mxu0
      %v2700 = vadd.f32 0.0, %v2699
      %2701 = vmatmul.f32.gmra.mxu0 %v2587
      %v2702 = vpop.f32.mrf.mxu0
      %v2703 = vadd.f32 0.0, %v2702
      %2704 = vmatmul.f32.gmra.mxu0 %v2590
      %v2705 = vpop.f32.mrf.mxu0
      %v2706 = vadd.f32 0.0, %v2705
      %2707 = vmatmul.f32.gmra.mxu0 %v2593
      %v2708 = vpop.f32.mrf.mxu0
      %v2709 = vadd.f32 0.0, %v2708
      %2710 = vmatmul.f32.gmra.mxu0 %v2596
      %v2711 = vpop.f32.mrf.mxu0
      %v2712 = vadd.f32 0.0, %v2711
      %2713 = vmatmul.f32.gmra.mxu0 %v2599
      %v2714 = vpop.f32.mrf.mxu0
      %v2715 = vadd.f32 0.0, %v2714
      %2716 = vmatmul.f32.gmra.mxu0 %v2602
      %v2717 = vpop.f32.mrf.mxu0
      %v2718 = vadd.f32 0.0, %v2717
      %2719 = vdwg.mxu0
      %v2720 = vadd.f32 %v2442, %v2625
      %v2721 = vadd.f32 %v2443, %v2628
      %v2722 = vadd.f32 %v2444, %v2631
      %v2723 = vadd.f32 %v2445, %v2634
      %v2724 = vadd.f32 %v2446, %v2637
      %v2725 = vadd.f32 %v2447, %v2640
      %v2726 = vadd.f32 %v2448, %v2643
      %v2727 = vadd.f32 %v2449, %v2646
      %v2728 = vadd.f32 %v2450, %v2649
      %v2729 = vadd.f32 %v2451, %v2652
      %v2730 = vadd.f32 %v2452, %v2655
      %v2731 = vadd.f32 %v2453, %v2658
      %v2732 = vadd.f32 %v2454, %v2661
      %v2733 = vadd.f32 %v2455, %v2664
      %v2734 = vadd.f32 %v2456, %v2667
      %v2735 = vadd.f32 %v2457, %v2670
      %v2736 = vadd.f32 %v2458, %v2673
      %v2737 = vadd.f32 %v2459, %v2676
      %v2738 = vadd.f32 %v2460, %v2679
      %v2739 = vadd.f32 %v2461, %v2682
      %v2740 = vadd.f32 %v2462, %v2685
      %v2741 = vadd.f32 %v2463, %v2688
      %v2742 = vadd.f32 %v2464, %v2691
      %v2743 = vadd.f32 %v2465, %v2694
      %v2744 = vadd.f32 %v2466, %v2697
      %v2745 = vadd.f32 %v2467, %v2700
      %v2746 = vadd.f32 %v2468, %v2703
      %v2747 = vadd.f32 %v2469, %v2706
      %v2748 = vadd.f32 %v2470, %v2709
      %v2749 = vadd.f32 %v2471, %v2712
      %v2750 = vadd.f32 %v2472, %v2715
      %v2751 = vadd.f32 %v2473, %v2718
      %v2752 = vld [vmem:[%s2195 + $0x2] sm:$0xff]
      %v2753 = vld [vmem:[%s2195 + $0xa] sm:$0xff]
      %v2754 = vld [vmem:[%s2195 + $0x1a] sm:$0xff]
      %v2755 = vld [vmem:[%s2195 + $0x22] sm:$0xff]
      %v2756 = vld [vmem:[%s2195 + $0x32] sm:$0xff]
      %v2757 = vld [vmem:[%s2195 + $0x3a] sm:$0xff]
      %v2758 = vld [vmem:[%s2195 + $0x4a] sm:$0xff]
      %v2759 = vld [vmem:[%s2195 + $0x52] sm:$0xff]
      %v2760 = vld [vmem:[%s2195 + $0x62] sm:$0xff]
      %v2761 = vld [vmem:[%s2195 + $0x6a] sm:$0xff]
      %v2762 = vld [vmem:[%s2195 + $0x7a] sm:$0xff]
      %v2763 = vld [vmem:[%s2195 + $0x82] sm:$0xff]
      %v2764 = vld [vmem:[%s2195 + $0x92] sm:$0xff]
      %v2765 = vld [vmem:[%s2195 + $0x9a] sm:$0xff]
      %v2766 = vld [vmem:[%s2195 + $0xaa] sm:$0xff]
      %v2767 = vld [vmem:[%s2195 + $0xb2] sm:$0xff]
      %v2768 = vld [vmem:[%s2195 + $0xc2] sm:$0xff]
      %v2769 = vld [vmem:[%s2195 + $0xca] sm:$0xff]
      %v2770 = vld [vmem:[%s2195 + $0xda] sm:$0xff]
      %v2771 = vld [vmem:[%s2195 + $0xe2] sm:$0xff]
      %v2772 = vld [vmem:[%s2195 + $0xf2] sm:$0xff]
      %v2773 = vld [vmem:[%s2195 + $0xfa] sm:$0xff]
      %v2774 = vld [vmem:[%s2195 + $0x10a] sm:$0xff]
      %v2775 = vld [vmem:[%s2195 + $0x112] sm:$0xff]
      %v2776 = vld [vmem:[%s2195 + $0x122] sm:$0xff]
      %v2777 = vld [vmem:[%s2195 + $0x12a] sm:$0xff]
      %v2778 = vld [vmem:[%s2195 + $0x13a] sm:$0xff]
      %v2779 = vld [vmem:[%s2195 + $0x142] sm:$0xff]
      %v2780 = vld [vmem:[%s2195 + $0x152] sm:$0xff]
      %v2781 = vld [vmem:[%s2195 + $0x15a] sm:$0xff]
      %v2782 = vld [vmem:[%s2195 + $0x16a] sm:$0xff]
      %v2783 = vld [vmem:[%s2195 + $0x172] sm:$0xff]
      %s2784 = scalar_lea.vmem %s1, 32
      %v2785 = vld [vmem:[%s2784] sm:$0xf]
      %v2787 = vsel %vm470, %v2752, 0
      %v2790 = vsel %vm470, %v2753, 0
      %v2793 = vsel %vm470, %v2754, 0
      %v2796 = vsel %vm470, %v2755, 0
      %v2799 = vsel %vm470, %v2756, 0
      %v2802 = vsel %vm470, %v2757, 0
      %v2805 = vsel %vm470, %v2758, 0
      %v2808 = vsel %vm470, %v2759, 0
      %v2811 = vsel %vm470, %v2760, 0
      %v2814 = vsel %vm470, %v2761, 0
      %v2817 = vsel %vm470, %v2762, 0
      %v2820 = vsel %vm470, %v2763, 0
      %v2823 = vsel %vm470, %v2764, 0
      %v2826 = vsel %vm470, %v2765, 0
      %v2829 = vsel %vm470, %v2766, 0
      %v2832 = vsel %vm470, %v2767, 0
      %v2835 = vsel %vm470, %v2768, 0
      %v2838 = vsel %vm470, %v2769, 0
      %v2841 = vsel %vm470, %v2770, 0
      %v2844 = vsel %vm470, %v2771, 0
      %v2847 = vsel %vm470, %v2772, 0
      %v2850 = vsel %vm470, %v2773, 0
      %v2853 = vsel %vm470, %v2774, 0
      %v2856 = vsel %vm470, %v2775, 0
      %v2859 = vsel %vm470, %v2776, 0
      %v2862 = vsel %vm470, %v2777, 0
      %v2865 = vsel %vm470, %v2778, 0
      %v2868 = vsel %vm470, %v2779, 0
      %v2871 = vsel %vm470, %v2780, 0
      %v2874 = vsel %vm470, %v2781, 0
      %v2877 = vsel %vm470, %v2782, 0
      %v2880 = vsel %vm470, %v2783, 0
      %v2883 = vsel %vm754, %v2785, 0
      %2885 = vmatpush.msra.mxu0 0.0
      %2886 = vmatpush.msra.mxu0 0.0
      %2887 = vmatpush.msra.mxu0 0.0
      %2888 = vmatpush.msra.mxu0 0.0
      %2889 = vmatpush.msra.mxu0 0.0
      %2890 = vmatpush.msra.mxu0 0.0
      %2891 = vmatpush.msra.mxu0 0.0
      %2892 = vmatpush.msra.mxu0 0.0
      %2893 = vmatpush.msra.mxu0 0.0
      %2894 = vmatpush.msra.mxu0 0.0
      %2895 = vmatpush.msra.mxu0 0.0
      %2896 = vmatpush.msra.mxu0 0.0
      %2897 = vmatpush.msra.mxu0 0.0
      %2898 = vmatpush.msra.mxu0 0.0
      %2899 = vmatpush.msra.mxu0 0.0
      %2900 = vmatpush.msra.mxu0 %v2883
      %2901 = vmatmul.f32.gmra.mxu0 %v2787
      %v2902 = vpop.f32.mrf.mxu0
      %v2903 = vadd.f32 0.0, %v2902
      %2904 = vmatmul.f32.gmra.mxu0 %v2790
      %v2905 = vpop.f32.mrf.mxu0
      %v2906 = vadd.f32 0.0, %v2905
      %2907 = vmatmul.f32.gmra.mxu0 %v2793
      %v2908 = vpop.f32.mrf.mxu0
      %v2909 = vadd.f32 0.0, %v2908
      %2910 = vmatmul.f32.gmra.mxu0 %v2796
      %v2911 = vpop.f32.mrf.mxu0
      %v2912 = vadd.f32 0.0, %v2911
      %2913 = vmatmul.f32.gmra.mxu0 %v2799
      %v2914 = vpop.f32.mrf.mxu0
      %v2915 = vadd.f32 0.0, %v2914
      %2916 = vmatmul.f32.gmra.mxu0 %v2802
      %v2917 = vpop.f32.mrf.mxu0
      %v2918 = vadd.f32 0.0, %v2917
      %2919 = vmatmul.f32.gmra.mxu0 %v2805
      %v2920 = vpop.f32.mrf.mxu0
      %v2921 = vadd.f32 0.0, %v2920
      %2922 = vmatmul.f32.gmra.mxu0 %v2808
      %v2923 = vpop.f32.mrf.mxu0
      %v2924 = vadd.f32 0.0, %v2923
      %2925 = vmatmul.f32.gmra.mxu0 %v2811
      %v2926 = vpop.f32.mrf.mxu0
      %v2927 = vadd.f32 0.0, %v2926
      %2928 = vmatmul.f32.gmra.mxu0 %v2814
      %v2929 = vpop.f32.mrf.mxu0
      %v2930 = vadd.f32 0.0, %v2929
      %2931 = vmatmul.f32.gmra.mxu0 %v2817
      %v2932 = vpop.f32.mrf.mxu0
      %v2933 = vadd.f32 0.0, %v2932
      %2934 = vmatmul.f32.gmra.mxu0 %v2820
      %v2935 = vpop.f32.mrf.mxu0
      %v2936 = vadd.f32 0.0, %v2935
      %2937 = vmatmul.f32.gmra.mxu0 %v2823
      %v2938 = vpop.f32.mrf.mxu0
      %v2939 = vadd.f32 0.0, %v2938
      %2940 = vmatmul.f32.gmra.mxu0 %v2826
      %v2941 = vpop.f32.mrf.mxu0
      %v2942 = vadd.f32 0.0, %v2941
      %2943 = vmatmul.f32.gmra.mxu0 %v2829
      %v2944 = vpop.f32.mrf.mxu0
      %v2945 = vadd.f32 0.0, %v2944
      %2946 = vmatmul.f32.gmra.mxu0 %v2832
      %v2947 = vpop.f32.mrf.mxu0
      %v2948 = vadd.f32 0.0, %v2947
      %2949 = vmatmul.f32.gmra.mxu0 %v2835
      %v2950 = vpop.f32.mrf.mxu0
      %v2951 = vadd.f32 0.0, %v2950
      %2952 = vmatmul.f32.gmra.mxu0 %v2838
      %v2953 = vpop.f32.mrf.mxu0
      %v2954 = vadd.f32 0.0, %v2953
      %2955 = vmatmul.f32.gmra.mxu0 %v2841
      %v2956 = vpop.f32.mrf.mxu0
      %v2957 = vadd.f32 0.0, %v2956
      %2958 = vmatmul.f32.gmra.mxu0 %v2844
      %v2959 = vpop.f32.mrf.mxu0
      %v2960 = vadd.f32 0.0, %v2959
      %2961 = vmatmul.f32.gmra.mxu0 %v2847
      %v2962 = vpop.f32.mrf.mxu0
      %v2963 = vadd.f32 0.0, %v2962
      %2964 = vmatmul.f32.gmra.mxu0 %v2850
      %v2965 = vpop.f32.mrf.mxu0
      %v2966 = vadd.f32 0.0, %v2965
      %2967 = vmatmul.f32.gmra.mxu0 %v2853
      %v2968 = vpop.f32.mrf.mxu0
      %v2969 = vadd.f32 0.0, %v2968
      %2970 = vmatmul.f32.gmra.mxu0 %v2856
      %v2971 = vpop.f32.mrf.mxu0
      %v2972 = vadd.f32 0.0, %v2971
      %2973 = vmatmul.f32.gmra.mxu0 %v2859
      %v2974 = vpop.f32.mrf.mxu0
      %v2975 = vadd.f32 0.0, %v2974
      %2976 = vmatmul.f32.gmra.mxu0 %v2862
      %v2977 = vpop.f32.mrf.mxu0
      %v2978 = vadd.f32 0.0, %v2977
      %2979 = vmatmul.f32.gmra.mxu0 %v2865
      %v2980 = vpop.f32.mrf.mxu0
      %v2981 = vadd.f32 0.0, %v2980
      %2982 = vmatmul.f32.gmra.mxu0 %v2868
      %v2983 = vpop.f32.mrf.mxu0
      %v2984 = vadd.f32 0.0, %v2983
      %2985 = vmatmul.f32.gmra.mxu0 %v2871
      %v2986 = vpop.f32.mrf.mxu0
      %v2987 = vadd.f32 0.0, %v2986
      %2988 = vmatmul.f32.gmra.mxu0 %v2874
      %v2989 = vpop.f32.mrf.mxu0
      %v2990 = vadd.f32 0.0, %v2989
      %2991 = vmatmul.f32.gmra.mxu0 %v2877
      %v2992 = vpop.f32.mrf.mxu0
      %v2993 = vadd.f32 0.0, %v2992
      %2994 = vmatmul.f32.gmra.mxu0 %v2880
      %v2995 = vpop.f32.mrf.mxu0
      %v2996 = vadd.f32 0.0, %v2995
      %2997 = vdwg.mxu0
      %v2998 = vadd.f32 %v2720, %v2903
      %v2999 = vadd.f32 %v2721, %v2906
      %v3000 = vadd.f32 %v2722, %v2909
      %v3001 = vadd.f32 %v2723, %v2912
      %v3002 = vadd.f32 %v2724, %v2915
      %v3003 = vadd.f32 %v2725, %v2918
      %v3004 = vadd.f32 %v2726, %v2921
      %v3005 = vadd.f32 %v2727, %v2924
      %v3006 = vadd.f32 %v2728, %v2927
      %v3007 = vadd.f32 %v2729, %v2930
      %v3008 = vadd.f32 %v2730, %v2933
      %v3009 = vadd.f32 %v2731, %v2936
      %v3010 = vadd.f32 %v2732, %v2939
      %v3011 = vadd.f32 %v2733, %v2942
      %v3012 = vadd.f32 %v2734, %v2945
      %v3013 = vadd.f32 %v2735, %v2948
      %v3014 = vadd.f32 %v2736, %v2951
      %v3015 = vadd.f32 %v2737, %v2954
      %v3016 = vadd.f32 %v2738, %v2957
      %v3017 = vadd.f32 %v2739, %v2960
      %v3018 = vadd.f32 %v2740, %v2963
      %v3019 = vadd.f32 %v2741, %v2966
      %v3020 = vadd.f32 %v2742, %v2969
      %v3021 = vadd.f32 %v2743, %v2972
      %v3022 = vadd.f32 %v2744, %v2975
      %v3023 = vadd.f32 %v2745, %v2978
      %v3024 = vadd.f32 %v2746, %v2981
      %v3025 = vadd.f32 %v2747, %v2984
      %v3026 = vadd.f32 %v2748, %v2987
      %v3027 = vadd.f32 %v2749, %v2990
      %v3028 = vadd.f32 %v2750, %v2993
      %v3029 = vadd.f32 %v2751, %v2996
      %v3030 = vld [vmem:[%s2] sm:$0x1]
      %v3032 = vperm.slane %v3030, 0
      %v3034 = vmul.f32 %v2998, %v3032
      %v3035 = vmul.f32 %v2999, %v3032
      %v3036 = vmul.f32 %v3000, %v3032
      %v3037 = vmul.f32 %v3001, %v3032
      %v3038 = vmul.f32 %v3002, %v3032
      %v3039 = vmul.f32 %v3003, %v3032
      %v3040 = vmul.f32 %v3004, %v3032
      %v3041 = vmul.f32 %v3005, %v3032
      %v3042 = vmul.f32 %v3006, %v3032
      %v3043 = vmul.f32 %v3007, %v3032
      %v3044 = vmul.f32 %v3008, %v3032
      %v3045 = vmul.f32 %v3009, %v3032
      %v3046 = vmul.f32 %v3010, %v3032
      %v3047 = vmul.f32 %v3011, %v3032
      %v3048 = vmul.f32 %v3012, %v3032
      %v3049 = vmul.f32 %v3013, %v3032
      %v3050 = vmul.f32 %v3014, %v3032
      %v3051 = vmul.f32 %v3015, %v3032
      %v3052 = vmul.f32 %v3016, %v3032
      %v3053 = vmul.f32 %v3017, %v3032
      %v3054 = vmul.f32 %v3018, %v3032
      %v3055 = vmul.f32 %v3019, %v3032
      %v3056 = vmul.f32 %v3020, %v3032
      %v3057 = vmul.f32 %v3021, %v3032
      %v3058 = vmul.f32 %v3022, %v3032
      %v3059 = vmul.f32 %v3023, %v3032
      %v3060 = vmul.f32 %v3024, %v3032
      %v3061 = vmul.f32 %v3025, %v3032
      %v3062 = vmul.f32 %v3026, %v3032
      %v3063 = vmul.f32 %v3027, %v3032
      %v3064 = vmul.f32 %v3028, %v3032
      %v3065 = vmul.f32 %v3029, %v3032
      %v3066 = vld [vmem:[%s3] sm:$0x1]
      %v3068 = vperm.slane %v3066, 0
      %v3070 = vadd.f32 %v3034, %v3068
      %v3071 = vadd.f32 %v3035, %v3068
      %v3072 = vadd.f32 %v3036, %v3068
      %v3073 = vadd.f32 %v3037, %v3068
      %v3074 = vadd.f32 %v3038, %v3068
      %v3075 = vadd.f32 %v3039, %v3068
      %v3076 = vadd.f32 %v3040, %v3068
      %v3077 = vadd.f32 %v3041, %v3068
      %v3078 = vadd.f32 %v3042, %v3068
      %v3079 = vadd.f32 %v3043, %v3068
      %v3080 = vadd.f32 %v3044, %v3068
      %v3081 = vadd.f32 %v3045, %v3068
      %v3082 = vadd.f32 %v3046, %v3068
      %v3083 = vadd.f32 %v3047, %v3068
      %v3084 = vadd.f32 %v3048, %v3068
      %v3085 = vadd.f32 %v3049, %v3068
      %v3086 = vadd.f32 %v3050, %v3068
      %v3087 = vadd.f32 %v3051, %v3068
      %v3088 = vadd.f32 %v3052, %v3068
      %v3089 = vadd.f32 %v3053, %v3068
      %v3090 = vadd.f32 %v3054, %v3068
      %v3091 = vadd.f32 %v3055, %v3068
      %v3092 = vadd.f32 %v3056, %v3068
      %v3093 = vadd.f32 %v3057, %v3068
      %v3094 = vadd.f32 %v3058, %v3068
      %v3095 = vadd.f32 %v3059, %v3068
      %v3096 = vadd.f32 %v3060, %v3068
      %v3097 = vadd.f32 %v3061, %v3068
      %v3098 = vadd.f32 %v3062, %v3068
      %v3099 = vadd.f32 %v3063, %v3068
      %v3100 = vadd.f32 %v3064, %v3068
      %v3101 = vadd.f32 %v3065, %v3068
      %v3102 = vsub.f32 0.0, %v3070
      %v3103 = vsub.f32 0.0, %v3071
      %v3104 = vsub.f32 0.0, %v3072
      %v3105 = vsub.f32 0.0, %v3073
      %v3106 = vsub.f32 0.0, %v3074
      %v3107 = vsub.f32 0.0, %v3075
      %v3108 = vsub.f32 0.0, %v3076
      %v3109 = vsub.f32 0.0, %v3077
      %v3110 = vsub.f32 0.0, %v3078
      %v3111 = vsub.f32 0.0, %v3079
      %v3112 = vsub.f32 0.0, %v3080
      %v3113 = vsub.f32 0.0, %v3081
      %v3114 = vsub.f32 0.0, %v3082
      %v3115 = vsub.f32 0.0, %v3083
      %v3116 = vsub.f32 0.0, %v3084
      %v3117 = vsub.f32 0.0, %v3085
      %v3118 = vsub.f32 0.0, %v3086
      %v3119 = vsub.f32 0.0, %v3087
      %v3120 = vsub.f32 0.0, %v3088
      %v3121 = vsub.f32 0.0, %v3089
      %v3122 = vsub.f32 0.0, %v3090
      %v3123 = vsub.f32 0.0, %v3091
      %v3124 = vsub.f32 0.0, %v3092
      %v3125 = vsub.f32 0.0, %v3093
      %v3126 = vsub.f32 0.0, %v3094
      %v3127 = vsub.f32 0.0, %v3095
      %v3128 = vsub.f32 0.0, %v3096
      %v3129 = vsub.f32 0.0, %v3097
      %v3130 = vsub.f32 0.0, %v3098
      %v3131 = vsub.f32 0.0, %v3099
      %v3132 = vsub.f32 0.0, %v3100
      %v3133 = vsub.f32 0.0, %v3101
      %v3134 = vmul.f32 %v3102, 1.442695
      %v3135 = vpow.pop %v3134
      %v3136 = vmul.f32 %v3103, 1.442695
      %v3137 = vpow.pop %v3136
      %v3138 = vmul.f32 %v3104, 1.442695
      %v3139 = vpow.pop %v3138
      %v3140 = vmul.f32 %v3105, 1.442695
      %v3141 = vpow.pop %v3140
      %v3142 = vmul.f32 %v3106, 1.442695
      %v3143 = vpow.pop %v3142
      %v3144 = vmul.f32 %v3107, 1.442695
      %v3145 = vpow.pop %v3144
      %v3146 = vmul.f32 %v3108, 1.442695
      %v3147 = vpow.pop %v3146
      %v3148 = vmul.f32 %v3109, 1.442695
      %v3149 = vpow.pop %v3148
      %v3150 = vmul.f32 %v3110, 1.442695
      %v3151 = vpow.pop %v3150
      %v3152 = vmul.f32 %v3111, 1.442695
      %v3153 = vpow.pop %v3152
      %v3154 = vmul.f32 %v3112, 1.442695
      %v3155 = vpow.pop %v3154
      %v3156 = vmul.f32 %v3113, 1.442695
      %v3157 = vpow.pop %v3156
      %v3158 = vmul.f32 %v3114, 1.442695
      %v3159 = vpow.pop %v3158
      %v3160 = vmul.f32 %v3115, 1.442695
      %v3161 = vpow.pop %v3160
      %v3162 = vmul.f32 %v3116, 1.442695
      %v3163 = vpow.pop %v3162
      %v3164 = vmul.f32 %v3117, 1.442695
      %v3165 = vpow.pop %v3164
      %v3166 = vmul.f32 %v3118, 1.442695
      %v3167 = vpow.pop %v3166
      %v3168 = vmul.f32 %v3119, 1.442695
      %v3169 = vpow.pop %v3168
      %v3170 = vmul.f32 %v3120, 1.442695
      %v3171 = vpow.pop %v3170
      %v3172 = vmul.f32 %v3121, 1.442695
      %v3173 = vpow.pop %v3172
      %v3174 = vmul.f32 %v3122, 1.442695
      %v3175 = vpow.pop %v3174
      %v3176 = vmul.f32 %v3123, 1.442695
      %v3177 = vpow.pop %v3176
      %v3178 = vmul.f32 %v3124, 1.442695
      %v3179 = vpow.pop %v3178
      %v3180 = vmul.f32 %v3125, 1.442695
      %v3181 = vpow.pop %v3180
      %v3182 = vmul.f32 %v3126, 1.442695
      %v3183 = vpow.pop %v3182
      %v3184 = vmul.f32 %v3127, 1.442695
      %v3185 = vpow.pop %v3184
      %v3186 = vmul.f32 %v3128, 1.442695
      %v3187 = vpow.pop %v3186
      %v3188 = vmul.f32 %v3129, 1.442695
      %v3189 = vpow.pop %v3188
      %v3190 = vmul.f32 %v3130, 1.442695
      %v3191 = vpow.pop %v3190
      %v3192 = vmul.f32 %v3131, 1.442695
      %v3193 = vpow.pop %v3192
      %v3194 = vmul.f32 %v3132, 1.442695
      %v3195 = vpow.pop %v3194
      %v3196 = vmul.f32 %v3133, 1.442695
      %v3197 = vpow.pop %v3196
      %v3198 = vadd.f32 %v3135, 1.0
      %v3199 = vadd.f32 %v3137, 1.0
      %v3200 = vadd.f32 %v3139, 1.0
      %v3201 = vadd.f32 %v3141, 1.0
      %v3202 = vadd.f32 %v3143, 1.0
      %v3203 = vadd.f32 %v3145, 1.0
      %v3204 = vadd.f32 %v3147, 1.0
      %v3205 = vadd.f32 %v3149, 1.0
      %v3206 = vadd.f32 %v3151, 1.0
      %v3207 = vadd.f32 %v3153, 1.0
      %v3208 = vadd.f32 %v3155, 1.0
      %v3209 = vadd.f32 %v3157, 1.0
      %v3210 = vadd.f32 %v3159, 1.0
      %v3211 = vadd.f32 %v3161, 1.0
      %v3212 = vadd.f32 %v3163, 1.0
      %v3213 = vadd.f32 %v3165, 1.0
      %v3214 = vadd.f32 %v3167, 1.0
      %v3215 = vadd.f32 %v3169, 1.0
      %v3216 = vadd.f32 %v3171, 1.0
      %v3217 = vadd.f32 %v3173, 1.0
      %v3218 = vadd.f32 %v3175, 1.0
      %v3219 = vadd.f32 %v3177, 1.0
      %v3220 = vadd.f32 %v3179, 1.0
      %v3221 = vadd.f32 %v3181, 1.0
      %v3222 = vadd.f32 %v3183, 1.0
      %v3223 = vadd.f32 %v3185, 1.0
      %v3224 = vadd.f32 %v3187, 1.0
      %v3225 = vadd.f32 %v3189, 1.0
      %v3226 = vadd.f32 %v3191, 1.0
      %v3227 = vadd.f32 %v3193, 1.0
      %v3228 = vadd.f32 %v3195, 1.0
      %v3229 = vadd.f32 %v3197, 1.0
      %v3230 = vrcp.pop %v3198
      %v3231 = vmul.f32 %v3198, %v3230
      %v3232 = vsub.f32 1.0, %v3231
      %v3233 = vmul.f32 %v3230, %v3232
      %v3234 = vadd.f32 %v3230, %v3233
      %vm3235 = vweird.f32 %v3198
      %vm3236 = vweird.f32 %v3230
      %vm3237 = vmor %vm3235, %vm3236
      %v3238 = vsel %vm3237, %v3230, %v3234
      %v3239 = vand.u32 2147483647, %v3198
      %vm3240 = vcmp.eq.f32.partialorder %v3239, 8.507059e+37
      %v3241 = vand.u32 %v3198, 2147483648
      %v3242 = vor.u32 1.1754944e-38, %v3241
      %v3243 = vsel %vm3240, %v3242, %v3238
      %v3244 = vmul.f32 1.0, %v3243
      %v3245 = vrcp.pop %v3199
      %v3246 = vmul.f32 %v3199, %v3245
      %v3247 = vsub.f32 1.0, %v3246
      %v3248 = vmul.f32 %v3245, %v3247
      %v3249 = vadd.f32 %v3245, %v3248
      %vm3250 = vweird.f32 %v3199
      %vm3251 = vweird.f32 %v3245
      %vm3252 = vmor %vm3250, %vm3251
      %v3253 = vsel %vm3252, %v3245, %v3249
      %v3254 = vand.u32 2147483647, %v3199
      %vm3255 = vcmp.eq.f32.partialorder %v3254, 8.507059e+37
      %v3256 = vand.u32 %v3199, 2147483648
      %v3257 = vor.u32 1.1754944e-38, %v3256
      %v3258 = vsel %vm3255, %v3257, %v3253
      %v3259 = vmul.f32 1.0, %v3258
      %v3260 = vrcp.pop %v3200
      %v3261 = vmul.f32 %v3200, %v3260
      %v3262 = vsub.f32 1.0, %v3261
      %v3263 = vmul.f32 %v3260, %v3262
      %v3264 = vadd.f32 %v3260, %v3263
      %vm3265 = vweird.f32 %v3200
      %vm3266 = vweird.f32 %v3260
      %vm3267 = vmor %vm3265, %vm3266
      %v3268 = vsel %vm3267, %v3260, %v3264
      %v3269 = vand.u32 2147483647, %v3200
      %vm3270 = vcmp.eq.f32.partialorder %v3269, 8.507059e+37
      %v3271 = vand.u32 %v3200, 2147483648
      %v3272 = vor.u32 1.1754944e-38, %v3271
      %v3273 = vsel %vm3270, %v3272, %v3268
      %v3274 = vmul.f32 1.0, %v3273
      %v3275 = vrcp.pop %v3201
      %v3276 = vmul.f32 %v3201, %v3275
      %v3277 = vsub.f32 1.0, %v3276
      %v3278 = vmul.f32 %v3275, %v3277
      %v3279 = vadd.f32 %v3275, %v3278
      %vm3280 = vweird.f32 %v3201
      %vm3281 = vweird.f32 %v3275
      %vm3282 = vmor %vm3280, %vm3281
      %v3283 = vsel %vm3282, %v3275, %v3279
      %v3284 = vand.u32 2147483647, %v3201
      %vm3285 = vcmp.eq.f32.partialorder %v3284, 8.507059e+37
      %v3286 = vand.u32 %v3201, 2147483648
      %v3287 = vor.u32 1.1754944e-38, %v3286
      %v3288 = vsel %vm3285, %v3287, %v3283
      %v3289 = vmul.f32 1.0, %v3288
      %v3290 = vrcp.pop %v3202
      %v3291 = vmul.f32 %v3202, %v3290
      %v3292 = vsub.f32 1.0, %v3291
      %v3293 = vmul.f32 %v3290, %v3292
      %v3294 = vadd.f32 %v3290, %v3293
      %vm3295 = vweird.f32 %v3202
      %vm3296 = vweird.f32 %v3290
      %vm3297 = vmor %vm3295, %vm3296
      %v3298 = vsel %vm3297, %v3290, %v3294
      %v3299 = vand.u32 2147483647, %v3202
      %vm3300 = vcmp.eq.f32.partialorder %v3299, 8.507059e+37
      %v3301 = vand.u32 %v3202, 2147483648
      %v3302 = vor.u32 1.1754944e-38, %v3301
      %v3303 = vsel %vm3300, %v3302, %v3298
      %v3304 = vmul.f32 1.0, %v3303
      %v3305 = vrcp.pop %v3203
      %v3306 = vmul.f32 %v3203, %v3305
      %v3307 = vsub.f32 1.0, %v3306
      %v3308 = vmul.f32 %v3305, %v3307
      %v3309 = vadd.f32 %v3305, %v3308
      %vm3310 = vweird.f32 %v3203
      %vm3311 = vweird.f32 %v3305
      %vm3312 = vmor %vm3310, %vm3311
      %v3313 = vsel %vm3312, %v3305, %v3309
      %v3314 = vand.u32 2147483647, %v3203
      %vm3315 = vcmp.eq.f32.partialorder %v3314, 8.507059e+37
      %v3316 = vand.u32 %v3203, 2147483648
      %v3317 = vor.u32 1.1754944e-38, %v3316
      %v3318 = vsel %vm3315, %v3317, %v3313
      %v3319 = vmul.f32 1.0, %v3318
      %v3320 = vrcp.pop %v3204
      %v3321 = vmul.f32 %v3204, %v3320
      %v3322 = vsub.f32 1.0, %v3321
      %v3323 = vmul.f32 %v3320, %v3322
      %v3324 = vadd.f32 %v3320, %v3323
      %vm3325 = vweird.f32 %v3204
      %vm3326 = vweird.f32 %v3320
      %vm3327 = vmor %vm3325, %vm3326
      %v3328 = vsel %vm3327, %v3320, %v3324
      %v3329 = vand.u32 2147483647, %v3204
      %vm3330 = vcmp.eq.f32.partialorder %v3329, 8.507059e+37
      %v3331 = vand.u32 %v3204, 2147483648
      %v3332 = vor.u32 1.1754944e-38, %v3331
      %v3333 = vsel %vm3330, %v3332, %v3328
      %v3334 = vmul.f32 1.0, %v3333
      %v3335 = vrcp.pop %v3205
      %v3336 = vmul.f32 %v3205, %v3335
      %v3337 = vsub.f32 1.0, %v3336
      %v3338 = vmul.f32 %v3335, %v3337
      %v3339 = vadd.f32 %v3335, %v3338
      %vm3340 = vweird.f32 %v3205
      %vm3341 = vweird.f32 %v3335
      %vm3342 = vmor %vm3340, %vm3341
      %v3343 = vsel %vm3342, %v3335, %v3339
      %v3344 = vand.u32 2147483647, %v3205
      %vm3345 = vcmp.eq.f32.partialorder %v3344, 8.507059e+37
      %v3346 = vand.u32 %v3205, 2147483648
      %v3347 = vor.u32 1.1754944e-38, %v3346
      %v3348 = vsel %vm3345, %v3347, %v3343
      %v3349 = vmul.f32 1.0, %v3348
      %v3350 = vrcp.pop %v3206
      %v3351 = vmul.f32 %v3206, %v3350
      %v3352 = vsub.f32 1.0, %v3351
      %v3353 = vmul.f32 %v3350, %v3352
      %v3354 = vadd.f32 %v3350, %v3353
      %vm3355 = vweird.f32 %v3206
      %vm3356 = vweird.f32 %v3350
      %vm3357 = vmor %vm3355, %vm3356
      %v3358 = vsel %vm3357, %v3350, %v3354
      %v3359 = vand.u32 2147483647, %v3206
      %vm3360 = vcmp.eq.f32.partialorder %v3359, 8.507059e+37
      %v3361 = vand.u32 %v3206, 2147483648
      %v3362 = vor.u32 1.1754944e-38, %v3361
      %v3363 = vsel %vm3360, %v3362, %v3358
      %v3364 = vmul.f32 1.0, %v3363
      %v3365 = vrcp.pop %v3207
      %v3366 = vmul.f32 %v3207, %v3365
      %v3367 = vsub.f32 1.0, %v3366
      %v3368 = vmul.f32 %v3365, %v3367
      %v3369 = vadd.f32 %v3365, %v3368
      %vm3370 = vweird.f32 %v3207
      %vm3371 = vweird.f32 %v3365
      %vm3372 = vmor %vm3370, %vm3371
      %v3373 = vsel %vm3372, %v3365, %v3369
      %v3374 = vand.u32 2147483647, %v3207
      %vm3375 = vcmp.eq.f32.partialorder %v3374, 8.507059e+37
      %v3376 = vand.u32 %v3207, 2147483648
      %v3377 = vor.u32 1.1754944e-38, %v3376
      %v3378 = vsel %vm3375, %v3377, %v3373
      %v3379 = vmul.f32 1.0, %v3378
      %v3380 = vrcp.pop %v3208
      %v3381 = vmul.f32 %v3208, %v3380
      %v3382 = vsub.f32 1.0, %v3381
      %v3383 = vmul.f32 %v3380, %v3382
      %v3384 = vadd.f32 %v3380, %v3383
      %vm3385 = vweird.f32 %v3208
      %vm3386 = vweird.f32 %v3380
      %vm3387 = vmor %vm3385, %vm3386
      %v3388 = vsel %vm3387, %v3380, %v3384
      %v3389 = vand.u32 2147483647, %v3208
      %vm3390 = vcmp.eq.f32.partialorder %v3389, 8.507059e+37
      %v3391 = vand.u32 %v3208, 2147483648
      %v3392 = vor.u32 1.1754944e-38, %v3391
      %v3393 = vsel %vm3390, %v3392, %v3388
      %v3394 = vmul.f32 1.0, %v3393
      %v3395 = vrcp.pop %v3209
      %v3396 = vmul.f32 %v3209, %v3395
      %v3397 = vsub.f32 1.0, %v3396
      %v3398 = vmul.f32 %v3395, %v3397
      %v3399 = vadd.f32 %v3395, %v3398
      %vm3400 = vweird.f32 %v3209
      %vm3401 = vweird.f32 %v3395
      %vm3402 = vmor %vm3400, %vm3401
      %v3403 = vsel %vm3402, %v3395, %v3399
      %v3404 = vand.u32 2147483647, %v3209
      %vm3405 = vcmp.eq.f32.partialorder %v3404, 8.507059e+37
      %v3406 = vand.u32 %v3209, 2147483648
      %v3407 = vor.u32 1.1754944e-38, %v3406
      %v3408 = vsel %vm3405, %v3407, %v3403
      %v3409 = vmul.f32 1.0, %v3408
      %v3410 = vrcp.pop %v3210
      %v3411 = vmul.f32 %v3210, %v3410
      %v3412 = vsub.f32 1.0, %v3411
      %v3413 = vmul.f32 %v3410, %v3412
      %v3414 = vadd.f32 %v3410, %v3413
      %vm3415 = vweird.f32 %v3210
      %vm3416 = vweird.f32 %v3410
      %vm3417 = vmor %vm3415, %vm3416
      %v3418 = vsel %vm3417, %v3410, %v3414
      %v3419 = vand.u32 2147483647, %v3210
      %vm3420 = vcmp.eq.f32.partialorder %v3419, 8.507059e+37
      %v3421 = vand.u32 %v3210, 2147483648
      %v3422 = vor.u32 1.1754944e-38, %v3421
      %v3423 = vsel %vm3420, %v3422, %v3418
      %v3424 = vmul.f32 1.0, %v3423
      %v3425 = vrcp.pop %v3211
      %v3426 = vmul.f32 %v3211, %v3425
      %v3427 = vsub.f32 1.0, %v3426
      %v3428 = vmul.f32 %v3425, %v3427
      %v3429 = vadd.f32 %v3425, %v3428
      %vm3430 = vweird.f32 %v3211
      %vm3431 = vweird.f32 %v3425
      %vm3432 = vmor %vm3430, %vm3431
      %v3433 = vsel %vm3432, %v3425, %v3429
      %v3434 = vand.u32 2147483647, %v3211
      %vm3435 = vcmp.eq.f32.partialorder %v3434, 8.507059e+37
      %v3436 = vand.u32 %v3211, 2147483648
      %v3437 = vor.u32 1.1754944e-38, %v3436
      %v3438 = vsel %vm3435, %v3437, %v3433
      %v3439 = vmul.f32 1.0, %v3438
      %v3440 = vrcp.pop %v3212
      %v3441 = vmul.f32 %v3212, %v3440
      %v3442 = vsub.f32 1.0, %v3441
      %v3443 = vmul.f32 %v3440, %v3442
      %v3444 = vadd.f32 %v3440, %v3443
      %vm3445 = vweird.f32 %v3212
      %vm3446 = vweird.f32 %v3440
      %vm3447 = vmor %vm3445, %vm3446
      %v3448 = vsel %vm3447, %v3440, %v3444
      %v3449 = vand.u32 2147483647, %v3212
      %vm3450 = vcmp.eq.f32.partialorder %v3449, 8.507059e+37
      %v3451 = vand.u32 %v3212, 2147483648
      %v3452 = vor.u32 1.1754944e-38, %v3451
      %v3453 = vsel %vm3450, %v3452, %v3448
      %v3454 = vmul.f32 1.0, %v3453
      %v3455 = vrcp.pop %v3213
      %v3456 = vmul.f32 %v3213, %v3455
      %v3457 = vsub.f32 1.0, %v3456
      %v3458 = vmul.f32 %v3455, %v3457
      %v3459 = vadd.f32 %v3455, %v3458
      %vm3460 = vweird.f32 %v3213
      %vm3461 = vweird.f32 %v3455
      %vm3462 = vmor %vm3460, %vm3461
      %v3463 = vsel %vm3462, %v3455, %v3459
      %v3464 = vand.u32 2147483647, %v3213
      %vm3465 = vcmp.eq.f32.partialorder %v3464, 8.507059e+37
      %v3466 = vand.u32 %v3213, 2147483648
      %v3467 = vor.u32 1.1754944e-38, %v3466
      %v3468 = vsel %vm3465, %v3467, %v3463
      %v3469 = vmul.f32 1.0, %v3468
      %v3470 = vrcp.pop %v3214
      %v3471 = vmul.f32 %v3214, %v3470
      %v3472 = vsub.f32 1.0, %v3471
      %v3473 = vmul.f32 %v3470, %v3472
      %v3474 = vadd.f32 %v3470, %v3473
      %vm3475 = vweird.f32 %v3214
      %vm3476 = vweird.f32 %v3470
      %vm3477 = vmor %vm3475, %vm3476
      %v3478 = vsel %vm3477, %v3470, %v3474
      %v3479 = vand.u32 2147483647, %v3214
      %vm3480 = vcmp.eq.f32.partialorder %v3479, 8.507059e+37
      %v3481 = vand.u32 %v3214, 2147483648
      %v3482 = vor.u32 1.1754944e-38, %v3481
      %v3483 = vsel %vm3480, %v3482, %v3478
      %v3484 = vmul.f32 1.0, %v3483
      %v3485 = vrcp.pop %v3215
      %v3486 = vmul.f32 %v3215, %v3485
      %v3487 = vsub.f32 1.0, %v3486
      %v3488 = vmul.f32 %v3485, %v3487
      %v3489 = vadd.f32 %v3485, %v3488
      %vm3490 = vweird.f32 %v3215
      %vm3491 = vweird.f32 %v3485
      %vm3492 = vmor %vm3490, %vm3491
      %v3493 = vsel %vm3492, %v3485, %v3489
      %v3494 = vand.u32 2147483647, %v3215
      %vm3495 = vcmp.eq.f32.partialorder %v3494, 8.507059e+37
      %v3496 = vand.u32 %v3215, 2147483648
      %v3497 = vor.u32 1.1754944e-38, %v3496
      %v3498 = vsel %vm3495, %v3497, %v3493
      %v3499 = vmul.f32 1.0, %v3498
      %v3500 = vrcp.pop %v3216
      %v3501 = vmul.f32 %v3216, %v3500
      %v3502 = vsub.f32 1.0, %v3501
      %v3503 = vmul.f32 %v3500, %v3502
      %v3504 = vadd.f32 %v3500, %v3503
      %vm3505 = vweird.f32 %v3216
      %vm3506 = vweird.f32 %v3500
      %vm3507 = vmor %vm3505, %vm3506
      %v3508 = vsel %vm3507, %v3500, %v3504
      %v3509 = vand.u32 2147483647, %v3216
      %vm3510 = vcmp.eq.f32.partialorder %v3509, 8.507059e+37
      %v3511 = vand.u32 %v3216, 2147483648
      %v3512 = vor.u32 1.1754944e-38, %v3511
      %v3513 = vsel %vm3510, %v3512, %v3508
      %v3514 = vmul.f32 1.0, %v3513
      %v3515 = vrcp.pop %v3217
      %v3516 = vmul.f32 %v3217, %v3515
      %v3517 = vsub.f32 1.0, %v3516
      %v3518 = vmul.f32 %v3515, %v3517
      %v3519 = vadd.f32 %v3515, %v3518
      %vm3520 = vweird.f32 %v3217
      %vm3521 = vweird.f32 %v3515
      %vm3522 = vmor %vm3520, %vm3521
      %v3523 = vsel %vm3522, %v3515, %v3519
      %v3524 = vand.u32 2147483647, %v3217
      %vm3525 = vcmp.eq.f32.partialorder %v3524, 8.507059e+37
      %v3526 = vand.u32 %v3217, 2147483648
      %v3527 = vor.u32 1.1754944e-38, %v3526
      %v3528 = vsel %vm3525, %v3527, %v3523
      %v3529 = vmul.f32 1.0, %v3528
      %v3530 = vrcp.pop %v3218
      %v3531 = vmul.f32 %v3218, %v3530
      %v3532 = vsub.f32 1.0, %v3531
      %v3533 = vmul.f32 %v3530, %v3532
      %v3534 = vadd.f32 %v3530, %v3533
      %vm3535 = vweird.f32 %v3218
      %vm3536 = vweird.f32 %v3530
      %vm3537 = vmor %vm3535, %vm3536
      %v3538 = vsel %vm3537, %v3530, %v3534
      %v3539 = vand.u32 2147483647, %v3218
      %vm3540 = vcmp.eq.f32.partialorder %v3539, 8.507059e+37
      %v3541 = vand.u32 %v3218, 2147483648
      %v3542 = vor.u32 1.1754944e-38, %v3541
      %v3543 = vsel %vm3540, %v3542, %v3538
      %v3544 = vmul.f32 1.0, %v3543
      %v3545 = vrcp.pop %v3219
      %v3546 = vmul.f32 %v3219, %v3545
      %v3547 = vsub.f32 1.0, %v3546
      %v3548 = vmul.f32 %v3545, %v3547
      %v3549 = vadd.f32 %v3545, %v3548
      %vm3550 = vweird.f32 %v3219
      %vm3551 = vweird.f32 %v3545
      %vm3552 = vmor %vm3550, %vm3551
      %v3553 = vsel %vm3552, %v3545, %v3549
      %v3554 = vand.u32 2147483647, %v3219
      %vm3555 = vcmp.eq.f32.partialorder %v3554, 8.507059e+37
      %v3556 = vand.u32 %v3219, 2147483648
      %v3557 = vor.u32 1.1754944e-38, %v3556
      %v3558 = vsel %vm3555, %v3557, %v3553
      %v3559 = vmul.f32 1.0, %v3558
      %v3560 = vrcp.pop %v3220
      %v3561 = vmul.f32 %v3220, %v3560
      %v3562 = vsub.f32 1.0, %v3561
      %v3563 = vmul.f32 %v3560, %v3562
      %v3564 = vadd.f32 %v3560, %v3563
      %vm3565 = vweird.f32 %v3220
      %vm3566 = vweird.f32 %v3560
      %vm3567 = vmor %vm3565, %vm3566
      %v3568 = vsel %vm3567, %v3560, %v3564
      %v3569 = vand.u32 2147483647, %v3220
      %vm3570 = vcmp.eq.f32.partialorder %v3569, 8.507059e+37
      %v3571 = vand.u32 %v3220, 2147483648
      %v3572 = vor.u32 1.1754944e-38, %v3571
      %v3573 = vsel %vm3570, %v3572, %v3568
      %v3574 = vmul.f32 1.0, %v3573
      %v3575 = vrcp.pop %v3221
      %v3576 = vmul.f32 %v3221, %v3575
      %v3577 = vsub.f32 1.0, %v3576
      %v3578 = vmul.f32 %v3575, %v3577
      %v3579 = vadd.f32 %v3575, %v3578
      %vm3580 = vweird.f32 %v3221
      %vm3581 = vweird.f32 %v3575
      %vm3582 = vmor %vm3580, %vm3581
      %v3583 = vsel %vm3582, %v3575, %v3579
      %v3584 = vand.u32 2147483647, %v3221
      %vm3585 = vcmp.eq.f32.partialorder %v3584, 8.507059e+37
      %v3586 = vand.u32 %v3221, 2147483648
      %v3587 = vor.u32 1.1754944e-38, %v3586
      %v3588 = vsel %vm3585, %v3587, %v3583
      %v3589 = vmul.f32 1.0, %v3588
      %v3590 = vrcp.pop %v3222
      %v3591 = vmul.f32 %v3222, %v3590
      %v3592 = vsub.f32 1.0, %v3591
      %v3593 = vmul.f32 %v3590, %v3592
      %v3594 = vadd.f32 %v3590, %v3593
      %vm3595 = vweird.f32 %v3222
      %vm3596 = vweird.f32 %v3590
      %vm3597 = vmor %vm3595, %vm3596
      %v3598 = vsel %vm3597, %v3590, %v3594
      %v3599 = vand.u32 2147483647, %v3222
      %vm3600 = vcmp.eq.f32.partialorder %v3599, 8.507059e+37
      %v3601 = vand.u32 %v3222, 2147483648
      %v3602 = vor.u32 1.1754944e-38, %v3601
      %v3603 = vsel %vm3600, %v3602, %v3598
      %v3604 = vmul.f32 1.0, %v3603
      %v3605 = vrcp.pop %v3223
      %v3606 = vmul.f32 %v3223, %v3605
      %v3607 = vsub.f32 1.0, %v3606
      %v3608 = vmul.f32 %v3605, %v3607
      %v3609 = vadd.f32 %v3605, %v3608
      %vm3610 = vweird.f32 %v3223
      %vm3611 = vweird.f32 %v3605
      %vm3612 = vmor %vm3610, %vm3611
      %v3613 = vsel %vm3612, %v3605, %v3609
      %v3614 = vand.u32 2147483647, %v3223
      %vm3615 = vcmp.eq.f32.partialorder %v3614, 8.507059e+37
      %v3616 = vand.u32 %v3223, 2147483648
      %v3617 = vor.u32 1.1754944e-38, %v3616
      %v3618 = vsel %vm3615, %v3617, %v3613
      %v3619 = vmul.f32 1.0, %v3618
      %v3620 = vrcp.pop %v3224
      %v3621 = vmul.f32 %v3224, %v3620
      %v3622 = vsub.f32 1.0, %v3621
      %v3623 = vmul.f32 %v3620, %v3622
      %v3624 = vadd.f32 %v3620, %v3623
      %vm3625 = vweird.f32 %v3224
      %vm3626 = vweird.f32 %v3620
      %vm3627 = vmor %vm3625, %vm3626
      %v3628 = vsel %vm3627, %v3620, %v3624
      %v3629 = vand.u32 2147483647, %v3224
      %vm3630 = vcmp.eq.f32.partialorder %v3629, 8.507059e+37
      %v3631 = vand.u32 %v3224, 2147483648
      %v3632 = vor.u32 1.1754944e-38, %v3631
      %v3633 = vsel %vm3630, %v3632, %v3628
      %v3634 = vmul.f32 1.0, %v3633
      %v3635 = vrcp.pop %v3225
      %v3636 = vmul.f32 %v3225, %v3635
      %v3637 = vsub.f32 1.0, %v3636
      %v3638 = vmul.f32 %v3635, %v3637
      %v3639 = vadd.f32 %v3635, %v3638
      %vm3640 = vweird.f32 %v3225
      %vm3641 = vweird.f32 %v3635
      %vm3642 = vmor %vm3640, %vm3641
      %v3643 = vsel %vm3642, %v3635, %v3639
      %v3644 = vand.u32 2147483647, %v3225
      %vm3645 = vcmp.eq.f32.partialorder %v3644, 8.507059e+37
      %v3646 = vand.u32 %v3225, 2147483648
      %v3647 = vor.u32 1.1754944e-38, %v3646
      %v3648 = vsel %vm3645, %v3647, %v3643
      %v3649 = vmul.f32 1.0, %v3648
      %v3650 = vrcp.pop %v3226
      %v3651 = vmul.f32 %v3226, %v3650
      %v3652 = vsub.f32 1.0, %v3651
      %v3653 = vmul.f32 %v3650, %v3652
      %v3654 = vadd.f32 %v3650, %v3653
      %vm3655 = vweird.f32 %v3226
      %vm3656 = vweird.f32 %v3650
      %vm3657 = vmor %vm3655, %vm3656
      %v3658 = vsel %vm3657, %v3650, %v3654
      %v3659 = vand.u32 2147483647, %v3226
      %vm3660 = vcmp.eq.f32.partialorder %v3659, 8.507059e+37
      %v3661 = vand.u32 %v3226, 2147483648
      %v3662 = vor.u32 1.1754944e-38, %v3661
      %v3663 = vsel %vm3660, %v3662, %v3658
      %v3664 = vmul.f32 1.0, %v3663
      %v3665 = vrcp.pop %v3227
      %v3666 = vmul.f32 %v3227, %v3665
      %v3667 = vsub.f32 1.0, %v3666
      %v3668 = vmul.f32 %v3665, %v3667
      %v3669 = vadd.f32 %v3665, %v3668
      %vm3670 = vweird.f32 %v3227
      %vm3671 = vweird.f32 %v3665
      %vm3672 = vmor %vm3670, %vm3671
      %v3673 = vsel %vm3672, %v3665, %v3669
      %v3674 = vand.u32 2147483647, %v3227
      %vm3675 = vcmp.eq.f32.partialorder %v3674, 8.507059e+37
      %v3676 = vand.u32 %v3227, 2147483648
      %v3677 = vor.u32 1.1754944e-38, %v3676
      %v3678 = vsel %vm3675, %v3677, %v3673
      %v3679 = vmul.f32 1.0, %v3678
      %v3680 = vrcp.pop %v3228
      %v3681 = vmul.f32 %v3228, %v3680
      %v3682 = vsub.f32 1.0, %v3681
      %v3683 = vmul.f32 %v3680, %v3682
      %v3684 = vadd.f32 %v3680, %v3683
      %vm3685 = vweird.f32 %v3228
      %vm3686 = vweird.f32 %v3680
      %vm3687 = vmor %vm3685, %vm3686
      %v3688 = vsel %vm3687, %v3680, %v3684
      %v3689 = vand.u32 2147483647, %v3228
      %vm3690 = vcmp.eq.f32.partialorder %v3689, 8.507059e+37
      %v3691 = vand.u32 %v3228, 2147483648
      %v3692 = vor.u32 1.1754944e-38, %v3691
      %v3693 = vsel %vm3690, %v3692, %v3688
      %v3694 = vmul.f32 1.0, %v3693
      %v3695 = vrcp.pop %v3229
      %v3696 = vmul.f32 %v3229, %v3695
      %v3697 = vsub.f32 1.0, %v3696
      %v3698 = vmul.f32 %v3695, %v3697
      %v3699 = vadd.f32 %v3695, %v3698
      %vm3700 = vweird.f32 %v3229
      %vm3701 = vweird.f32 %v3695
      %vm3702 = vmor %vm3700, %vm3701
      %v3703 = vsel %vm3702, %v3695, %v3699
      %v3704 = vand.u32 2147483647, %v3229
      %vm3705 = vcmp.eq.f32.partialorder %v3704, 8.507059e+37
      %v3706 = vand.u32 %v3229, 2147483648
      %v3707 = vor.u32 1.1754944e-38, %v3706
      %v3708 = vsel %vm3705, %v3707, %v3703
      %v3709 = vmul.f32 1.0, %v3708
      %v3710 = vmul.f32 %v3070, %v3244
      %v3711 = vmul.f32 %v3071, %v3259
      %v3712 = vmul.f32 %v3072, %v3274
      %v3713 = vmul.f32 %v3073, %v3289
      %v3714 = vmul.f32 %v3074, %v3304
      %v3715 = vmul.f32 %v3075, %v3319
      %v3716 = vmul.f32 %v3076, %v3334
      %v3717 = vmul.f32 %v3077, %v3349
      %v3718 = vmul.f32 %v3078, %v3364
      %v3719 = vmul.f32 %v3079, %v3379
      %v3720 = vmul.f32 %v3080, %v3394
      %v3721 = vmul.f32 %v3081, %v3409
      %v3722 = vmul.f32 %v3082, %v3424
      %v3723 = vmul.f32 %v3083, %v3439
      %v3724 = vmul.f32 %v3084, %v3454
      %v3725 = vmul.f32 %v3085, %v3469
      %v3726 = vmul.f32 %v3086, %v3484
      %v3727 = vmul.f32 %v3087, %v3499
      %v3728 = vmul.f32 %v3088, %v3514
      %v3729 = vmul.f32 %v3089, %v3529
      %v3730 = vmul.f32 %v3090, %v3544
      %v3731 = vmul.f32 %v3091, %v3559
      %v3732 = vmul.f32 %v3092, %v3574
      %v3733 = vmul.f32 %v3093, %v3589
      %v3734 = vmul.f32 %v3094, %v3604
      %v3735 = vmul.f32 %v3095, %v3619
      %v3736 = vmul.f32 %v3096, %v3634
      %v3737 = vmul.f32 %v3097, %v3649
      %v3738 = vmul.f32 %v3098, %v3664
      %v3739 = vmul.f32 %v3099, %v3679
      %v3740 = vmul.f32 %v3100, %v3694
      %v3741 = vmul.f32 %v3101, %v3709
      %vm3742 = vcmask 130048
      %3743 = vst.msk [vmem:[#allocation3] sm:$0xff] %vm3742, 0.0
      %3744 = vst.msk [vmem:[#allocation3 + $0x8] sm:$0xff] %vm3742, 0.0
      %vm3745 = vcmask 123904
      %3746 = vst.msk [vmem:[#allocation3 + $0x10] sm:$0x3] %vm3745, 0.0
      %3747 = vst.msk [vmem:[#allocation3 + $0x18] sm:$0xff] %vm3742, 0.0
      %3748 = vst.msk [vmem:[#allocation3 + $0x20] sm:$0xff] %vm3742, 0.0
      %3749 = vst.msk [vmem:[#allocation3 + $0x28] sm:$0x3] %vm3745, 0.0
      %3750 = vst.msk [vmem:[#allocation3 + $0x30] sm:$0xff] %vm3742, 0.0
      %3751 = vst.msk [vmem:[#allocation3 + $0x38] sm:$0xff] %vm3742, 0.0
      %3752 = vst.msk [vmem:[#allocation3 + $0x40] sm:$0x3] %vm3745, 0.0
      %3753 = vst.msk [vmem:[#allocation3 + $0x48] sm:$0xff] %vm3742, 0.0
      %3754 = vst.msk [vmem:[#allocation3 + $0x50] sm:$0xff] %vm3742, 0.0
      %3755 = vst.msk [vmem:[#allocation3 + $0x58] sm:$0x3] %vm3745, 0.0
      %3756 = vst.msk [vmem:[#allocation3 + $0x60] sm:$0xff] %vm3742, 0.0
      %3757 = vst.msk [vmem:[#allocation3 + $0x68] sm:$0xff] %vm3742, 0.0
      %3758 = vst.msk [vmem:[#allocation3 + $0x70] sm:$0x3] %vm3745, 0.0
      %3759 = vst.msk [vmem:[#allocation3 + $0x78] sm:$0xff] %vm3742, 0.0
      %3760 = vst.msk [vmem:[#allocation3 + $0x80] sm:$0xff] %vm3742, 0.0
      %3761 = vst.msk [vmem:[#allocation3 + $0x88] sm:$0x3] %vm3745, 0.0
      %3762 = vst.msk [vmem:[#allocation3 + $0x90] sm:$0xff] %vm3742, 0.0
      %3763 = vst.msk [vmem:[#allocation3 + $0x98] sm:$0xff] %vm3742, 0.0
      %3764 = vst.msk [vmem:[#allocation3 + $0xa0] sm:$0x3] %vm3745, 0.0
      %3765 = vst.msk [vmem:[#allocation3 + $0xa8] sm:$0xff] %vm3742, 0.0
      %3766 = vst.msk [vmem:[#allocation3 + $0xb0] sm:$0xff] %vm3742, 0.0
      %3767 = vst.msk [vmem:[#allocation3 + $0xb8] sm:$0x3] %vm3745, 0.0
      %3768 = vst.msk [vmem:[#allocation3 + $0xc0] sm:$0xff] %vm3742, 0.0
      %3769 = vst.msk [vmem:[#allocation3 + $0xc8] sm:$0xff] %vm3742, 0.0
      %3770 = vst.msk [vmem:[#allocation3 + $0xd0] sm:$0x3] %vm3745, 0.0
      %3771 = vst.msk [vmem:[#allocation3 + $0xd8] sm:$0xff] %vm3742, 0.0
      %3772 = vst.msk [vmem:[#allocation3 + $0xe0] sm:$0xff] %vm3742, 0.0
      %3773 = vst.msk [vmem:[#allocation3 + $0xe8] sm:$0x3] %vm3745, 0.0
      %3774 = vst.msk [vmem:[#allocation3 + $0xf0] sm:$0xff] %vm3742, 0.0
      %3775 = vst.msk [vmem:[#allocation3 + $0xf8] sm:$0xff] %vm3742, 0.0
      %3776 = vst.msk [vmem:[#allocation3 + $0x100] sm:$0x3] %vm3745, 0.0
      %3777 = vst.msk [vmem:[#allocation3 + $0x108] sm:$0xff] %vm3742, 0.0
      %3778 = vst.msk [vmem:[#allocation3 + $0x110] sm:$0xff] %vm3742, 0.0
      %3779 = vst.msk [vmem:[#allocation3 + $0x118] sm:$0x3] %vm3745, 0.0
      %3780 = vst.msk [vmem:[#allocation3 + $0x120] sm:$0xff] %vm3742, 0.0
      %3781 = vst.msk [vmem:[#allocation3 + $0x128] sm:$0xff] %vm3742, 0.0
      %3782 = vst.msk [vmem:[#allocation3 + $0x130] sm:$0x3] %vm3745, 0.0
      %3783 = vst.msk [vmem:[#allocation3 + $0x138] sm:$0xff] %vm3742, 0.0
      %3784 = vst.msk [vmem:[#allocation3 + $0x140] sm:$0xff] %vm3742, 0.0
      %3785 = vst.msk [vmem:[#allocation3 + $0x148] sm:$0x3] %vm3745, 0.0
      %3786 = vst.msk [vmem:[#allocation3 + $0x150] sm:$0xff] %vm3742, 0.0
      %3787 = vst.msk [vmem:[#allocation3 + $0x158] sm:$0xff] %vm3742, 0.0
      %3788 = vst.msk [vmem:[#allocation3 + $0x160] sm:$0x3] %vm3745, 0.0
      %3789 = vst.msk [vmem:[#allocation3 + $0x168] sm:$0xff] %vm3742, 0.0
      %3790 = vst.msk [vmem:[#allocation3 + $0x170] sm:$0xff] %vm3742, 0.0
      %3791 = vst.msk [vmem:[#allocation3 + $0x178] sm:$0x3] %vm3745, 0.0
      %3792 = vst.msk [vmem:[#allocation3 + $0x180] sm:$0xff] %vm3742, 0.0
      %3793 = vst.msk [vmem:[#allocation3 + $0x188] sm:$0xff] %vm3742, 0.0
      %3794 = vst.msk [vmem:[#allocation3 + $0x190] sm:$0x3] %vm3745, 0.0
      %3795 = vst.msk [vmem:[#allocation3 + $0x198] sm:$0xff] %vm3742, 0.0
      %3796 = vst.msk [vmem:[#allocation3 + $0x1a0] sm:$0xff] %vm3742, 0.0
      %3797 = vst.msk [vmem:[#allocation3 + $0x1a8] sm:$0x3] %vm3745, 0.0
      %s3798 = scalar_lea.vmem [#allocation3], 24
      %3799 = vst.msk [vmem:[%s3798 + $0x1] sm:$0xff] %vm3742, %v3710
      %3800 = vst.msk [vmem:[%s3798 + $0x9] sm:$0xff] %vm3742, %v3711
      %3801 = vst.msk [vmem:[%s3798 + $0x19] sm:$0xff] %vm3742, %v3712
      %3802 = vst.msk [vmem:[%s3798 + $0x21] sm:$0xff] %vm3742, %v3713
      %3803 = vst.msk [vmem:[%s3798 + $0x31] sm:$0xff] %vm3742, %v3714
      %3804 = vst.msk [vmem:[%s3798 + $0x39] sm:$0xff] %vm3742, %v3715
      %3805 = vst.msk [vmem:[%s3798 + $0x49] sm:$0xff] %vm3742, %v3716
      %3806 = vst.msk [vmem:[%s3798 + $0x51] sm:$0xff] %vm3742, %v3717
      %3807 = vst.msk [vmem:[%s3798 + $0x61] sm:$0xff] %vm3742, %v3718
      %3808 = vst.msk [vmem:[%s3798 + $0x69] sm:$0xff] %vm3742, %v3719
      %3809 = vst.msk [vmem:[%s3798 + $0x79] sm:$0xff] %vm3742, %v3720
      %3810 = vst.msk [vmem:[%s3798 + $0x81] sm:$0xff] %vm3742, %v3721
      %3811 = vst.msk [vmem:[%s3798 + $0x91] sm:$0xff] %vm3742, %v3722
      %3812 = vst.msk [vmem:[%s3798 + $0x99] sm:$0xff] %vm3742, %v3723
      %3813 = vst.msk [vmem:[%s3798 + $0xa9] sm:$0xff] %vm3742, %v3724
      %3814 = vst.msk [vmem:[%s3798 + $0xb1] sm:$0xff] %vm3742, %v3725
      %3815 = vst.msk [vmem:[%s3798 + $0xc1] sm:$0xff] %vm3742, %v3726
      %3816 = vst.msk [vmem:[%s3798 + $0xc9] sm:$0xff] %vm3742, %v3727
      %3817 = vst.msk [vmem:[%s3798 + $0xd9] sm:$0xff] %vm3742, %v3728
      %3818 = vst.msk [vmem:[%s3798 + $0xe1] sm:$0xff] %vm3742, %v3729
      %3819 = vst.msk [vmem:[%s3798 + $0xf1] sm:$0xff] %vm3742, %v3730
      %3820 = vst.msk [vmem:[%s3798 + $0xf9] sm:$0xff] %vm3742, %v3731
      %3821 = vst.msk [vmem:[%s3798 + $0x109] sm:$0xff] %vm3742, %v3732
      %3822 = vst.msk [vmem:[%s3798 + $0x111] sm:$0xff] %vm3742, %v3733
      %3823 = vst.msk [vmem:[%s3798 + $0x121] sm:$0xff] %vm3742, %v3734
      %3824 = vst.msk [vmem:[%s3798 + $0x129] sm:$0xff] %vm3742, %v3735
      %3825 = vst.msk [vmem:[%s3798 + $0x139] sm:$0xff] %vm3742, %v3736
      %3826 = vst.msk [vmem:[%s3798 + $0x141] sm:$0xff] %vm3742, %v3737
      %3827 = vst.msk [vmem:[%s3798 + $0x151] sm:$0xff] %vm3742, %v3738
      %3828 = vst.msk [vmem:[%s3798 + $0x159] sm:$0xff] %vm3742, %v3739
      %3829 = vst.msk [vmem:[%s3798 + $0x169] sm:$0xff] %vm3742, %v3740
      %3830 = vst.msk [vmem:[%s3798 + $0x171] sm:$0xff] %vm3742, %v3741
      %v3831 = vld [vmem:[#allocation3] sm:$0xff]
      %v3832 = vld [vmem:[#allocation3 + $0x8] sm:$0xff]
      %v3833 = vld [vmem:[#allocation3 + $0x18] sm:$0xff]
      %v3834 = vld [vmem:[#allocation3 + $0x20] sm:$0xff]
      %v3835 = vld [vmem:[#allocation3 + $0x30] sm:$0xff]
      %v3836 = vld [vmem:[#allocation3 + $0x38] sm:$0xff]
      %v3837 = vld [vmem:[#allocation3 + $0x48] sm:$0xff]
      %v3838 = vld [vmem:[#allocation3 + $0x50] sm:$0xff]
      %v3839 = vld [vmem:[#allocation3 + $0x60] sm:$0xff]
      %v3840 = vld [vmem:[#allocation3 + $0x68] sm:$0xff]
      %v3841 = vld [vmem:[#allocation3 + $0x78] sm:$0xff]
      %v3842 = vld [vmem:[#allocation3 + $0x80] sm:$0xff]
      %v3843 = vld [vmem:[#allocation3 + $0x90] sm:$0xff]
      %v3844 = vld [vmem:[#allocation3 + $0x98] sm:$0xff]
      %v3845 = vld [vmem:[#allocation3 + $0xa8] sm:$0xff]
      %v3846 = vld [vmem:[#allocation3 + $0xb0] sm:$0xff]
      %v3847 = vld [vmem:[#allocation3 + $0xc0] sm:$0xff]
      %v3848 = vld [vmem:[#allocation3 + $0xc8] sm:$0xff]
      %v3849 = vld [vmem:[#allocation3 + $0xd8] sm:$0xff]
      %v3850 = vld [vmem:[#allocation3 + $0xe0] sm:$0xff]
      %v3851 = vld [vmem:[#allocation3 + $0xf0] sm:$0xff]
      %v3852 = vld [vmem:[#allocation3 + $0xf8] sm:$0xff]
      %v3853 = vld [vmem:[#allocation3 + $0x108] sm:$0xff]
      %v3854 = vld [vmem:[#allocation3 + $0x110] sm:$0xff]
      %v3855 = vld [vmem:[#allocation3 + $0x120] sm:$0xff]
      %v3856 = vld [vmem:[#allocation3 + $0x128] sm:$0xff]
      %v3857 = vld [vmem:[#allocation3 + $0x138] sm:$0xff]
      %v3858 = vld [vmem:[#allocation3 + $0x140] sm:$0xff]
      %v3859 = vld [vmem:[#allocation3 + $0x150] sm:$0xff]
      %v3860 = vld [vmem:[#allocation3 + $0x158] sm:$0xff]
      %v3861 = vld [vmem:[#allocation3 + $0x168] sm:$0xff]
      %v3862 = vld [vmem:[#allocation3 + $0x170] sm:$0xff]
      %v3863 = vld [vmem:[%s4] sm:$0x1]
      %v3864 = vperm.slane %v3863, 0
      %v3865 = vmul.f32 %v3831, %v3864
      %v3866 = vmul.f32 %v3832, %v3864
      %v3867 = vmul.f32 %v3833, %v3864
      %v3868 = vmul.f32 %v3834, %v3864
      %v3869 = vmul.f32 %v3835, %v3864
      %v3870 = vmul.f32 %v3836, %v3864
      %v3871 = vmul.f32 %v3837, %v3864
      %v3872 = vmul.f32 %v3838, %v3864
      %v3873 = vmul.f32 %v3839, %v3864
      %v3874 = vmul.f32 %v3840, %v3864
      %v3875 = vmul.f32 %v3841, %v3864
      %v3876 = vmul.f32 %v3842, %v3864
      %v3877 = vmul.f32 %v3843, %v3864
      %v3878 = vmul.f32 %v3844, %v3864
      %v3879 = vmul.f32 %v3845, %v3864
      %v3880 = vmul.f32 %v3846, %v3864
      %v3881 = vmul.f32 %v3847, %v3864
      %v3882 = vmul.f32 %v3848, %v3864
      %v3883 = vmul.f32 %v3849, %v3864
      %v3884 = vmul.f32 %v3850, %v3864
      %v3885 = vmul.f32 %v3851, %v3864
      %v3886 = vmul.f32 %v3852, %v3864
      %v3887 = vmul.f32 %v3853, %v3864
      %v3888 = vmul.f32 %v3854, %v3864
      %v3889 = vmul.f32 %v3855, %v3864
      %v3890 = vmul.f32 %v3856, %v3864
      %v3891 = vmul.f32 %v3857, %v3864
      %v3892 = vmul.f32 %v3858, %v3864
      %v3893 = vmul.f32 %v3859, %v3864
      %v3894 = vmul.f32 %v3860, %v3864
      %v3895 = vmul.f32 %v3861, %v3864
      %v3896 = vmul.f32 %v3862, %v3864
      %v3897 = vadd.f32 %v3865, 0.0
      %v3898 = vadd.f32 %v3866, 0.0
      %v3899 = vadd.f32 %v3867, 0.0
      %v3900 = vadd.f32 %v3868, 0.0
      %v3901 = vadd.f32 %v3869, 0.0
      %v3902 = vadd.f32 %v3870, 0.0
      %v3903 = vadd.f32 %v3871, 0.0
      %v3904 = vadd.f32 %v3872, 0.0
      %v3905 = vadd.f32 %v3873, 0.0
      %v3906 = vadd.f32 %v3874, 0.0
      %v3907 = vadd.f32 %v3875, 0.0
      %v3908 = vadd.f32 %v3876, 0.0
      %v3909 = vadd.f32 %v3877, 0.0
      %v3910 = vadd.f32 %v3878, 0.0
      %v3911 = vadd.f32 %v3879, 0.0
      %v3912 = vadd.f32 %v3880, 0.0
      %v3913 = vadd.f32 %v3881, 0.0
      %v3914 = vadd.f32 %v3882, 0.0
      %v3915 = vadd.f32 %v3883, 0.0
      %v3916 = vadd.f32 %v3884, 0.0
      %v3917 = vadd.f32 %v3885, 0.0
      %v3918 = vadd.f32 %v3886, 0.0
      %v3919 = vadd.f32 %v3887, 0.0
      %v3920 = vadd.f32 %v3888, 0.0
      %v3921 = vadd.f32 %v3889, 0.0
      %v3922 = vadd.f32 %v3890, 0.0
      %v3923 = vadd.f32 %v3891, 0.0
      %v3924 = vadd.f32 %v3892, 0.0
      %v3925 = vadd.f32 %v3893, 0.0
      %v3926 = vadd.f32 %v3894, 0.0
      %v3927 = vadd.f32 %v3895, 0.0
      %v3928 = vadd.f32 %v3896, 0.0
      %v3929 = vld [vmem:[#allocation3 + $0x1] sm:$0xff]
      %v3930 = vld [vmem:[#allocation3 + $0x9] sm:$0xff]
      %v3931 = vld [vmem:[#allocation3 + $0x19] sm:$0xff]
      %v3932 = vld [vmem:[#allocation3 + $0x21] sm:$0xff]
      %v3933 = vld [vmem:[#allocation3 + $0x31] sm:$0xff]
      %v3934 = vld [vmem:[#allocation3 + $0x39] sm:$0xff]
      %v3935 = vld [vmem:[#allocation3 + $0x49] sm:$0xff]
      %v3936 = vld [vmem:[#allocation3 + $0x51] sm:$0xff]
      %v3937 = vld [vmem:[#allocation3 + $0x61] sm:$0xff]
      %v3938 = vld [vmem:[#allocation3 + $0x69] sm:$0xff]
      %v3939 = vld [vmem:[#allocation3 + $0x79] sm:$0xff]
      %v3940 = vld [vmem:[#allocation3 + $0x81] sm:$0xff]
      %v3941 = vld [vmem:[#allocation3 + $0x91] sm:$0xff]
      %v3942 = vld [vmem:[#allocation3 + $0x99] sm:$0xff]
      %v3943 = vld [vmem:[#allocation3 + $0xa9] sm:$0xff]
      %v3944 = vld [vmem:[#allocation3 + $0xb1] sm:$0xff]
      %v3945 = vld [vmem:[#allocation3 + $0xc1] sm:$0xff]
      %v3946 = vld [vmem:[#allocation3 + $0xc9] sm:$0xff]
      %v3947 = vld [vmem:[#allocation3 + $0xd9] sm:$0xff]
      %v3948 = vld [vmem:[#allocation3 + $0xe1] sm:$0xff]
      %v3949 = vld [vmem:[#allocation3 + $0xf1] sm:$0xff]
      %v3950 = vld [vmem:[#allocation3 + $0xf9] sm:$0xff]
      %v3951 = vld [vmem:[#allocation3 + $0x109] sm:$0xff]
      %v3952 = vld [vmem:[#allocation3 + $0x111] sm:$0xff]
      %v3953 = vld [vmem:[#allocation3 + $0x121] sm:$0xff]
      %v3954 = vld [vmem:[#allocation3 + $0x129] sm:$0xff]
      %v3955 = vld [vmem:[#allocation3 + $0x139] sm:$0xff]
      %v3956 = vld [vmem:[#allocation3 + $0x141] sm:$0xff]
      %v3957 = vld [vmem:[#allocation3 + $0x151] sm:$0xff]
      %v3958 = vld [vmem:[#allocation3 + $0x159] sm:$0xff]
      %v3959 = vld [vmem:[#allocation3 + $0x169] sm:$0xff]
      %v3960 = vld [vmem:[#allocation3 + $0x171] sm:$0xff]
      %v3961 = vld [vmem:[%s4 + $0x1] sm:$0x1]
      %v3962 = vperm.slane %v3961, 0
      %v3963 = vmul.f32 %v3929, %v3962
      %v3964 = vmul.f32 %v3930, %v3962
      %v3965 = vmul.f32 %v3931, %v3962
      %v3966 = vmul.f32 %v3932, %v3962
      %v3967 = vmul.f32 %v3933, %v3962
      %v3968 = vmul.f32 %v3934, %v3962
      %v3969 = vmul.f32 %v3935, %v3962
      %v3970 = vmul.f32 %v3936, %v3962
      %v3971 = vmul.f32 %v3937, %v3962
      %v3972 = vmul.f32 %v3938, %v3962
      %v3973 = vmul.f32 %v3939, %v3962
      %v3974 = vmul.f32 %v3940, %v3962
      %v3975 = vmul.f32 %v3941, %v3962
      %v3976 = vmul.f32 %v3942, %v3962
      %v3977 = vmul.f32 %v3943, %v3962
      %v3978 = vmul.f32 %v3944, %v3962
      %v3979 = vmul.f32 %v3945, %v3962
      %v3980 = vmul.f32 %v3946, %v3962
      %v3981 = vmul.f32 %v3947, %v3962
      %v3982 = vmul.f32 %v3948, %v3962
      %v3983 = vmul.f32 %v3949, %v3962
      %v3984 = vmul.f32 %v3950, %v3962
      %v3985 = vmul.f32 %v3951, %v3962
      %v3986 = vmul.f32 %v3952, %v3962
      %v3987 = vmul.f32 %v3953, %v3962
      %v3988 = vmul.f32 %v3954, %v3962
      %v3989 = vmul.f32 %v3955, %v3962
      %v3990 = vmul.f32 %v3956, %v3962
      %v3991 = vmul.f32 %v3957, %v3962
      %v3992 = vmul.f32 %v3958, %v3962
      %v3993 = vmul.f32 %v3959, %v3962
      %v3994 = vmul.f32 %v3960, %v3962
      %v3995 = vadd.f32 %v3897, %v3963
      %v3996 = vadd.f32 %v3898, %v3964
      %v3997 = vadd.f32 %v3899, %v3965
      %v3998 = vadd.f32 %v3900, %v3966
      %v3999 = vadd.f32 %v3901, %v3967
      %v4000 = vadd.f32 %v3902, %v3968
      %v4001 = vadd.f32 %v3903, %v3969
      %v4002 = vadd.f32 %v3904, %v3970
      %v4003 = vadd.f32 %v3905, %v3971
      %v4004 = vadd.f32 %v3906, %v3972
      %v4005 = vadd.f32 %v3907, %v3973
      %v4006 = vadd.f32 %v3908, %v3974
      %v4007 = vadd.f32 %v3909, %v3975
      %v4008 = vadd.f32 %v3910, %v3976
      %v4009 = vadd.f32 %v3911, %v3977
      %v4010 = vadd.f32 %v3912, %v3978
      %v4011 = vadd.f32 %v3913, %v3979
      %v4012 = vadd.f32 %v3914, %v3980
      %v4013 = vadd.f32 %v3915, %v3981
      %v4014 = vadd.f32 %v3916, %v3982
      %v4015 = vadd.f32 %v3917, %v3983
      %v4016 = vadd.f32 %v3918, %v3984
      %v4017 = vadd.f32 %v3919, %v3985
      %v4018 = vadd.f32 %v3920, %v3986
      %v4019 = vadd.f32 %v3921, %v3987
      %v4020 = vadd.f32 %v3922, %v3988
      %v4021 = vadd.f32 %v3923, %v3989
      %v4022 = vadd.f32 %v3924, %v3990
      %v4023 = vadd.f32 %v3925, %v3991
      %v4024 = vadd.f32 %v3926, %v3992
      %v4025 = vadd.f32 %v3927, %v3993
      %v4026 = vadd.f32 %v3928, %v3994
      %v4027 = vld [vmem:[#allocation3 + $0x2] sm:$0xff]
      %v4028 = vld [vmem:[#allocation3 + $0xa] sm:$0xff]
      %v4029 = vld [vmem:[#allocation3 + $0x1a] sm:$0xff]
      %v4030 = vld [vmem:[#allocation3 + $0x22] sm:$0xff]
      %v4031 = vld [vmem:[#allocation3 + $0x32] sm:$0xff]
      %v4032 = vld [vmem:[#allocation3 + $0x3a] sm:$0xff]
      %v4033 = vld [vmem:[#allocation3 + $0x4a] sm:$0xff]
      %v4034 = vld [vmem:[#allocation3 + $0x52] sm:$0xff]
      %v4035 = vld [vmem:[#allocation3 + $0x62] sm:$0xff]
      %v4036 = vld [vmem:[#allocation3 + $0x6a] sm:$0xff]
      %v4037 = vld [vmem:[#allocation3 + $0x7a] sm:$0xff]
      %v4038 = vld [vmem:[#allocation3 + $0x82] sm:$0xff]
      %v4039 = vld [vmem:[#allocation3 + $0x92] sm:$0xff]
      %v4040 = vld [vmem:[#allocation3 + $0x9a] sm:$0xff]
      %v4041 = vld [vmem:[#allocation3 + $0xaa] sm:$0xff]
      %v4042 = vld [vmem:[#allocation3 + $0xb2] sm:$0xff]
      %v4043 = vld [vmem:[#allocation3 + $0xc2] sm:$0xff]
      %v4044 = vld [vmem:[#allocation3 + $0xca] sm:$0xff]
      %v4045 = vld [vmem:[#allocation3 + $0xda] sm:$0xff]
      %v4046 = vld [vmem:[#allocation3 + $0xe2] sm:$0xff]
      %v4047 = vld [vmem:[#allocation3 + $0xf2] sm:$0xff]
      %v4048 = vld [vmem:[#allocation3 + $0xfa] sm:$0xff]
      %v4049 = vld [vmem:[#allocation3 + $0x10a] sm:$0xff]
      %v4050 = vld [vmem:[#allocation3 + $0x112] sm:$0xff]
      %v4051 = vld [vmem:[#allocation3 + $0x122] sm:$0xff]
      %v4052 = vld [vmem:[#allocation3 + $0x12a] sm:$0xff]
      %v4053 = vld [vmem:[#allocation3 + $0x13a] sm:$0xff]
      %v4054 = vld [vmem:[#allocation3 + $0x142] sm:$0xff]
      %v4055 = vld [vmem:[#allocation3 + $0x152] sm:$0xff]
      %v4056 = vld [vmem:[#allocation3 + $0x15a] sm:$0xff]
      %v4057 = vld [vmem:[#allocation3 + $0x16a] sm:$0xff]
      %v4058 = vld [vmem:[#allocation3 + $0x172] sm:$0xff]
      %v4059 = vld [vmem:[%s4 + $0x2] sm:$0x1]
      %v4060 = vperm.slane %v4059, 0
      %v4061 = vmul.f32 %v4027, %v4060
      %v4062 = vmul.f32 %v4028, %v4060
      %v4063 = vmul.f32 %v4029, %v4060
      %v4064 = vmul.f32 %v4030, %v4060
      %v4065 = vmul.f32 %v4031, %v4060
      %v4066 = vmul.f32 %v4032, %v4060
      %v4067 = vmul.f32 %v4033, %v4060
      %v4068 = vmul.f32 %v4034, %v4060
      %v4069 = vmul.f32 %v4035, %v4060
      %v4070 = vmul.f32 %v4036, %v4060
      %v4071 = vmul.f32 %v4037, %v4060
      %v4072 = vmul.f32 %v4038, %v4060
      %v4073 = vmul.f32 %v4039, %v4060
      %v4074 = vmul.f32 %v4040, %v4060
      %v4075 = vmul.f32 %v4041, %v4060
      %v4076 = vmul.f32 %v4042, %v4060
      %v4077 = vmul.f32 %v4043, %v4060
      %v4078 = vmul.f32 %v4044, %v4060
      %v4079 = vmul.f32 %v4045, %v4060
      %v4080 = vmul.f32 %v4046, %v4060
      %v4081 = vmul.f32 %v4047, %v4060
      %v4082 = vmul.f32 %v4048, %v4060
      %v4083 = vmul.f32 %v4049, %v4060
      %v4084 = vmul.f32 %v4050, %v4060
      %v4085 = vmul.f32 %v4051, %v4060
      %v4086 = vmul.f32 %v4052, %v4060
      %v4087 = vmul.f32 %v4053, %v4060
      %v4088 = vmul.f32 %v4054, %v4060
      %v4089 = vmul.f32 %v4055, %v4060
      %v4090 = vmul.f32 %v4056, %v4060
      %v4091 = vmul.f32 %v4057, %v4060
      %v4092 = vmul.f32 %v4058, %v4060
      %v4093 = vadd.f32 %v3995, %v4061
      %v4094 = vadd.f32 %v3996, %v4062
      %v4095 = vadd.f32 %v3997, %v4063
      %v4096 = vadd.f32 %v3998, %v4064
      %v4097 = vadd.f32 %v3999, %v4065
      %v4098 = vadd.f32 %v4000, %v4066
      %v4099 = vadd.f32 %v4001, %v4067
      %v4100 = vadd.f32 %v4002, %v4068
      %v4101 = vadd.f32 %v4003, %v4069
      %v4102 = vadd.f32 %v4004, %v4070
      %v4103 = vadd.f32 %v4005, %v4071
      %v4104 = vadd.f32 %v4006, %v4072
      %v4105 = vadd.f32 %v4007, %v4073
      %v4106 = vadd.f32 %v4008, %v4074
      %v4107 = vadd.f32 %v4009, %v4075
      %v4108 = vadd.f32 %v4010, %v4076
      %v4109 = vadd.f32 %v4011, %v4077
      %v4110 = vadd.f32 %v4012, %v4078
      %v4111 = vadd.f32 %v4013, %v4079
      %v4112 = vadd.f32 %v4014, %v4080
      %v4113 = vadd.f32 %v4015, %v4081
      %v4114 = vadd.f32 %v4016, %v4082
      %v4115 = vadd.f32 %v4017, %v4083
      %v4116 = vadd.f32 %v4018, %v4084
      %v4117 = vadd.f32 %v4019, %v4085
      %v4118 = vadd.f32 %v4020, %v4086
      %v4119 = vadd.f32 %v4021, %v4087
      %v4120 = vadd.f32 %v4022, %v4088
      %v4121 = vadd.f32 %v4023, %v4089
      %v4122 = vadd.f32 %v4024, %v4090
      %v4123 = vadd.f32 %v4025, %v4091
      %v4124 = vadd.f32 %v4026, %v4092
      %v4125 = vld [vmem:[%s3798] sm:$0xff]
      %v4126 = vld [vmem:[%s3798 + $0x8] sm:$0xff]
      %v4127 = vld [vmem:[%s3798 + $0x18] sm:$0xff]
      %v4128 = vld [vmem:[%s3798 + $0x20] sm:$0xff]
      %v4129 = vld [vmem:[%s3798 + $0x30] sm:$0xff]
      %v4130 = vld [vmem:[%s3798 + $0x38] sm:$0xff]
      %v4131 = vld [vmem:[%s3798 + $0x48] sm:$0xff]
      %v4132 = vld [vmem:[%s3798 + $0x50] sm:$0xff]
      %v4133 = vld [vmem:[%s3798 + $0x60] sm:$0xff]
      %v4134 = vld [vmem:[%s3798 + $0x68] sm:$0xff]
      %v4135 = vld [vmem:[%s3798 + $0x78] sm:$0xff]
      %v4136 = vld [vmem:[%s3798 + $0x80] sm:$0xff]
      %v4137 = vld [vmem:[%s3798 + $0x90] sm:$0xff]
      %v4138 = vld [vmem:[%s3798 + $0x98] sm:$0xff]
      %v4139 = vld [vmem:[%s3798 + $0xa8] sm:$0xff]
      %v4140 = vld [vmem:[%s3798 + $0xb0] sm:$0xff]
      %v4141 = vld [vmem:[%s3798 + $0xc0] sm:$0xff]
      %v4142 = vld [vmem:[%s3798 + $0xc8] sm:$0xff]
      %v4143 = vld [vmem:[%s3798 + $0xd8] sm:$0xff]
      %v4144 = vld [vmem:[%s3798 + $0xe0] sm:$0xff]
      %v4145 = vld [vmem:[%s3798 + $0xf0] sm:$0xff]
      %v4146 = vld [vmem:[%s3798 + $0xf8] sm:$0xff]
      %v4147 = vld [vmem:[%s3798 + $0x108] sm:$0xff]
      %v4148 = vld [vmem:[%s3798 + $0x110] sm:$0xff]
      %v4149 = vld [vmem:[%s3798 + $0x120] sm:$0xff]
      %v4150 = vld [vmem:[%s3798 + $0x128] sm:$0xff]
      %v4151 = vld [vmem:[%s3798 + $0x138] sm:$0xff]
      %v4152 = vld [vmem:[%s3798 + $0x140] sm:$0xff]
      %v4153 = vld [vmem:[%s3798 + $0x150] sm:$0xff]
      %v4154 = vld [vmem:[%s3798 + $0x158] sm:$0xff]
      %v4155 = vld [vmem:[%s3798 + $0x168] sm:$0xff]
      %v4156 = vld [vmem:[%s3798 + $0x170] sm:$0xff]
      %v4157 = vld [vmem:[%s4 + $0x3] sm:$0x1]
      %v4158 = vperm.slane %v4157, 0
      %v4159 = vmul.f32 %v4125, %v4158
      %v4160 = vmul.f32 %v4126, %v4158
      %v4161 = vmul.f32 %v4127, %v4158
      %v4162 = vmul.f32 %v4128, %v4158
      %v4163 = vmul.f32 %v4129, %v4158
      %v4164 = vmul.f32 %v4130, %v4158
      %v4165 = vmul.f32 %v4131, %v4158
      %v4166 = vmul.f32 %v4132, %v4158
      %v4167 = vmul.f32 %v4133, %v4158
      %v4168 = vmul.f32 %v4134, %v4158
      %v4169 = vmul.f32 %v4135, %v4158
      %v4170 = vmul.f32 %v4136, %v4158
      %v4171 = vmul.f32 %v4137, %v4158
      %v4172 = vmul.f32 %v4138, %v4158
      %v4173 = vmul.f32 %v4139, %v4158
      %v4174 = vmul.f32 %v4140, %v4158
      %v4175 = vmul.f32 %v4141, %v4158
      %v4176 = vmul.f32 %v4142, %v4158
      %v4177 = vmul.f32 %v4143, %v4158
      %v4178 = vmul.f32 %v4144, %v4158
      %v4179 = vmul.f32 %v4145, %v4158
      %v4180 = vmul.f32 %v4146, %v4158
      %v4181 = vmul.f32 %v4147, %v4158
      %v4182 = vmul.f32 %v4148, %v4158
      %v4183 = vmul.f32 %v4149, %v4158
      %v4184 = vmul.f32 %v4150, %v4158
      %v4185 = vmul.f32 %v4151, %v4158
      %v4186 = vmul.f32 %v4152, %v4158
      %v4187 = vmul.f32 %v4153, %v4158
      %v4188 = vmul.f32 %v4154, %v4158
      %v4189 = vmul.f32 %v4155, %v4158
      %v4190 = vmul.f32 %v4156, %v4158
      %v4191 = vadd.f32 %v4093, %v4159
      %v4192 = vadd.f32 %v4094, %v4160
      %v4193 = vadd.f32 %v4095, %v4161
      %v4194 = vadd.f32 %v4096, %v4162
      %v4195 = vadd.f32 %v4097, %v4163
      %v4196 = vadd.f32 %v4098, %v4164
      %v4197 = vadd.f32 %v4099, %v4165
      %v4198 = vadd.f32 %v4100, %v4166
      %v4199 = vadd.f32 %v4101, %v4167
      %v4200 = vadd.f32 %v4102, %v4168
      %v4201 = vadd.f32 %v4103, %v4169
      %v4202 = vadd.f32 %v4104, %v4170
      %v4203 = vadd.f32 %v4105, %v4171
      %v4204 = vadd.f32 %v4106, %v4172
      %v4205 = vadd.f32 %v4107, %v4173
      %v4206 = vadd.f32 %v4108, %v4174
      %v4207 = vadd.f32 %v4109, %v4175
      %v4208 = vadd.f32 %v4110, %v4176
      %v4209 = vadd.f32 %v4111, %v4177
      %v4210 = vadd.f32 %v4112, %v4178
      %v4211 = vadd.f32 %v4113, %v4179
      %v4212 = vadd.f32 %v4114, %v4180
      %v4213 = vadd.f32 %v4115, %v4181
      %v4214 = vadd.f32 %v4116, %v4182
      %v4215 = vadd.f32 %v4117, %v4183
      %v4216 = vadd.f32 %v4118, %v4184
      %v4217 = vadd.f32 %v4119, %v4185
      %v4218 = vadd.f32 %v4120, %v4186
      %v4219 = vadd.f32 %v4121, %v4187
      %v4220 = vadd.f32 %v4122, %v4188
      %v4221 = vadd.f32 %v4123, %v4189
      %v4222 = vadd.f32 %v4124, %v4190
      %v4223 = vld [vmem:[%s3798 + $0x1] sm:$0xff]
      %v4224 = vld [vmem:[%s3798 + $0x9] sm:$0xff]
      %v4225 = vld [vmem:[%s3798 + $0x19] sm:$0xff]
      %v4226 = vld [vmem:[%s3798 + $0x21] sm:$0xff]
      %v4227 = vld [vmem:[%s3798 + $0x31] sm:$0xff]
      %v4228 = vld [vmem:[%s3798 + $0x39] sm:$0xff]
      %v4229 = vld [vmem:[%s3798 + $0x49] sm:$0xff]
      %v4230 = vld [vmem:[%s3798 + $0x51] sm:$0xff]
      %v4231 = vld [vmem:[%s3798 + $0x61] sm:$0xff]
      %v4232 = vld [vmem:[%s3798 + $0x69] sm:$0xff]
      %v4233 = vld [vmem:[%s3798 + $0x79] sm:$0xff]
      %v4234 = vld [vmem:[%s3798 + $0x81] sm:$0xff]
      %v4235 = vld [vmem:[%s3798 + $0x91] sm:$0xff]
      %v4236 = vld [vmem:[%s3798 + $0x99] sm:$0xff]
      %v4237 = vld [vmem:[%s3798 + $0xa9] sm:$0xff]
      %v4238 = vld [vmem:[%s3798 + $0xb1] sm:$0xff]
      %v4239 = vld [vmem:[%s3798 + $0xc1] sm:$0xff]
      %v4240 = vld [vmem:[%s3798 + $0xc9] sm:$0xff]
      %v4241 = vld [vmem:[%s3798 + $0xd9] sm:$0xff]
      %v4242 = vld [vmem:[%s3798 + $0xe1] sm:$0xff]
      %v4243 = vld [vmem:[%s3798 + $0xf1] sm:$0xff]
      %v4244 = vld [vmem:[%s3798 + $0xf9] sm:$0xff]
      %v4245 = vld [vmem:[%s3798 + $0x109] sm:$0xff]
      %v4246 = vld [vmem:[%s3798 + $0x111] sm:$0xff]
      %v4247 = vld [vmem:[%s3798 + $0x121] sm:$0xff]
      %v4248 = vld [vmem:[%s3798 + $0x129] sm:$0xff]
      %v4249 = vld [vmem:[%s3798 + $0x139] sm:$0xff]
      %v4250 = vld [vmem:[%s3798 + $0x141] sm:$0xff]
      %v4251 = vld [vmem:[%s3798 + $0x151] sm:$0xff]
      %v4252 = vld [vmem:[%s3798 + $0x159] sm:$0xff]
      %v4253 = vld [vmem:[%s3798 + $0x169] sm:$0xff]
      %v4254 = vld [vmem:[%s3798 + $0x171] sm:$0xff]
      %v4255 = vld [vmem:[%s4 + $0x4] sm:$0x1]
      %v4256 = vperm.slane %v4255, 0
      %v4257 = vmul.f32 %v4223, %v4256
      %v4258 = vmul.f32 %v4224, %v4256
      %v4259 = vmul.f32 %v4225, %v4256
      %v4260 = vmul.f32 %v4226, %v4256
      %v4261 = vmul.f32 %v4227, %v4256
      %v4262 = vmul.f32 %v4228, %v4256
      %v4263 = vmul.f32 %v4229, %v4256
      %v4264 = vmul.f32 %v4230, %v4256
      %v4265 = vmul.f32 %v4231, %v4256
      %v4266 = vmul.f32 %v4232, %v4256
      %v4267 = vmul.f32 %v4233, %v4256
      %v4268 = vmul.f32 %v4234, %v4256
      %v4269 = vmul.f32 %v4235, %v4256
      %v4270 = vmul.f32 %v4236, %v4256
      %v4271 = vmul.f32 %v4237, %v4256
      %v4272 = vmul.f32 %v4238, %v4256
      %v4273 = vmul.f32 %v4239, %v4256
      %v4274 = vmul.f32 %v4240, %v4256
      %v4275 = vmul.f32 %v4241, %v4256
      %v4276 = vmul.f32 %v4242, %v4256
      %v4277 = vmul.f32 %v4243, %v4256
      %v4278 = vmul.f32 %v4244, %v4256
      %v4279 = vmul.f32 %v4245, %v4256
      %v4280 = vmul.f32 %v4246, %v4256
      %v4281 = vmul.f32 %v4247, %v4256
      %v4282 = vmul.f32 %v4248, %v4256
      %v4283 = vmul.f32 %v4249, %v4256
      %v4284 = vmul.f32 %v4250, %v4256
      %v4285 = vmul.f32 %v4251, %v4256
      %v4286 = vmul.f32 %v4252, %v4256
      %v4287 = vmul.f32 %v4253, %v4256
      %v4288 = vmul.f32 %v4254, %v4256
      %v4289 = vadd.f32 %v4191, %v4257
      %v4290 = vadd.f32 %v4192, %v4258
      %v4291 = vadd.f32 %v4193, %v4259
      %v4292 = vadd.f32 %v4194, %v4260
      %v4293 = vadd.f32 %v4195, %v4261
      %v4294 = vadd.f32 %v4196, %v4262
      %v4295 = vadd.f32 %v4197, %v4263
      %v4296 = vadd.f32 %v4198, %v4264
      %v4297 = vadd.f32 %v4199, %v4265
      %v4298 = vadd.f32 %v4200, %v4266
      %v4299 = vadd.f32 %v4201, %v4267
      %v4300 = vadd.f32 %v4202, %v4268
      %v4301 = vadd.f32 %v4203, %v4269
      %v4302 = vadd.f32 %v4204, %v4270
      %v4303 = vadd.f32 %v4205, %v4271
      %v4304 = vadd.f32 %v4206, %v4272
      %v4305 = vadd.f32 %v4207, %v4273
      %v4306 = vadd.f32 %v4208, %v4274
      %v4307 = vadd.f32 %v4209, %v4275
      %v4308 = vadd.f32 %v4210, %v4276
      %v4309 = vadd.f32 %v4211, %v4277
      %v4310 = vadd.f32 %v4212, %v4278
      %v4311 = vadd.f32 %v4213, %v4279
      %v4312 = vadd.f32 %v4214, %v4280
      %v4313 = vadd.f32 %v4215, %v4281
      %v4314 = vadd.f32 %v4216, %v4282
      %v4315 = vadd.f32 %v4217, %v4283
      %v4316 = vadd.f32 %v4218, %v4284
      %v4317 = vadd.f32 %v4219, %v4285
      %v4318 = vadd.f32 %v4220, %v4286
      %v4319 = vadd.f32 %v4221, %v4287
      %v4320 = vadd.f32 %v4222, %v4288
      %v4321 = vld [vmem:[%s3798 + $0x2] sm:$0xff]
      %v4322 = vld [vmem:[%s3798 + $0xa] sm:$0xff]
      %v4323 = vld [vmem:[%s3798 + $0x1a] sm:$0xff]
      %v4324 = vld [vmem:[%s3798 + $0x22] sm:$0xff]
      %v4325 = vld [vmem:[%s3798 + $0x32] sm:$0xff]
      %v4326 = vld [vmem:[%s3798 + $0x3a] sm:$0xff]
      %v4327 = vld [vmem:[%s3798 + $0x4a] sm:$0xff]
      %v4328 = vld [vmem:[%s3798 + $0x52] sm:$0xff]
      %v4329 = vld [vmem:[%s3798 + $0x62] sm:$0xff]
      %v4330 = vld [vmem:[%s3798 + $0x6a] sm:$0xff]
      %v4331 = vld [vmem:[%s3798 + $0x7a] sm:$0xff]
      %v4332 = vld [vmem:[%s3798 + $0x82] sm:$0xff]
      %v4333 = vld [vmem:[%s3798 + $0x92] sm:$0xff]
      %v4334 = vld [vmem:[%s3798 + $0x9a] sm:$0xff]
      %v4335 = vld [vmem:[%s3798 + $0xaa] sm:$0xff]
      %v4336 = vld [vmem:[%s3798 + $0xb2] sm:$0xff]
      %v4337 = vld [vmem:[%s3798 + $0xc2] sm:$0xff]
      %v4338 = vld [vmem:[%s3798 + $0xca] sm:$0xff]
      %v4339 = vld [vmem:[%s3798 + $0xda] sm:$0xff]
      %v4340 = vld [vmem:[%s3798 + $0xe2] sm:$0xff]
      %v4341 = vld [vmem:[%s3798 + $0xf2] sm:$0xff]
      %v4342 = vld [vmem:[%s3798 + $0xfa] sm:$0xff]
      %v4343 = vld [vmem:[%s3798 + $0x10a] sm:$0xff]
      %v4344 = vld [vmem:[%s3798 + $0x112] sm:$0xff]
      %v4345 = vld [vmem:[%s3798 + $0x122] sm:$0xff]
      %v4346 = vld [vmem:[%s3798 + $0x12a] sm:$0xff]
      %v4347 = vld [vmem:[%s3798 + $0x13a] sm:$0xff]
      %v4348 = vld [vmem:[%s3798 + $0x142] sm:$0xff]
      %v4349 = vld [vmem:[%s3798 + $0x152] sm:$0xff]
      %v4350 = vld [vmem:[%s3798 + $0x15a] sm:$0xff]
      %v4351 = vld [vmem:[%s3798 + $0x16a] sm:$0xff]
      %v4352 = vld [vmem:[%s3798 + $0x172] sm:$0xff]
      %v4353 = vld [vmem:[%s4 + $0x5] sm:$0x1]
      %v4354 = vperm.slane %v4353, 0
      %v4355 = vmul.f32 %v4321, %v4354
      %v4356 = vmul.f32 %v4322, %v4354
      %v4357 = vmul.f32 %v4323, %v4354
      %v4358 = vmul.f32 %v4324, %v4354
      %v4359 = vmul.f32 %v4325, %v4354
      %v4360 = vmul.f32 %v4326, %v4354
      %v4361 = vmul.f32 %v4327, %v4354
      %v4362 = vmul.f32 %v4328, %v4354
      %v4363 = vmul.f32 %v4329, %v4354
      %v4364 = vmul.f32 %v4330, %v4354
      %v4365 = vmul.f32 %v4331, %v4354
      %v4366 = vmul.f32 %v4332, %v4354
      %v4367 = vmul.f32 %v4333, %v4354
      %v4368 = vmul.f32 %v4334, %v4354
      %v4369 = vmul.f32 %v4335, %v4354
      %v4370 = vmul.f32 %v4336, %v4354
      %v4371 = vmul.f32 %v4337, %v4354
      %v4372 = vmul.f32 %v4338, %v4354
      %v4373 = vmul.f32 %v4339, %v4354
      %v4374 = vmul.f32 %v4340, %v4354
      %v4375 = vmul.f32 %v4341, %v4354
      %v4376 = vmul.f32 %v4342, %v4354
      %v4377 = vmul.f32 %v4343, %v4354
      %v4378 = vmul.f32 %v4344, %v4354
      %v4379 = vmul.f32 %v4345, %v4354
      %v4380 = vmul.f32 %v4346, %v4354
      %v4381 = vmul.f32 %v4347, %v4354
      %v4382 = vmul.f32 %v4348, %v4354
      %v4383 = vmul.f32 %v4349, %v4354
      %v4384 = vmul.f32 %v4350, %v4354
      %v4385 = vmul.f32 %v4351, %v4354
      %v4386 = vmul.f32 %v4352, %v4354
      %v4387 = vadd.f32 %v4289, %v4355
      %v4388 = vadd.f32 %v4290, %v4356
      %v4389 = vadd.f32 %v4291, %v4357
      %v4390 = vadd.f32 %v4292, %v4358
      %v4391 = vadd.f32 %v4293, %v4359
      %v4392 = vadd.f32 %v4294, %v4360
      %v4393 = vadd.f32 %v4295, %v4361
      %v4394 = vadd.f32 %v4296, %v4362
      %v4395 = vadd.f32 %v4297, %v4363
      %v4396 = vadd.f32 %v4298, %v4364
      %v4397 = vadd.f32 %v4299, %v4365
      %v4398 = vadd.f32 %v4300, %v4366
      %v4399 = vadd.f32 %v4301, %v4367
      %v4400 = vadd.f32 %v4302, %v4368
      %v4401 = vadd.f32 %v4303, %v4369
      %v4402 = vadd.f32 %v4304, %v4370
      %v4403 = vadd.f32 %v4305, %v4371
      %v4404 = vadd.f32 %v4306, %v4372
      %v4405 = vadd.f32 %v4307, %v4373
      %v4406 = vadd.f32 %v4308, %v4374
      %v4407 = vadd.f32 %v4309, %v4375
      %v4408 = vadd.f32 %v4310, %v4376
      %v4409 = vadd.f32 %v4311, %v4377
      %v4410 = vadd.f32 %v4312, %v4378
      %v4411 = vadd.f32 %v4313, %v4379
      %v4412 = vadd.f32 %v4314, %v4380
      %v4413 = vadd.f32 %v4315, %v4381
      %v4414 = vadd.f32 %v4316, %v4382
      %v4415 = vadd.f32 %v4317, %v4383
      %v4416 = vadd.f32 %v4318, %v4384
      %v4417 = vadd.f32 %v4319, %v4385
      %v4418 = vadd.f32 %v4320, %v4386
      %s4419 = scalar_lea.vmem [#allocation3], 48
      %v4420 = vld [vmem:[%s4419] sm:$0xff]
      %v4421 = vld [vmem:[%s4419 + $0x8] sm:$0xff]
      %v4422 = vld [vmem:[%s4419 + $0x18] sm:$0xff]
      %v4423 = vld [vmem:[%s4419 + $0x20] sm:$0xff]
      %v4424 = vld [vmem:[%s4419 + $0x30] sm:$0xff]
      %v4425 = vld [vmem:[%s4419 + $0x38] sm:$0xff]
      %v4426 = vld [vmem:[%s4419 + $0x48] sm:$0xff]
      %v4427 = vld [vmem:[%s4419 + $0x50] sm:$0xff]
      %v4428 = vld [vmem:[%s4419 + $0x60] sm:$0xff]
      %v4429 = vld [vmem:[%s4419 + $0x68] sm:$0xff]
      %v4430 = vld [vmem:[%s4419 + $0x78] sm:$0xff]
      %v4431 = vld [vmem:[%s4419 + $0x80] sm:$0xff]
      %v4432 = vld [vmem:[%s4419 + $0x90] sm:$0xff]
      %v4433 = vld [vmem:[%s4419 + $0x98] sm:$0xff]
      %v4434 = vld [vmem:[%s4419 + $0xa8] sm:$0xff]
      %v4435 = vld [vmem:[%s4419 + $0xb0] sm:$0xff]
      %v4436 = vld [vmem:[%s4419 + $0xc0] sm:$0xff]
      %v4437 = vld [vmem:[%s4419 + $0xc8] sm:$0xff]
      %v4438 = vld [vmem:[%s4419 + $0xd8] sm:$0xff]
      %v4439 = vld [vmem:[%s4419 + $0xe0] sm:$0xff]
      %v4440 = vld [vmem:[%s4419 + $0xf0] sm:$0xff]
      %v4441 = vld [vmem:[%s4419 + $0xf8] sm:$0xff]
      %v4442 = vld [vmem:[%s4419 + $0x108] sm:$0xff]
      %v4443 = vld [vmem:[%s4419 + $0x110] sm:$0xff]
      %v4444 = vld [vmem:[%s4419 + $0x120] sm:$0xff]
      %v4445 = vld [vmem:[%s4419 + $0x128] sm:$0xff]
      %v4446 = vld [vmem:[%s4419 + $0x138] sm:$0xff]
      %v4447 = vld [vmem:[%s4419 + $0x140] sm:$0xff]
      %v4448 = vld [vmem:[%s4419 + $0x150] sm:$0xff]
      %v4449 = vld [vmem:[%s4419 + $0x158] sm:$0xff]
      %v4450 = vld [vmem:[%s4419 + $0x168] sm:$0xff]
      %v4451 = vld [vmem:[%s4419 + $0x170] sm:$0xff]
      %v4452 = vld [vmem:[%s4 + $0x6] sm:$0x1]
      %v4453 = vperm.slane %v4452, 0
      %v4454 = vmul.f32 %v4420, %v4453
      %v4455 = vmul.f32 %v4421, %v4453
      %v4456 = vmul.f32 %v4422, %v4453
      %v4457 = vmul.f32 %v4423, %v4453
      %v4458 = vmul.f32 %v4424, %v4453
      %v4459 = vmul.f32 %v4425, %v4453
      %v4460 = vmul.f32 %v4426, %v4453
      %v4461 = vmul.f32 %v4427, %v4453
      %v4462 = vmul.f32 %v4428, %v4453
      %v4463 = vmul.f32 %v4429, %v4453
      %v4464 = vmul.f32 %v4430, %v4453
      %v4465 = vmul.f32 %v4431, %v4453
      %v4466 = vmul.f32 %v4432, %v4453
      %v4467 = vmul.f32 %v4433, %v4453
      %v4468 = vmul.f32 %v4434, %v4453
      %v4469 = vmul.f32 %v4435, %v4453
      %v4470 = vmul.f32 %v4436, %v4453
      %v4471 = vmul.f32 %v4437, %v4453
      %v4472 = vmul.f32 %v4438, %v4453
      %v4473 = vmul.f32 %v4439, %v4453
      %v4474 = vmul.f32 %v4440, %v4453
      %v4475 = vmul.f32 %v4441, %v4453
      %v4476 = vmul.f32 %v4442, %v4453
      %v4477 = vmul.f32 %v4443, %v4453
      %v4478 = vmul.f32 %v4444, %v4453
      %v4479 = vmul.f32 %v4445, %v4453
      %v4480 = vmul.f32 %v4446, %v4453
      %v4481 = vmul.f32 %v4447, %v4453
      %v4482 = vmul.f32 %v4448, %v4453
      %v4483 = vmul.f32 %v4449, %v4453
      %v4484 = vmul.f32 %v4450, %v4453
      %v4485 = vmul.f32 %v4451, %v4453
      %v4486 = vadd.f32 %v4387, %v4454
      %v4487 = vadd.f32 %v4388, %v4455
      %v4488 = vadd.f32 %v4389, %v4456
      %v4489 = vadd.f32 %v4390, %v4457
      %v4490 = vadd.f32 %v4391, %v4458
      %v4491 = vadd.f32 %v4392, %v4459
      %v4492 = vadd.f32 %v4393, %v4460
      %v4493 = vadd.f32 %v4394, %v4461
      %v4494 = vadd.f32 %v4395, %v4462
      %v4495 = vadd.f32 %v4396, %v4463
      %v4496 = vadd.f32 %v4397, %v4464
      %v4497 = vadd.f32 %v4398, %v4465
      %v4498 = vadd.f32 %v4399, %v4466
      %v4499 = vadd.f32 %v4400, %v4467
      %v4500 = vadd.f32 %v4401, %v4468
      %v4501 = vadd.f32 %v4402, %v4469
      %v4502 = vadd.f32 %v4403, %v4470
      %v4503 = vadd.f32 %v4404, %v4471
      %v4504 = vadd.f32 %v4405, %v4472
      %v4505 = vadd.f32 %v4406, %v4473
      %v4506 = vadd.f32 %v4407, %v4474
      %v4507 = vadd.f32 %v4408, %v4475
      %v4508 = vadd.f32 %v4409, %v4476
      %v4509 = vadd.f32 %v4410, %v4477
      %v4510 = vadd.f32 %v4411, %v4478
      %v4511 = vadd.f32 %v4412, %v4479
      %v4512 = vadd.f32 %v4413, %v4480
      %v4513 = vadd.f32 %v4414, %v4481
      %v4514 = vadd.f32 %v4415, %v4482
      %v4515 = vadd.f32 %v4416, %v4483
      %v4516 = vadd.f32 %v4417, %v4484
      %v4517 = vadd.f32 %v4418, %v4485
      %v4518 = vld [vmem:[%s4419 + $0x1] sm:$0xff]
      %v4519 = vld [vmem:[%s4419 + $0x9] sm:$0xff]
      %v4520 = vld [vmem:[%s4419 + $0x19] sm:$0xff]
      %v4521 = vld [vmem:[%s4419 + $0x21] sm:$0xff]
      %v4522 = vld [vmem:[%s4419 + $0x31] sm:$0xff]
      %v4523 = vld [vmem:[%s4419 + $0x39] sm:$0xff]
      %v4524 = vld [vmem:[%s4419 + $0x49] sm:$0xff]
      %v4525 = vld [vmem:[%s4419 + $0x51] sm:$0xff]
      %v4526 = vld [vmem:[%s4419 + $0x61] sm:$0xff]
      %v4527 = vld [vmem:[%s4419 + $0x69] sm:$0xff]
      %v4528 = vld [vmem:[%s4419 + $0x79] sm:$0xff]
      %v4529 = vld [vmem:[%s4419 + $0x81] sm:$0xff]
      %v4530 = vld [vmem:[%s4419 + $0x91] sm:$0xff]
      %v4531 = vld [vmem:[%s4419 + $0x99] sm:$0xff]
      %v4532 = vld [vmem:[%s4419 + $0xa9] sm:$0xff]
      %v4533 = vld [vmem:[%s4419 + $0xb1] sm:$0xff]
      %v4534 = vld [vmem:[%s4419 + $0xc1] sm:$0xff]
      %v4535 = vld [vmem:[%s4419 + $0xc9] sm:$0xff]
      %v4536 = vld [vmem:[%s4419 + $0xd9] sm:$0xff]
      %v4537 = vld [vmem:[%s4419 + $0xe1] sm:$0xff]
      %v4538 = vld [vmem:[%s4419 + $0xf1] sm:$0xff]
      %v4539 = vld [vmem:[%s4419 + $0xf9] sm:$0xff]
      %v4540 = vld [vmem:[%s4419 + $0x109] sm:$0xff]
      %v4541 = vld [vmem:[%s4419 + $0x111] sm:$0xff]
      %v4542 = vld [vmem:[%s4419 + $0x121] sm:$0xff]
      %v4543 = vld [vmem:[%s4419 + $0x129] sm:$0xff]
      %v4544 = vld [vmem:[%s4419 + $0x139] sm:$0xff]
      %v4545 = vld [vmem:[%s4419 + $0x141] sm:$0xff]
      %v4546 = vld [vmem:[%s4419 + $0x151] sm:$0xff]
      %v4547 = vld [vmem:[%s4419 + $0x159] sm:$0xff]
      %v4548 = vld [vmem:[%s4419 + $0x169] sm:$0xff]
      %v4549 = vld [vmem:[%s4419 + $0x171] sm:$0xff]
      %v4550 = vld [vmem:[%s4 + $0x7] sm:$0x1]
      %v4551 = vperm.slane %v4550, 0
      %v4552 = vmul.f32 %v4518, %v4551
      %v4553 = vmul.f32 %v4519, %v4551
      %v4554 = vmul.f32 %v4520, %v4551
      %v4555 = vmul.f32 %v4521, %v4551
      %v4556 = vmul.f32 %v4522, %v4551
      %v4557 = vmul.f32 %v4523, %v4551
      %v4558 = vmul.f32 %v4524, %v4551
      %v4559 = vmul.f32 %v4525, %v4551
      %v4560 = vmul.f32 %v4526, %v4551
      %v4561 = vmul.f32 %v4527, %v4551
      %v4562 = vmul.f32 %v4528, %v4551
      %v4563 = vmul.f32 %v4529, %v4551
      %v4564 = vmul.f32 %v4530, %v4551
      %v4565 = vmul.f32 %v4531, %v4551
      %v4566 = vmul.f32 %v4532, %v4551
      %v4567 = vmul.f32 %v4533, %v4551
      %v4568 = vmul.f32 %v4534, %v4551
      %v4569 = vmul.f32 %v4535, %v4551
      %v4570 = vmul.f32 %v4536, %v4551
      %v4571 = vmul.f32 %v4537, %v4551
      %v4572 = vmul.f32 %v4538, %v4551
      %v4573 = vmul.f32 %v4539, %v4551
      %v4574 = vmul.f32 %v4540, %v4551
      %v4575 = vmul.f32 %v4541, %v4551
      %v4576 = vmul.f32 %v4542, %v4551
      %v4577 = vmul.f32 %v4543, %v4551
      %v4578 = vmul.f32 %v4544, %v4551
      %v4579 = vmul.f32 %v4545, %v4551
      %v4580 = vmul.f32 %v4546, %v4551
      %v4581 = vmul.f32 %v4547, %v4551
      %v4582 = vmul.f32 %v4548, %v4551
      %v4583 = vmul.f32 %v4549, %v4551
      %v4584 = vadd.f32 %v4486, %v4552
      %v4585 = vadd.f32 %v4487, %v4553
      %v4586 = vadd.f32 %v4488, %v4554
      %v4587 = vadd.f32 %v4489, %v4555
      %v4588 = vadd.f32 %v4490, %v4556
      %v4589 = vadd.f32 %v4491, %v4557
      %v4590 = vadd.f32 %v4492, %v4558
      %v4591 = vadd.f32 %v4493, %v4559
      %v4592 = vadd.f32 %v4494, %v4560
      %v4593 = vadd.f32 %v4495, %v4561
      %v4594 = vadd.f32 %v4496, %v4562
      %v4595 = vadd.f32 %v4497, %v4563
      %v4596 = vadd.f32 %v4498, %v4564
      %v4597 = vadd.f32 %v4499, %v4565
      %v4598 = vadd.f32 %v4500, %v4566
      %v4599 = vadd.f32 %v4501, %v4567
      %v4600 = vadd.f32 %v4502, %v4568
      %v4601 = vadd.f32 %v4503, %v4569
      %v4602 = vadd.f32 %v4504, %v4570
      %v4603 = vadd.f32 %v4505, %v4571
      %v4604 = vadd.f32 %v4506, %v4572
      %v4605 = vadd.f32 %v4507, %v4573
      %v4606 = vadd.f32 %v4508, %v4574
      %v4607 = vadd.f32 %v4509, %v4575
      %v4608 = vadd.f32 %v4510, %v4576
      %v4609 = vadd.f32 %v4511, %v4577
      %v4610 = vadd.f32 %v4512, %v4578
      %v4611 = vadd.f32 %v4513, %v4579
      %v4612 = vadd.f32 %v4514, %v4580
      %v4613 = vadd.f32 %v4515, %v4581
      %v4614 = vadd.f32 %v4516, %v4582
      %v4615 = vadd.f32 %v4517, %v4583
      %v4616 = vld [vmem:[%s4419 + $0x2] sm:$0xff]
      %v4617 = vld [vmem:[%s4419 + $0xa] sm:$0xff]
      %v4618 = vld [vmem:[%s4419 + $0x1a] sm:$0xff]
      %v4619 = vld [vmem:[%s4419 + $0x22] sm:$0xff]
      %v4620 = vld [vmem:[%s4419 + $0x32] sm:$0xff]
      %v4621 = vld [vmem:[%s4419 + $0x3a] sm:$0xff]
      %v4622 = vld [vmem:[%s4419 + $0x4a] sm:$0xff]
      %v4623 = vld [vmem:[%s4419 + $0x52] sm:$0xff]
      %v4624 = vld [vmem:[%s4419 + $0x62] sm:$0xff]
      %v4625 = vld [vmem:[%s4419 + $0x6a] sm:$0xff]
      %v4626 = vld [vmem:[%s4419 + $0x7a] sm:$0xff]
      %v4627 = vld [vmem:[%s4419 + $0x82] sm:$0xff]
      %v4628 = vld [vmem:[%s4419 + $0x92] sm:$0xff]
      %v4629 = vld [vmem:[%s4419 + $0x9a] sm:$0xff]
      %v4630 = vld [vmem:[%s4419 + $0xaa] sm:$0xff]
      %v4631 = vld [vmem:[%s4419 + $0xb2] sm:$0xff]
      %v4632 = vld [vmem:[%s4419 + $0xc2] sm:$0xff]
      %v4633 = vld [vmem:[%s4419 + $0xca] sm:$0xff]
      %v4634 = vld [vmem:[%s4419 + $0xda] sm:$0xff]
      %v4635 = vld [vmem:[%s4419 + $0xe2] sm:$0xff]
      %v4636 = vld [vmem:[%s4419 + $0xf2] sm:$0xff]
      %v4637 = vld [vmem:[%s4419 + $0xfa] sm:$0xff]
      %v4638 = vld [vmem:[%s4419 + $0x10a] sm:$0xff]
      %v4639 = vld [vmem:[%s4419 + $0x112] sm:$0xff]
      %v4640 = vld [vmem:[%s4419 + $0x122] sm:$0xff]
      %v4641 = vld [vmem:[%s4419 + $0x12a] sm:$0xff]
      %v4642 = vld [vmem:[%s4419 + $0x13a] sm:$0xff]
      %v4643 = vld [vmem:[%s4419 + $0x142] sm:$0xff]
      %v4644 = vld [vmem:[%s4419 + $0x152] sm:$0xff]
      %v4645 = vld [vmem:[%s4419 + $0x15a] sm:$0xff]
      %v4646 = vld [vmem:[%s4419 + $0x16a] sm:$0xff]
      %v4647 = vld [vmem:[%s4419 + $0x172] sm:$0xff]
      %v4648 = vld [vmem:[%s4 + $0x8] sm:$0x1]
      %v4649 = vperm.slane %v4648, 0
      %v4650 = vmul.f32 %v4616, %v4649
      %v4651 = vmul.f32 %v4617, %v4649
      %v4652 = vmul.f32 %v4618, %v4649
      %v4653 = vmul.f32 %v4619, %v4649
      %v4654 = vmul.f32 %v4620, %v4649
      %v4655 = vmul.f32 %v4621, %v4649
      %v4656 = vmul.f32 %v4622, %v4649
      %v4657 = vmul.f32 %v4623, %v4649
      %v4658 = vmul.f32 %v4624, %v4649
      %v4659 = vmul.f32 %v4625, %v4649
      %v4660 = vmul.f32 %v4626, %v4649
      %v4661 = vmul.f32 %v4627, %v4649
      %v4662 = vmul.f32 %v4628, %v4649
      %v4663 = vmul.f32 %v4629, %v4649
      %v4664 = vmul.f32 %v4630, %v4649
      %v4665 = vmul.f32 %v4631, %v4649
      %v4666 = vmul.f32 %v4632, %v4649
      %v4667 = vmul.f32 %v4633, %v4649
      %v4668 = vmul.f32 %v4634, %v4649
      %v4669 = vmul.f32 %v4635, %v4649
      %v4670 = vmul.f32 %v4636, %v4649
      %v4671 = vmul.f32 %v4637, %v4649
      %v4672 = vmul.f32 %v4638, %v4649
      %v4673 = vmul.f32 %v4639, %v4649
      %v4674 = vmul.f32 %v4640, %v4649
      %v4675 = vmul.f32 %v4641, %v4649
      %v4676 = vmul.f32 %v4642, %v4649
      %v4677 = vmul.f32 %v4643, %v4649
      %v4678 = vmul.f32 %v4644, %v4649
      %v4679 = vmul.f32 %v4645, %v4649
      %v4680 = vmul.f32 %v4646, %v4649
      %v4681 = vmul.f32 %v4647, %v4649
      %v4682 = vadd.f32 %v4584, %v4650
      %v4683 = vadd.f32 %v4585, %v4651
      %v4684 = vadd.f32 %v4586, %v4652
      %v4685 = vadd.f32 %v4587, %v4653
      %v4686 = vadd.f32 %v4588, %v4654
      %v4687 = vadd.f32 %v4589, %v4655
      %v4688 = vadd.f32 %v4590, %v4656
      %v4689 = vadd.f32 %v4591, %v4657
      %v4690 = vadd.f32 %v4592, %v4658
      %v4691 = vadd.f32 %v4593, %v4659
      %v4692 = vadd.f32 %v4594, %v4660
      %v4693 = vadd.f32 %v4595, %v4661
      %v4694 = vadd.f32 %v4596, %v4662
      %v4695 = vadd.f32 %v4597, %v4663
      %v4696 = vadd.f32 %v4598, %v4664
      %v4697 = vadd.f32 %v4599, %v4665
      %v4698 = vadd.f32 %v4600, %v4666
      %v4699 = vadd.f32 %v4601, %v4667
      %v4700 = vadd.f32 %v4602, %v4668
      %v4701 = vadd.f32 %v4603, %v4669
      %v4702 = vadd.f32 %v4604, %v4670
      %v4703 = vadd.f32 %v4605, %v4671
      %v4704 = vadd.f32 %v4606, %v4672
      %v4705 = vadd.f32 %v4607, %v4673
      %v4706 = vadd.f32 %v4608, %v4674
      %v4707 = vadd.f32 %v4609, %v4675
      %v4708 = vadd.f32 %v4610, %v4676
      %v4709 = vadd.f32 %v4611, %v4677
      %v4710 = vadd.f32 %v4612, %v4678
      %v4711 = vadd.f32 %v4613, %v4679
      %v4712 = vadd.f32 %v4614, %v4680
      %v4713 = vadd.f32 %v4615, %v4681
      %v4714 = vld [vmem:[%s5] sm:$0x1]
      %v4716 = vperm.slane %v4714, 0
      %v4718 = vmul.f32 %v4682, %v4716
      %v4719 = vmul.f32 %v4683, %v4716
      %v4720 = vmul.f32 %v4684, %v4716
      %v4721 = vmul.f32 %v4685, %v4716
      %v4722 = vmul.f32 %v4686, %v4716
      %v4723 = vmul.f32 %v4687, %v4716
      %v4724 = vmul.f32 %v4688, %v4716
      %v4725 = vmul.f32 %v4689, %v4716
      %v4726 = vmul.f32 %v4690, %v4716
      %v4727 = vmul.f32 %v4691, %v4716
      %v4728 = vmul.f32 %v4692, %v4716
      %v4729 = vmul.f32 %v4693, %v4716
      %v4730 = vmul.f32 %v4694, %v4716
      %v4731 = vmul.f32 %v4695, %v4716
      %v4732 = vmul.f32 %v4696, %v4716
      %v4733 = vmul.f32 %v4697, %v4716
      %v4734 = vmul.f32 %v4698, %v4716
      %v4735 = vmul.f32 %v4699, %v4716
      %v4736 = vmul.f32 %v4700, %v4716
      %v4737 = vmul.f32 %v4701, %v4716
      %v4738 = vmul.f32 %v4702, %v4716
      %v4739 = vmul.f32 %v4703, %v4716
      %v4740 = vmul.f32 %v4704, %v4716
      %v4741 = vmul.f32 %v4705, %v4716
      %v4742 = vmul.f32 %v4706, %v4716
      %v4743 = vmul.f32 %v4707, %v4716
      %v4744 = vmul.f32 %v4708, %v4716
      %v4745 = vmul.f32 %v4709, %v4716
      %v4746 = vmul.f32 %v4710, %v4716
      %v4747 = vmul.f32 %v4711, %v4716
      %v4748 = vmul.f32 %v4712, %v4716
      %v4749 = vmul.f32 %v4713, %v4716
      %v4750 = vld [vmem:[%s6] sm:$0x1]
      %v4752 = vperm.slane %v4750, 0
      %v4754 = vadd.f32 %v4718, %v4752
      %v4755 = vadd.f32 %v4719, %v4752
      %v4756 = vadd.f32 %v4720, %v4752
      %v4757 = vadd.f32 %v4721, %v4752
      %v4758 = vadd.f32 %v4722, %v4752
      %v4759 = vadd.f32 %v4723, %v4752
      %v4760 = vadd.f32 %v4724, %v4752
      %v4761 = vadd.f32 %v4725, %v4752
      %v4762 = vadd.f32 %v4726, %v4752
      %v4763 = vadd.f32 %v4727, %v4752
      %v4764 = vadd.f32 %v4728, %v4752
      %v4765 = vadd.f32 %v4729, %v4752
      %v4766 = vadd.f32 %v4730, %v4752
      %v4767 = vadd.f32 %v4731, %v4752
      %v4768 = vadd.f32 %v4732, %v4752
      %v4769 = vadd.f32 %v4733, %v4752
      %v4770 = vadd.f32 %v4734, %v4752
      %v4771 = vadd.f32 %v4735, %v4752
      %v4772 = vadd.f32 %v4736, %v4752
      %v4773 = vadd.f32 %v4737, %v4752
      %v4774 = vadd.f32 %v4738, %v4752
      %v4775 = vadd.f32 %v4739, %v4752
      %v4776 = vadd.f32 %v4740, %v4752
      %v4777 = vadd.f32 %v4741, %v4752
      %v4778 = vadd.f32 %v4742, %v4752
      %v4779 = vadd.f32 %v4743, %v4752
      %v4780 = vadd.f32 %v4744, %v4752
      %v4781 = vadd.f32 %v4745, %v4752
      %v4782 = vadd.f32 %v4746, %v4752
      %v4783 = vadd.f32 %v4747, %v4752
      %v4784 = vadd.f32 %v4748, %v4752
      %v4785 = vadd.f32 %v4749, %v4752
      %v4786 = vsub.f32 0.0, %v4754
      %v4787 = vsub.f32 0.0, %v4755
      %v4788 = vsub.f32 0.0, %v4756
      %v4789 = vsub.f32 0.0, %v4757
      %v4790 = vsub.f32 0.0, %v4758
      %v4791 = vsub.f32 0.0, %v4759
      %v4792 = vsub.f32 0.0, %v4760
      %v4793 = vsub.f32 0.0, %v4761
      %v4794 = vsub.f32 0.0, %v4762
      %v4795 = vsub.f32 0.0, %v4763
      %v4796 = vsub.f32 0.0, %v4764
      %v4797 = vsub.f32 0.0, %v4765
      %v4798 = vsub.f32 0.0, %v4766
      %v4799 = vsub.f32 0.0, %v4767
      %v4800 = vsub.f32 0.0, %v4768
      %v4801 = vsub.f32 0.0, %v4769
      %v4802 = vsub.f32 0.0, %v4770
      %v4803 = vsub.f32 0.0, %v4771
      %v4804 = vsub.f32 0.0, %v4772
      %v4805 = vsub.f32 0.0, %v4773
      %v4806 = vsub.f32 0.0, %v4774
      %v4807 = vsub.f32 0.0, %v4775
      %v4808 = vsub.f32 0.0, %v4776
      %v4809 = vsub.f32 0.0, %v4777
      %v4810 = vsub.f32 0.0, %v4778
      %v4811 = vsub.f32 0.0, %v4779
      %v4812 = vsub.f32 0.0, %v4780
      %v4813 = vsub.f32 0.0, %v4781
      %v4814 = vsub.f32 0.0, %v4782
      %v4815 = vsub.f32 0.0, %v4783
      %v4816 = vsub.f32 0.0, %v4784
      %v4817 = vsub.f32 0.0, %v4785
      %v4818 = vmul.f32 %v4786, 1.442695
      %v4819 = vpow.pop %v4818
      %v4820 = vmul.f32 %v4787, 1.442695
      %v4821 = vpow.pop %v4820
      %v4822 = vmul.f32 %v4788, 1.442695
      %v4823 = vpow.pop %v4822
      %v4824 = vmul.f32 %v4789, 1.442695
      %v4825 = vpow.pop %v4824
      %v4826 = vmul.f32 %v4790, 1.442695
      %v4827 = vpow.pop %v4826
      %v4828 = vmul.f32 %v4791, 1.442695
      %v4829 = vpow.pop %v4828
      %v4830 = vmul.f32 %v4792, 1.442695
      %v4831 = vpow.pop %v4830
      %v4832 = vmul.f32 %v4793, 1.442695
      %v4833 = vpow.pop %v4832
      %v4834 = vmul.f32 %v4794, 1.442695
      %v4835 = vpow.pop %v4834
      %v4836 = vmul.f32 %v4795, 1.442695
      %v4837 = vpow.pop %v4836
      %v4838 = vmul.f32 %v4796, 1.442695
      %v4839 = vpow.pop %v4838
      %v4840 = vmul.f32 %v4797, 1.442695
      %v4841 = vpow.pop %v4840
      %v4842 = vmul.f32 %v4798, 1.442695
      %v4843 = vpow.pop %v4842
      %v4844 = vmul.f32 %v4799, 1.442695
      %v4845 = vpow.pop %v4844
      %v4846 = vmul.f32 %v4800, 1.442695
      %v4847 = vpow.pop %v4846
      %v4848 = vmul.f32 %v4801, 1.442695
      %v4849 = vpow.pop %v4848
      %v4850 = vmul.f32 %v4802, 1.442695
      %v4851 = vpow.pop %v4850
      %v4852 = vmul.f32 %v4803, 1.442695
      %v4853 = vpow.pop %v4852
      %v4854 = vmul.f32 %v4804, 1.442695
      %v4855 = vpow.pop %v4854
      %v4856 = vmul.f32 %v4805, 1.442695
      %v4857 = vpow.pop %v4856
      %v4858 = vmul.f32 %v4806, 1.442695
      %v4859 = vpow.pop %v4858
      %v4860 = vmul.f32 %v4807, 1.442695
      %v4861 = vpow.pop %v4860
      %v4862 = vmul.f32 %v4808, 1.442695
      %v4863 = vpow.pop %v4862
      %v4864 = vmul.f32 %v4809, 1.442695
      %v4865 = vpow.pop %v4864
      %v4866 = vmul.f32 %v4810, 1.442695
      %v4867 = vpow.pop %v4866
      %v4868 = vmul.f32 %v4811, 1.442695
      %v4869 = vpow.pop %v4868
      %v4870 = vmul.f32 %v4812, 1.442695
      %v4871 = vpow.pop %v4870
      %v4872 = vmul.f32 %v4813, 1.442695
      %v4873 = vpow.pop %v4872
      %v4874 = vmul.f32 %v4814, 1.442695
      %v4875 = vpow.pop %v4874
      %v4876 = vmul.f32 %v4815, 1.442695
      %v4877 = vpow.pop %v4876
      %v4878 = vmul.f32 %v4816, 1.442695
      %v4879 = vpow.pop %v4878
      %v4880 = vmul.f32 %v4817, 1.442695
      %v4881 = vpow.pop %v4880
      %v4882 = vadd.f32 %v4819, 1.0
      %v4883 = vadd.f32 %v4821, 1.0
      %v4884 = vadd.f32 %v4823, 1.0
      %v4885 = vadd.f32 %v4825, 1.0
      %v4886 = vadd.f32 %v4827, 1.0
      %v4887 = vadd.f32 %v4829, 1.0
      %v4888 = vadd.f32 %v4831, 1.0
      %v4889 = vadd.f32 %v4833, 1.0
      %v4890 = vadd.f32 %v4835, 1.0
      %v4891 = vadd.f32 %v4837, 1.0
      %v4892 = vadd.f32 %v4839, 1.0
      %v4893 = vadd.f32 %v4841, 1.0
      %v4894 = vadd.f32 %v4843, 1.0
      %v4895 = vadd.f32 %v4845, 1.0
      %v4896 = vadd.f32 %v4847, 1.0
      %v4897 = vadd.f32 %v4849, 1.0
      %v4898 = vadd.f32 %v4851, 1.0
      %v4899 = vadd.f32 %v4853, 1.0
      %v4900 = vadd.f32 %v4855, 1.0
      %v4901 = vadd.f32 %v4857, 1.0
      %v4902 = vadd.f32 %v4859, 1.0
      %v4903 = vadd.f32 %v4861, 1.0
      %v4904 = vadd.f32 %v4863, 1.0
      %v4905 = vadd.f32 %v4865, 1.0
      %v4906 = vadd.f32 %v4867, 1.0
      %v4907 = vadd.f32 %v4869, 1.0
      %v4908 = vadd.f32 %v4871, 1.0
      %v4909 = vadd.f32 %v4873, 1.0
      %v4910 = vadd.f32 %v4875, 1.0
      %v4911 = vadd.f32 %v4877, 1.0
      %v4912 = vadd.f32 %v4879, 1.0
      %v4913 = vadd.f32 %v4881, 1.0
      %v4914 = vrcp.pop %v4882
      %v4915 = vmul.f32 %v4882, %v4914
      %v4916 = vsub.f32 1.0, %v4915
      %v4917 = vmul.f32 %v4914, %v4916
      %v4918 = vadd.f32 %v4914, %v4917
      %vm4919 = vweird.f32 %v4882
      %vm4920 = vweird.f32 %v4914
      %vm4921 = vmor %vm4919, %vm4920
      %v4922 = vsel %vm4921, %v4914, %v4918
      %v4923 = vand.u32 2147483647, %v4882
      %vm4924 = vcmp.eq.f32.partialorder %v4923, 8.507059e+37
      %v4925 = vand.u32 %v4882, 2147483648
      %v4926 = vor.u32 1.1754944e-38, %v4925
      %v4927 = vsel %vm4924, %v4926, %v4922
      %v4928 = vmul.f32 1.0, %v4927
      %v4929 = vrcp.pop %v4883
      %v4930 = vmul.f32 %v4883, %v4929
      %v4931 = vsub.f32 1.0, %v4930
      %v4932 = vmul.f32 %v4929, %v4931
      %v4933 = vadd.f32 %v4929, %v4932
      %vm4934 = vweird.f32 %v4883
      %vm4935 = vweird.f32 %v4929
      %vm4936 = vmor %vm4934, %vm4935
      %v4937 = vsel %vm4936, %v4929, %v4933
      %v4938 = vand.u32 2147483647, %v4883
      %vm4939 = vcmp.eq.f32.partialorder %v4938, 8.507059e+37
      %v4940 = vand.u32 %v4883, 2147483648
      %v4941 = vor.u32 1.1754944e-38, %v4940
      %v4942 = vsel %vm4939, %v4941, %v4937
      %v4943 = vmul.f32 1.0, %v4942
      %v4944 = vrcp.pop %v4884
      %v4945 = vmul.f32 %v4884, %v4944
      %v4946 = vsub.f32 1.0, %v4945
      %v4947 = vmul.f32 %v4944, %v4946
      %v4948 = vadd.f32 %v4944, %v4947
      %vm4949 = vweird.f32 %v4884
      %vm4950 = vweird.f32 %v4944
      %vm4951 = vmor %vm4949, %vm4950
      %v4952 = vsel %vm4951, %v4944, %v4948
      %v4953 = vand.u32 2147483647, %v4884
      %vm4954 = vcmp.eq.f32.partialorder %v4953, 8.507059e+37
      %v4955 = vand.u32 %v4884, 2147483648
      %v4956 = vor.u32 1.1754944e-38, %v4955
      %v4957 = vsel %vm4954, %v4956, %v4952
      %v4958 = vmul.f32 1.0, %v4957
      %v4959 = vrcp.pop %v4885
      %v4960 = vmul.f32 %v4885, %v4959
      %v4961 = vsub.f32 1.0, %v4960
      %v4962 = vmul.f32 %v4959, %v4961
      %v4963 = vadd.f32 %v4959, %v4962
      %vm4964 = vweird.f32 %v4885
      %vm4965 = vweird.f32 %v4959
      %vm4966 = vmor %vm4964, %vm4965
      %v4967 = vsel %vm4966, %v4959, %v4963
      %v4968 = vand.u32 2147483647, %v4885
      %vm4969 = vcmp.eq.f32.partialorder %v4968, 8.507059e+37
      %v4970 = vand.u32 %v4885, 2147483648
      %v4971 = vor.u32 1.1754944e-38, %v4970
      %v4972 = vsel %vm4969, %v4971, %v4967
      %v4973 = vmul.f32 1.0, %v4972
      %v4974 = vrcp.pop %v4886
      %v4975 = vmul.f32 %v4886, %v4974
      %v4976 = vsub.f32 1.0, %v4975
      %v4977 = vmul.f32 %v4974, %v4976
      %v4978 = vadd.f32 %v4974, %v4977
      %vm4979 = vweird.f32 %v4886
      %vm4980 = vweird.f32 %v4974
      %vm4981 = vmor %vm4979, %vm4980
      %v4982 = vsel %vm4981, %v4974, %v4978
      %v4983 = vand.u32 2147483647, %v4886
      %vm4984 = vcmp.eq.f32.partialorder %v4983, 8.507059e+37
      %v4985 = vand.u32 %v4886, 2147483648
      %v4986 = vor.u32 1.1754944e-38, %v4985
      %v4987 = vsel %vm4984, %v4986, %v4982
      %v4988 = vmul.f32 1.0, %v4987
      %v4989 = vrcp.pop %v4887
      %v4990 = vmul.f32 %v4887, %v4989
      %v4991 = vsub.f32 1.0, %v4990
      %v4992 = vmul.f32 %v4989, %v4991
      %v4993 = vadd.f32 %v4989, %v4992
      %vm4994 = vweird.f32 %v4887
      %vm4995 = vweird.f32 %v4989
      %vm4996 = vmor %vm4994, %vm4995
      %v4997 = vsel %vm4996, %v4989, %v4993
      %v4998 = vand.u32 2147483647, %v4887
      %vm4999 = vcmp.eq.f32.partialorder %v4998, 8.507059e+37
      %v5000 = vand.u32 %v4887, 2147483648
      %v5001 = vor.u32 1.1754944e-38, %v5000
      %v5002 = vsel %vm4999, %v5001, %v4997
      %v5003 = vmul.f32 1.0, %v5002
      %v5004 = vrcp.pop %v4888
      %v5005 = vmul.f32 %v4888, %v5004
      %v5006 = vsub.f32 1.0, %v5005
      %v5007 = vmul.f32 %v5004, %v5006
      %v5008 = vadd.f32 %v5004, %v5007
      %vm5009 = vweird.f32 %v4888
      %vm5010 = vweird.f32 %v5004
      %vm5011 = vmor %vm5009, %vm5010
      %v5012 = vsel %vm5011, %v5004, %v5008
      %v5013 = vand.u32 2147483647, %v4888
      %vm5014 = vcmp.eq.f32.partialorder %v5013, 8.507059e+37
      %v5015 = vand.u32 %v4888, 2147483648
      %v5016 = vor.u32 1.1754944e-38, %v5015
      %v5017 = vsel %vm5014, %v5016, %v5012
      %v5018 = vmul.f32 1.0, %v5017
      %v5019 = vrcp.pop %v4889
      %v5020 = vmul.f32 %v4889, %v5019
      %v5021 = vsub.f32 1.0, %v5020
      %v5022 = vmul.f32 %v5019, %v5021
      %v5023 = vadd.f32 %v5019, %v5022
      %vm5024 = vweird.f32 %v4889
      %vm5025 = vweird.f32 %v5019
      %vm5026 = vmor %vm5024, %vm5025
      %v5027 = vsel %vm5026, %v5019, %v5023
      %v5028 = vand.u32 2147483647, %v4889
      %vm5029 = vcmp.eq.f32.partialorder %v5028, 8.507059e+37
      %v5030 = vand.u32 %v4889, 2147483648
      %v5031 = vor.u32 1.1754944e-38, %v5030
      %v5032 = vsel %vm5029, %v5031, %v5027
      %v5033 = vmul.f32 1.0, %v5032
      %v5034 = vrcp.pop %v4890
      %v5035 = vmul.f32 %v4890, %v5034
      %v5036 = vsub.f32 1.0, %v5035
      %v5037 = vmul.f32 %v5034, %v5036
      %v5038 = vadd.f32 %v5034, %v5037
      %vm5039 = vweird.f32 %v4890
      %vm5040 = vweird.f32 %v5034
      %vm5041 = vmor %vm5039, %vm5040
      %v5042 = vsel %vm5041, %v5034, %v5038
      %v5043 = vand.u32 2147483647, %v4890
      %vm5044 = vcmp.eq.f32.partialorder %v5043, 8.507059e+37
      %v5045 = vand.u32 %v4890, 2147483648
      %v5046 = vor.u32 1.1754944e-38, %v5045
      %v5047 = vsel %vm5044, %v5046, %v5042
      %v5048 = vmul.f32 1.0, %v5047
      %v5049 = vrcp.pop %v4891
      %v5050 = vmul.f32 %v4891, %v5049
      %v5051 = vsub.f32 1.0, %v5050
      %v5052 = vmul.f32 %v5049, %v5051
      %v5053 = vadd.f32 %v5049, %v5052
      %vm5054 = vweird.f32 %v4891
      %vm5055 = vweird.f32 %v5049
      %vm5056 = vmor %vm5054, %vm5055
      %v5057 = vsel %vm5056, %v5049, %v5053
      %v5058 = vand.u32 2147483647, %v4891
      %vm5059 = vcmp.eq.f32.partialorder %v5058, 8.507059e+37
      %v5060 = vand.u32 %v4891, 2147483648
      %v5061 = vor.u32 1.1754944e-38, %v5060
      %v5062 = vsel %vm5059, %v5061, %v5057
      %v5063 = vmul.f32 1.0, %v5062
      %v5064 = vrcp.pop %v4892
      %v5065 = vmul.f32 %v4892, %v5064
      %v5066 = vsub.f32 1.0, %v5065
      %v5067 = vmul.f32 %v5064, %v5066
      %v5068 = vadd.f32 %v5064, %v5067
      %vm5069 = vweird.f32 %v4892
      %vm5070 = vweird.f32 %v5064
      %vm5071 = vmor %vm5069, %vm5070
      %v5072 = vsel %vm5071, %v5064, %v5068
      %v5073 = vand.u32 2147483647, %v4892
      %vm5074 = vcmp.eq.f32.partialorder %v5073, 8.507059e+37
      %v5075 = vand.u32 %v4892, 2147483648
      %v5076 = vor.u32 1.1754944e-38, %v5075
      %v5077 = vsel %vm5074, %v5076, %v5072
      %v5078 = vmul.f32 1.0, %v5077
      %v5079 = vrcp.pop %v4893
      %v5080 = vmul.f32 %v4893, %v5079
      %v5081 = vsub.f32 1.0, %v5080
      %v5082 = vmul.f32 %v5079, %v5081
      %v5083 = vadd.f32 %v5079, %v5082
      %vm5084 = vweird.f32 %v4893
      %vm5085 = vweird.f32 %v5079
      %vm5086 = vmor %vm5084, %vm5085
      %v5087 = vsel %vm5086, %v5079, %v5083
      %v5088 = vand.u32 2147483647, %v4893
      %vm5089 = vcmp.eq.f32.partialorder %v5088, 8.507059e+37
      %v5090 = vand.u32 %v4893, 2147483648
      %v5091 = vor.u32 1.1754944e-38, %v5090
      %v5092 = vsel %vm5089, %v5091, %v5087
      %v5093 = vmul.f32 1.0, %v5092
      %v5094 = vrcp.pop %v4894
      %v5095 = vmul.f32 %v4894, %v5094
      %v5096 = vsub.f32 1.0, %v5095
      %v5097 = vmul.f32 %v5094, %v5096
      %v5098 = vadd.f32 %v5094, %v5097
      %vm5099 = vweird.f32 %v4894
      %vm5100 = vweird.f32 %v5094
      %vm5101 = vmor %vm5099, %vm5100
      %v5102 = vsel %vm5101, %v5094, %v5098
      %v5103 = vand.u32 2147483647, %v4894
      %vm5104 = vcmp.eq.f32.partialorder %v5103, 8.507059e+37
      %v5105 = vand.u32 %v4894, 2147483648
      %v5106 = vor.u32 1.1754944e-38, %v5105
      %v5107 = vsel %vm5104, %v5106, %v5102
      %v5108 = vmul.f32 1.0, %v5107
      %v5109 = vrcp.pop %v4895
      %v5110 = vmul.f32 %v4895, %v5109
      %v5111 = vsub.f32 1.0, %v5110
      %v5112 = vmul.f32 %v5109, %v5111
      %v5113 = vadd.f32 %v5109, %v5112
      %vm5114 = vweird.f32 %v4895
      %vm5115 = vweird.f32 %v5109
      %vm5116 = vmor %vm5114, %vm5115
      %v5117 = vsel %vm5116, %v5109, %v5113
      %v5118 = vand.u32 2147483647, %v4895
      %vm5119 = vcmp.eq.f32.partialorder %v5118, 8.507059e+37
      %v5120 = vand.u32 %v4895, 2147483648
      %v5121 = vor.u32 1.1754944e-38, %v5120
      %v5122 = vsel %vm5119, %v5121, %v5117
      %v5123 = vmul.f32 1.0, %v5122
      %v5124 = vrcp.pop %v4896
      %v5125 = vmul.f32 %v4896, %v5124
      %v5126 = vsub.f32 1.0, %v5125
      %v5127 = vmul.f32 %v5124, %v5126
      %v5128 = vadd.f32 %v5124, %v5127
      %vm5129 = vweird.f32 %v4896
      %vm5130 = vweird.f32 %v5124
      %vm5131 = vmor %vm5129, %vm5130
      %v5132 = vsel %vm5131, %v5124, %v5128
      %v5133 = vand.u32 2147483647, %v4896
      %vm5134 = vcmp.eq.f32.partialorder %v5133, 8.507059e+37
      %v5135 = vand.u32 %v4896, 2147483648
      %v5136 = vor.u32 1.1754944e-38, %v5135
      %v5137 = vsel %vm5134, %v5136, %v5132
      %v5138 = vmul.f32 1.0, %v5137
      %v5139 = vrcp.pop %v4897
      %v5140 = vmul.f32 %v4897, %v5139
      %v5141 = vsub.f32 1.0, %v5140
      %v5142 = vmul.f32 %v5139, %v5141
      %v5143 = vadd.f32 %v5139, %v5142
      %vm5144 = vweird.f32 %v4897
      %vm5145 = vweird.f32 %v5139
      %vm5146 = vmor %vm5144, %vm5145
      %v5147 = vsel %vm5146, %v5139, %v5143
      %v5148 = vand.u32 2147483647, %v4897
      %vm5149 = vcmp.eq.f32.partialorder %v5148, 8.507059e+37
      %v5150 = vand.u32 %v4897, 2147483648
      %v5151 = vor.u32 1.1754944e-38, %v5150
      %v5152 = vsel %vm5149, %v5151, %v5147
      %v5153 = vmul.f32 1.0, %v5152
      %v5154 = vrcp.pop %v4898
      %v5155 = vmul.f32 %v4898, %v5154
      %v5156 = vsub.f32 1.0, %v5155
      %v5157 = vmul.f32 %v5154, %v5156
      %v5158 = vadd.f32 %v5154, %v5157
      %vm5159 = vweird.f32 %v4898
      %vm5160 = vweird.f32 %v5154
      %vm5161 = vmor %vm5159, %vm5160
      %v5162 = vsel %vm5161, %v5154, %v5158
      %v5163 = vand.u32 2147483647, %v4898
      %vm5164 = vcmp.eq.f32.partialorder %v5163, 8.507059e+37
      %v5165 = vand.u32 %v4898, 2147483648
      %v5166 = vor.u32 1.1754944e-38, %v5165
      %v5167 = vsel %vm5164, %v5166, %v5162
      %v5168 = vmul.f32 1.0, %v5167
      %v5169 = vrcp.pop %v4899
      %v5170 = vmul.f32 %v4899, %v5169
      %v5171 = vsub.f32 1.0, %v5170
      %v5172 = vmul.f32 %v5169, %v5171
      %v5173 = vadd.f32 %v5169, %v5172
      %vm5174 = vweird.f32 %v4899
      %vm5175 = vweird.f32 %v5169
      %vm5176 = vmor %vm5174, %vm5175
      %v5177 = vsel %vm5176, %v5169, %v5173
      %v5178 = vand.u32 2147483647, %v4899
      %vm5179 = vcmp.eq.f32.partialorder %v5178, 8.507059e+37
      %v5180 = vand.u32 %v4899, 2147483648
      %v5181 = vor.u32 1.1754944e-38, %v5180
      %v5182 = vsel %vm5179, %v5181, %v5177
      %v5183 = vmul.f32 1.0, %v5182
      %v5184 = vrcp.pop %v4900
      %v5185 = vmul.f32 %v4900, %v5184
      %v5186 = vsub.f32 1.0, %v5185
      %v5187 = vmul.f32 %v5184, %v5186
      %v5188 = vadd.f32 %v5184, %v5187
      %vm5189 = vweird.f32 %v4900
      %vm5190 = vweird.f32 %v5184
      %vm5191 = vmor %vm5189, %vm5190
      %v5192 = vsel %vm5191, %v5184, %v5188
      %v5193 = vand.u32 2147483647, %v4900
      %vm5194 = vcmp.eq.f32.partialorder %v5193, 8.507059e+37
      %v5195 = vand.u32 %v4900, 2147483648
      %v5196 = vor.u32 1.1754944e-38, %v5195
      %v5197 = vsel %vm5194, %v5196, %v5192
      %v5198 = vmul.f32 1.0, %v5197
      %v5199 = vrcp.pop %v4901
      %v5200 = vmul.f32 %v4901, %v5199
      %v5201 = vsub.f32 1.0, %v5200
      %v5202 = vmul.f32 %v5199, %v5201
      %v5203 = vadd.f32 %v5199, %v5202
      %vm5204 = vweird.f32 %v4901
      %vm5205 = vweird.f32 %v5199
      %vm5206 = vmor %vm5204, %vm5205
      %v5207 = vsel %vm5206, %v5199, %v5203
      %v5208 = vand.u32 2147483647, %v4901
      %vm5209 = vcmp.eq.f32.partialorder %v5208, 8.507059e+37
      %v5210 = vand.u32 %v4901, 2147483648
      %v5211 = vor.u32 1.1754944e-38, %v5210
      %v5212 = vsel %vm5209, %v5211, %v5207
      %v5213 = vmul.f32 1.0, %v5212
      %v5214 = vrcp.pop %v4902
      %v5215 = vmul.f32 %v4902, %v5214
      %v5216 = vsub.f32 1.0, %v5215
      %v5217 = vmul.f32 %v5214, %v5216
      %v5218 = vadd.f32 %v5214, %v5217
      %vm5219 = vweird.f32 %v4902
      %vm5220 = vweird.f32 %v5214
      %vm5221 = vmor %vm5219, %vm5220
      %v5222 = vsel %vm5221, %v5214, %v5218
      %v5223 = vand.u32 2147483647, %v4902
      %vm5224 = vcmp.eq.f32.partialorder %v5223, 8.507059e+37
      %v5225 = vand.u32 %v4902, 2147483648
      %v5226 = vor.u32 1.1754944e-38, %v5225
      %v5227 = vsel %vm5224, %v5226, %v5222
      %v5228 = vmul.f32 1.0, %v5227
      %v5229 = vrcp.pop %v4903
      %v5230 = vmul.f32 %v4903, %v5229
      %v5231 = vsub.f32 1.0, %v5230
      %v5232 = vmul.f32 %v5229, %v5231
      %v5233 = vadd.f32 %v5229, %v5232
      %vm5234 = vweird.f32 %v4903
      %vm5235 = vweird.f32 %v5229
      %vm5236 = vmor %vm5234, %vm5235
      %v5237 = vsel %vm5236, %v5229, %v5233
      %v5238 = vand.u32 2147483647, %v4903
      %vm5239 = vcmp.eq.f32.partialorder %v5238, 8.507059e+37
      %v5240 = vand.u32 %v4903, 2147483648
      %v5241 = vor.u32 1.1754944e-38, %v5240
      %v5242 = vsel %vm5239, %v5241, %v5237
      %v5243 = vmul.f32 1.0, %v5242
      %v5244 = vrcp.pop %v4904
      %v5245 = vmul.f32 %v4904, %v5244
      %v5246 = vsub.f32 1.0, %v5245
      %v5247 = vmul.f32 %v5244, %v5246
      %v5248 = vadd.f32 %v5244, %v5247
      %vm5249 = vweird.f32 %v4904
      %vm5250 = vweird.f32 %v5244
      %vm5251 = vmor %vm5249, %vm5250
      %v5252 = vsel %vm5251, %v5244, %v5248
      %v5253 = vand.u32 2147483647, %v4904
      %vm5254 = vcmp.eq.f32.partialorder %v5253, 8.507059e+37
      %v5255 = vand.u32 %v4904, 2147483648
      %v5256 = vor.u32 1.1754944e-38, %v5255
      %v5257 = vsel %vm5254, %v5256, %v5252
      %v5258 = vmul.f32 1.0, %v5257
      %v5259 = vrcp.pop %v4905
      %v5260 = vmul.f32 %v4905, %v5259
      %v5261 = vsub.f32 1.0, %v5260
      %v5262 = vmul.f32 %v5259, %v5261
      %v5263 = vadd.f32 %v5259, %v5262
      %vm5264 = vweird.f32 %v4905
      %vm5265 = vweird.f32 %v5259
      %vm5266 = vmor %vm5264, %vm5265
      %v5267 = vsel %vm5266, %v5259, %v5263
      %v5268 = vand.u32 2147483647, %v4905
      %vm5269 = vcmp.eq.f32.partialorder %v5268, 8.507059e+37
      %v5270 = vand.u32 %v4905, 2147483648
      %v5271 = vor.u32 1.1754944e-38, %v5270
      %v5272 = vsel %vm5269, %v5271, %v5267
      %v5273 = vmul.f32 1.0, %v5272
      %v5274 = vrcp.pop %v4906
      %v5275 = vmul.f32 %v4906, %v5274
      %v5276 = vsub.f32 1.0, %v5275
      %v5277 = vmul.f32 %v5274, %v5276
      %v5278 = vadd.f32 %v5274, %v5277
      %vm5279 = vweird.f32 %v4906
      %vm5280 = vweird.f32 %v5274
      %vm5281 = vmor %vm5279, %vm5280
      %v5282 = vsel %vm5281, %v5274, %v5278
      %v5283 = vand.u32 2147483647, %v4906
      %vm5284 = vcmp.eq.f32.partialorder %v5283, 8.507059e+37
      %v5285 = vand.u32 %v4906, 2147483648
      %v5286 = vor.u32 1.1754944e-38, %v5285
      %v5287 = vsel %vm5284, %v5286, %v5282
      %v5288 = vmul.f32 1.0, %v5287
      %v5289 = vrcp.pop %v4907
      %v5290 = vmul.f32 %v4907, %v5289
      %v5291 = vsub.f32 1.0, %v5290
      %v5292 = vmul.f32 %v5289, %v5291
      %v5293 = vadd.f32 %v5289, %v5292
      %vm5294 = vweird.f32 %v4907
      %vm5295 = vweird.f32 %v5289
      %vm5296 = vmor %vm5294, %vm5295
      %v5297 = vsel %vm5296, %v5289, %v5293
      %v5298 = vand.u32 2147483647, %v4907
      %vm5299 = vcmp.eq.f32.partialorder %v5298, 8.507059e+37
      %v5300 = vand.u32 %v4907, 2147483648
      %v5301 = vor.u32 1.1754944e-38, %v5300
      %v5302 = vsel %vm5299, %v5301, %v5297
      %v5303 = vmul.f32 1.0, %v5302
      %v5304 = vrcp.pop %v4908
      %v5305 = vmul.f32 %v4908, %v5304
      %v5306 = vsub.f32 1.0, %v5305
      %v5307 = vmul.f32 %v5304, %v5306
      %v5308 = vadd.f32 %v5304, %v5307
      %vm5309 = vweird.f32 %v4908
      %vm5310 = vweird.f32 %v5304
      %vm5311 = vmor %vm5309, %vm5310
      %v5312 = vsel %vm5311, %v5304, %v5308
      %v5313 = vand.u32 2147483647, %v4908
      %vm5314 = vcmp.eq.f32.partialorder %v5313, 8.507059e+37
      %v5315 = vand.u32 %v4908, 2147483648
      %v5316 = vor.u32 1.1754944e-38, %v5315
      %v5317 = vsel %vm5314, %v5316, %v5312
      %v5318 = vmul.f32 1.0, %v5317
      %v5319 = vrcp.pop %v4909
      %v5320 = vmul.f32 %v4909, %v5319
      %v5321 = vsub.f32 1.0, %v5320
      %v5322 = vmul.f32 %v5319, %v5321
      %v5323 = vadd.f32 %v5319, %v5322
      %vm5324 = vweird.f32 %v4909
      %vm5325 = vweird.f32 %v5319
      %vm5326 = vmor %vm5324, %vm5325
      %v5327 = vsel %vm5326, %v5319, %v5323
      %v5328 = vand.u32 2147483647, %v4909
      %vm5329 = vcmp.eq.f32.partialorder %v5328, 8.507059e+37
      %v5330 = vand.u32 %v4909, 2147483648
      %v5331 = vor.u32 1.1754944e-38, %v5330
      %v5332 = vsel %vm5329, %v5331, %v5327
      %v5333 = vmul.f32 1.0, %v5332
      %v5334 = vrcp.pop %v4910
      %v5335 = vmul.f32 %v4910, %v5334
      %v5336 = vsub.f32 1.0, %v5335
      %v5337 = vmul.f32 %v5334, %v5336
      %v5338 = vadd.f32 %v5334, %v5337
      %vm5339 = vweird.f32 %v4910
      %vm5340 = vweird.f32 %v5334
      %vm5341 = vmor %vm5339, %vm5340
      %v5342 = vsel %vm5341, %v5334, %v5338
      %v5343 = vand.u32 2147483647, %v4910
      %vm5344 = vcmp.eq.f32.partialorder %v5343, 8.507059e+37
      %v5345 = vand.u32 %v4910, 2147483648
      %v5346 = vor.u32 1.1754944e-38, %v5345
      %v5347 = vsel %vm5344, %v5346, %v5342
      %v5348 = vmul.f32 1.0, %v5347
      %v5349 = vrcp.pop %v4911
      %v5350 = vmul.f32 %v4911, %v5349
      %v5351 = vsub.f32 1.0, %v5350
      %v5352 = vmul.f32 %v5349, %v5351
      %v5353 = vadd.f32 %v5349, %v5352
      %vm5354 = vweird.f32 %v4911
      %vm5355 = vweird.f32 %v5349
      %vm5356 = vmor %vm5354, %vm5355
      %v5357 = vsel %vm5356, %v5349, %v5353
      %v5358 = vand.u32 2147483647, %v4911
      %vm5359 = vcmp.eq.f32.partialorder %v5358, 8.507059e+37
      %v5360 = vand.u32 %v4911, 2147483648
      %v5361 = vor.u32 1.1754944e-38, %v5360
      %v5362 = vsel %vm5359, %v5361, %v5357
      %v5363 = vmul.f32 1.0, %v5362
      %v5364 = vrcp.pop %v4912
      %v5365 = vmul.f32 %v4912, %v5364
      %v5366 = vsub.f32 1.0, %v5365
      %v5367 = vmul.f32 %v5364, %v5366
      %v5368 = vadd.f32 %v5364, %v5367
      %vm5369 = vweird.f32 %v4912
      %vm5370 = vweird.f32 %v5364
      %vm5371 = vmor %vm5369, %vm5370
      %v5372 = vsel %vm5371, %v5364, %v5368
      %v5373 = vand.u32 2147483647, %v4912
      %vm5374 = vcmp.eq.f32.partialorder %v5373, 8.507059e+37
      %v5375 = vand.u32 %v4912, 2147483648
      %v5376 = vor.u32 1.1754944e-38, %v5375
      %v5377 = vsel %vm5374, %v5376, %v5372
      %v5378 = vmul.f32 1.0, %v5377
      %v5379 = vrcp.pop %v4913
      %v5380 = vmul.f32 %v4913, %v5379
      %v5381 = vsub.f32 1.0, %v5380
      %v5382 = vmul.f32 %v5379, %v5381
      %v5383 = vadd.f32 %v5379, %v5382
      %vm5384 = vweird.f32 %v4913
      %vm5385 = vweird.f32 %v5379
      %vm5386 = vmor %vm5384, %vm5385
      %v5387 = vsel %vm5386, %v5379, %v5383
      %v5388 = vand.u32 2147483647, %v4913
      %vm5389 = vcmp.eq.f32.partialorder %v5388, 8.507059e+37
      %v5390 = vand.u32 %v4913, 2147483648
      %v5391 = vor.u32 1.1754944e-38, %v5390
      %v5392 = vsel %vm5389, %v5391, %v5387
      %v5393 = vmul.f32 1.0, %v5392
      %v5394 = vmul.f32 %v4754, %v4928
      %v5395 = vmul.f32 %v4755, %v4943
      %v5396 = vmul.f32 %v4756, %v4958
      %v5397 = vmul.f32 %v4757, %v4973
      %v5398 = vmul.f32 %v4758, %v4988
      %v5399 = vmul.f32 %v4759, %v5003
      %v5400 = vmul.f32 %v4760, %v5018
      %v5401 = vmul.f32 %v4761, %v5033
      %v5402 = vmul.f32 %v4762, %v5048
      %v5403 = vmul.f32 %v4763, %v5063
      %v5404 = vmul.f32 %v4764, %v5078
      %v5405 = vmul.f32 %v4765, %v5093
      %v5406 = vmul.f32 %v4766, %v5108
      %v5407 = vmul.f32 %v4767, %v5123
      %v5408 = vmul.f32 %v4768, %v5138
      %v5409 = vmul.f32 %v4769, %v5153
      %v5410 = vmul.f32 %v4770, %v5168
      %v5411 = vmul.f32 %v4771, %v5183
      %v5412 = vmul.f32 %v4772, %v5198
      %v5413 = vmul.f32 %v4773, %v5213
      %v5414 = vmul.f32 %v4774, %v5228
      %v5415 = vmul.f32 %v4775, %v5243
      %v5416 = vmul.f32 %v4776, %v5258
      %v5417 = vmul.f32 %v4777, %v5273
      %v5418 = vmul.f32 %v4778, %v5288
      %v5419 = vmul.f32 %v4779, %v5303
      %v5420 = vmul.f32 %v4780, %v5318
      %v5421 = vmul.f32 %v4781, %v5333
      %v5422 = vmul.f32 %v4782, %v5348
      %v5423 = vmul.f32 %v4783, %v5363
      %v5424 = vmul.f32 %v4784, %v5378
      %v5425 = vmul.f32 %v4785, %v5393
      %v5426 = vsel %vm3742, %v5394, 0.0
      %v5427 = vsel %vm3742, %v5395, 0.0
      %v5428 = vadd.f32 %v5426, %v5427
      %v5429 = vsel %vm3742, %v5396, 0.0
      %v5430 = vadd.f32 %v5428, %v5429
      %v5431 = vsel %vm3742, %v5397, 0.0
      %v5432 = vadd.f32 %v5430, %v5431
      %v5433 = vsel %vm3742, %v5398, 0.0
      %v5434 = vadd.f32 %v5432, %v5433
      %v5435 = vsel %vm3742, %v5399, 0.0
      %v5436 = vadd.f32 %v5434, %v5435
      %v5437 = vsel %vm3742, %v5400, 0.0
      %v5438 = vadd.f32 %v5436, %v5437
      %v5439 = vsel %vm3742, %v5401, 0.0
      %v5440 = vadd.f32 %v5438, %v5439
      %v5441 = vsel %vm3742, %v5402, 0.0
      %v5442 = vadd.f32 %v5440, %v5441
      %v5443 = vsel %vm3742, %v5403, 0.0
      %v5444 = vadd.f32 %v5442, %v5443
      %v5445 = vsel %vm3742, %v5404, 0.0
      %v5446 = vadd.f32 %v5444, %v5445
      %v5447 = vsel %vm3742, %v5405, 0.0
      %v5448 = vadd.f32 %v5446, %v5447
      %v5449 = vsel %vm3742, %v5406, 0.0
      %v5450 = vadd.f32 %v5448, %v5449
      %v5451 = vsel %vm3742, %v5407, 0.0
      %v5452 = vadd.f32 %v5450, %v5451
      %v5453 = vsel %vm3742, %v5408, 0.0
      %v5454 = vadd.f32 %v5452, %v5453
      %v5455 = vsel %vm3742, %v5409, 0.0
      %v5456 = vadd.f32 %v5454, %v5455
      %v5457 = vsel %vm3742, %v5410, 0.0
      %v5458 = vadd.f32 %v5456, %v5457
      %v5459 = vsel %vm3742, %v5411, 0.0
      %v5460 = vadd.f32 %v5458, %v5459
      %v5461 = vsel %vm3742, %v5412, 0.0
      %v5462 = vadd.f32 %v5460, %v5461
      %v5463 = vsel %vm3742, %v5413, 0.0
      %v5464 = vadd.f32 %v5462, %v5463
      %v5465 = vsel %vm3742, %v5414, 0.0
      %v5466 = vadd.f32 %v5464, %v5465
      %v5467 = vsel %vm3742, %v5415, 0.0
      %v5468 = vadd.f32 %v5466, %v5467
      %v5469 = vsel %vm3742, %v5416, 0.0
      %v5470 = vadd.f32 %v5468, %v5469
      %v5471 = vsel %vm3742, %v5417, 0.0
      %v5472 = vadd.f32 %v5470, %v5471
      %v5473 = vsel %vm3742, %v5418, 0.0
      %v5474 = vadd.f32 %v5472, %v5473
      %v5475 = vsel %vm3742, %v5419, 0.0
      %v5476 = vadd.f32 %v5474, %v5475
      %v5477 = vsel %vm3742, %v5420, 0.0
      %v5478 = vadd.f32 %v5476, %v5477
      %v5479 = vsel %vm3742, %v5421, 0.0
      %v5480 = vadd.f32 %v5478, %v5479
      %v5481 = vsel %vm3742, %v5422, 0.0
      %v5482 = vadd.f32 %v5480, %v5481
      %v5483 = vsel %vm3742, %v5423, 0.0
      %v5484 = vadd.f32 %v5482, %v5483
      %v5485 = vsel %vm3742, %v5424, 0.0
      %v5486 = vadd.f32 %v5484, %v5485
      %v5487 = vsel %vm3742, %v5425, 0.0
      %v5488 = vadd.f32 %v5486, %v5487
      %v5489 = vrot.slane %v5488, 4
      %v5490 = vadd.f32 %v5488, %v5489
      %v5491 = vrot.slane %v5490, 2
      %v5492 = vadd.f32 %v5490, %v5491
      %v5493 = vrot.slane %v5492, 1
      %v5494 = vadd.f32 %v5492, %v5493
      %v5495 = vrcp.pop 256.0
      %v5496 = vmul.f32 256.0, %v5495
      %v5497 = vsub.f32 1.0, %v5496
      %v5498 = vmul.f32 %v5495, %v5497
      %v5499 = vadd.f32 %v5495, %v5498
      %vm5500 = vweird.f32 %v5495
      %v5501 = vsel %vm5500, %v5495, %v5499
      %v5502 = vmul.f32 %v5494, %v5501
      %v5503 = vld [vmem:[%s7] sm:$0xff]
      %v5504 = vld [vmem:[%s7 + $0x8] sm:$0xff]
      %v5505 = vld [vmem:[#allocation4] sm:$0x1]
      %v5507 = vsel %vm3742, %v5502, 0
      %5509 = vmatpush.msra.mxu0 0.0
      %5510 = vmatpush.msra.mxu0 0.0
      %5511 = vmatpush.msra.mxu0 0.0
      %5512 = vmatpush.msra.mxu0 0.0
      %5513 = vmatpush.msra.mxu0 0.0
      %5514 = vmatpush.msra.mxu0 0.0
      %5515 = vmatpush.msra.mxu0 0.0
      %5516 = vmatpush.msra.mxu0 0.0
      %5517 = vmatpush.msra.mxu0 0.0
      %5518 = vmatpush.msra.mxu0 0.0
      %5519 = vmatpush.msra.mxu0 0.0
      %5520 = vmatpush.msra.mxu0 0.0
      %5521 = vmatpush.msra.mxu0 0.0
      %5522 = vmatpush.msra.mxu0 0.0
      %5523 = vmatpush.msra.mxu0 %v5504
      %5524 = vmatpush.msra.mxu0 %v5503
      %5525 = vmatmul.f32.gmra.mxu0 %v5507
      %v5526 = vpop.f32.mrf.mxu0
      %v5527 = vadd.f32 %v5505, %v5526
      %5528 = vdwg.mxu0
      %v5529 = vsub.f32 0.0, %v5527
      %v5530 = vmul.f32 %v5529, 1.442695
      %v5531 = vpow.pop %v5530
      %v5532 = vadd.f32 %v5531, 1.0
      %v5533 = vrcp.pop %v5532
      %v5534 = vmul.f32 %v5532, %v5533
      %v5535 = vsub.f32 1.0, %v5534
      %v5536 = vmul.f32 %v5533, %v5535
      %v5537 = vadd.f32 %v5533, %v5536
      %vm5538 = vweird.f32 %v5532
      %vm5539 = vweird.f32 %v5533
      %vm5540 = vmor %vm5538, %vm5539
      %v5541 = vsel %vm5540, %v5533, %v5537
      %v5542 = vand.u32 2147483647, %v5532
      %vm5543 = vcmp.eq.f32.partialorder %v5542, 8.507059e+37
      %v5544 = vand.u32 %v5532, 2147483648
      %v5545 = vor.u32 1.1754944e-38, %v5544
      %v5546 = vsel %vm5543, %v5545, %v5541
      %v5547 = vmul.f32 1.0, %v5546
      %v5548 = vmul.f32 %v5527, %v5547
      %v5549 = vld [vmem:[%s9] sm:$0x1]
      %v5550 = vld [vmem:[%s10] sm:$0x1]
      %vm5551 = vcmask 7168
      %v5553 = vsel %vm5551, %v5548, 0
      %vm5555 = vcmask 1040384
      %v5557 = vsel %vm5555, %v5549, 0
      %5559 = vmatpush.msra.mxu0 0.0
      %5560 = vmatpush.msra.mxu0 0.0
      %5561 = vmatpush.msra.mxu0 0.0
      %5562 = vmatpush.msra.mxu0 0.0
      %5563 = vmatpush.msra.mxu0 0.0
      %5564 = vmatpush.msra.mxu0 0.0
      %5565 = vmatpush.msra.mxu0 0.0
      %5566 = vmatpush.msra.mxu0 0.0
      %5567 = vmatpush.msra.mxu0 0.0
      %5568 = vmatpush.msra.mxu0 0.0
      %5569 = vmatpush.msra.mxu0 0.0
      %5570 = vmatpush.msra.mxu0 0.0
      %5571 = vmatpush.msra.mxu0 0.0
      %5572 = vmatpush.msra.mxu0 0.0
      %5573 = vmatpush.msra.mxu0 0.0
      %5574 = vmatpush.msra.mxu0 %v5557
      %5575 = vmatmul.f32.gmra.mxu0 %v5553
      %v5576 = vpop.f32.mrf.mxu0
      %v5577 = vadd.f32 %v5550, %v5576
      %5578 = vdwg.mxu0
      %v5579 = vsub.f32 0.0, %v5577
      %v5580 = vmul.f32 %v5579, 1.442695
      %v5581 = vpow.pop %v5580
      %v5582 = vadd.f32 %v5581, 1.0
      %v5583 = vrcp.pop %v5582
      %v5584 = vmul.f32 %v5582, %v5583
      %v5585 = vsub.f32 1.0, %v5584
      %v5586 = vmul.f32 %v5583, %v5585
      %v5587 = vadd.f32 %v5583, %v5586
      %vm5588 = vweird.f32 %v5582
      %vm5589 = vweird.f32 %v5583
      %vm5590 = vmor %vm5588, %vm5589
      %v5591 = vsel %vm5590, %v5583, %v5587
      %v5592 = vand.u32 2147483647, %v5582
      %vm5593 = vcmp.eq.f32.partialorder %v5592, 8.507059e+37
      %v5594 = vand.u32 %v5582, 2147483648
      %v5595 = vor.u32 1.1754944e-38, %v5594
      %v5596 = vsel %vm5593, %v5595, %v5591
      %v5597 = vmul.f32 1.0, %v5596
      %v5598 = vperm.slane %v5597, 0
      %v5599 = vmul.f32 %v5394, %v5598
      %v5600 = vmul.f32 %v5395, %v5598
      %v5601 = vmul.f32 %v5396, %v5598
      %v5602 = vmul.f32 %v5397, %v5598
      %v5603 = vmul.f32 %v5398, %v5598
      %v5604 = vmul.f32 %v5399, %v5598
      %v5605 = vmul.f32 %v5400, %v5598
      %v5606 = vmul.f32 %v5401, %v5598
      %v5607 = vmul.f32 %v5402, %v5598
      %v5608 = vmul.f32 %v5403, %v5598
      %v5609 = vmul.f32 %v5404, %v5598
      %v5610 = vmul.f32 %v5405, %v5598
      %v5611 = vmul.f32 %v5406, %v5598
      %v5612 = vmul.f32 %v5407, %v5598
      %v5613 = vmul.f32 %v5408, %v5598
      %v5614 = vmul.f32 %v5409, %v5598
      %v5615 = vmul.f32 %v5410, %v5598
      %v5616 = vmul.f32 %v5411, %v5598
      %v5617 = vmul.f32 %v5412, %v5598
      %v5618 = vmul.f32 %v5413, %v5598
      %v5619 = vmul.f32 %v5414, %v5598
      %v5620 = vmul.f32 %v5415, %v5598
      %v5621 = vmul.f32 %v5416, %v5598
      %v5622 = vmul.f32 %v5417, %v5598
      %v5623 = vmul.f32 %v5418, %v5598
      %v5624 = vmul.f32 %v5419, %v5598
      %v5625 = vmul.f32 %v5420, %v5598
      %v5626 = vmul.f32 %v5421, %v5598
      %v5627 = vmul.f32 %v5422, %v5598
      %v5628 = vmul.f32 %v5423, %v5598
      %v5629 = vmul.f32 %v5424, %v5598
      %v5630 = vmul.f32 %v5425, %v5598
      %v5631 = vld [vmem:[%s11] sm:$0xff]
      %v5632 = vld [vmem:[%s11 + $0x8] sm:$0xff]
      %v5634 = vsel %vm3742, %v5599, 0
      %v5637 = vsel %vm3742, %v5600, 0
      %v5640 = vsel %vm3742, %v5601, 0
      %v5643 = vsel %vm3742, %v5602, 0
      %v5646 = vsel %vm3742, %v5603, 0
      %v5649 = vsel %vm3742, %v5604, 0
      %v5652 = vsel %vm3742, %v5605, 0
      %v5655 = vsel %vm3742, %v5606, 0
      %v5658 = vsel %vm3742, %v5607, 0
      %v5661 = vsel %vm3742, %v5608, 0
      %v5664 = vsel %vm3742, %v5609, 0
      %v5667 = vsel %vm3742, %v5610, 0
      %v5670 = vsel %vm3742, %v5611, 0
      %v5673 = vsel %vm3742, %v5612, 0
      %v5676 = vsel %vm3742, %v5613, 0
      %v5679 = vsel %vm3742, %v5614, 0
      %v5682 = vsel %vm3742, %v5615, 0
      %v5685 = vsel %vm3742, %v5616, 0
      %v5688 = vsel %vm3742, %v5617, 0
      %v5691 = vsel %vm3742, %v5618, 0
      %v5694 = vsel %vm3742, %v5619, 0
      %v5697 = vsel %vm3742, %v5620, 0
      %v5700 = vsel %vm3742, %v5621, 0
      %v5703 = vsel %vm3742, %v5622, 0
      %v5706 = vsel %vm3742, %v5623, 0
      %v5709 = vsel %vm3742, %v5624, 0
      %v5712 = vsel %vm3742, %v5625, 0
      %v5715 = vsel %vm3742, %v5626, 0
      %v5718 = vsel %vm3742, %v5627, 0
      %v5721 = vsel %vm3742, %v5628, 0
      %v5724 = vsel %vm3742, %v5629, 0
      %v5727 = vsel %vm3742, %v5630, 0
      %5729 = vmatpush.msra.mxu0 0.0
      %5730 = vmatpush.msra.mxu0 0.0
      %5731 = vmatpush.msra.mxu0 0.0
      %5732 = vmatpush.msra.mxu0 0.0
      %5733 = vmatpush.msra.mxu0 0.0
      %5734 = vmatpush.msra.mxu0 0.0
      %5735 = vmatpush.msra.mxu0 0.0
      %5736 = vmatpush.msra.mxu0 0.0
      %5737 = vmatpush.msra.mxu0 0.0
      %5738 = vmatpush.msra.mxu0 0.0
      %5739 = vmatpush.msra.mxu0 0.0
      %5740 = vmatpush.msra.mxu0 0.0
      %5741 = vmatpush.msra.mxu0 0.0
      %5742 = vmatpush.msra.mxu0 0.0
      %5743 = vmatpush.msra.mxu0 %v5632
      %5744 = vmatpush.msra.mxu0 %v5631
      %5745 = vmatmul.f32.gmra.mxu0 %v5634
      %v5746 = vpop.f32.mrf.mxu0
      %v5747 = vadd.f32 0.0, %v5746
      %5748 = vmatmul.f32.gmra.mxu0 %v5637
      %v5749 = vpop.f32.mrf.mxu0
      %v5750 = vadd.f32 0.0, %v5749
      %5751 = vmatmul.f32.gmra.mxu0 %v5640
      %v5752 = vpop.f32.mrf.mxu0
      %v5753 = vadd.f32 0.0, %v5752
      %5754 = vmatmul.f32.gmra.mxu0 %v5643
      %v5755 = vpop.f32.mrf.mxu0
      %v5756 = vadd.f32 0.0, %v5755
      %5757 = vmatmul.f32.gmra.mxu0 %v5646
      %v5758 = vpop.f32.mrf.mxu0
      %v5759 = vadd.f32 0.0, %v5758
      %5760 = vmatmul.f32.gmra.mxu0 %v5649
      %v5761 = vpop.f32.mrf.mxu0
      %v5762 = vadd.f32 0.0, %v5761
      %5763 = vmatmul.f32.gmra.mxu0 %v5652
      %v5764 = vpop.f32.mrf.mxu0
      %v5765 = vadd.f32 0.0, %v5764
      %5766 = vmatmul.f32.gmra.mxu0 %v5655
      %v5767 = vpop.f32.mrf.mxu0
      %v5768 = vadd.f32 0.0, %v5767
      %5769 = vmatmul.f32.gmra.mxu0 %v5658
      %v5770 = vpop.f32.mrf.mxu0
      %v5771 = vadd.f32 0.0, %v5770
      %5772 = vmatmul.f32.gmra.mxu0 %v5661
      %v5773 = vpop.f32.mrf.mxu0
      %v5774 = vadd.f32 0.0, %v5773
      %5775 = vmatmul.f32.gmra.mxu0 %v5664
      %v5776 = vpop.f32.mrf.mxu0
      %v5777 = vadd.f32 0.0, %v5776
      %5778 = vmatmul.f32.gmra.mxu0 %v5667
      %v5779 = vpop.f32.mrf.mxu0
      %v5780 = vadd.f32 0.0, %v5779
      %5781 = vmatmul.f32.gmra.mxu0 %v5670
      %v5782 = vpop.f32.mrf.mxu0
      %v5783 = vadd.f32 0.0, %v5782
      %5784 = vmatmul.f32.gmra.mxu0 %v5673
      %v5785 = vpop.f32.mrf.mxu0
      %v5786 = vadd.f32 0.0, %v5785
      %5787 = vmatmul.f32.gmra.mxu0 %v5676
      %v5788 = vpop.f32.mrf.mxu0
      %v5789 = vadd.f32 0.0, %v5788
      %5790 = vmatmul.f32.gmra.mxu0 %v5679
      %v5791 = vpop.f32.mrf.mxu0
      %v5792 = vadd.f32 0.0, %v5791
      %5793 = vmatmul.f32.gmra.mxu0 %v5682
      %v5794 = vpop.f32.mrf.mxu0
      %v5795 = vadd.f32 0.0, %v5794
      %5796 = vmatmul.f32.gmra.mxu0 %v5685
      %v5797 = vpop.f32.mrf.mxu0
      %v5798 = vadd.f32 0.0, %v5797
      %5799 = vmatmul.f32.gmra.mxu0 %v5688
      %v5800 = vpop.f32.mrf.mxu0
      %v5801 = vadd.f32 0.0, %v5800
      %5802 = vmatmul.f32.gmra.mxu0 %v5691
      %v5803 = vpop.f32.mrf.mxu0
      %v5804 = vadd.f32 0.0, %v5803
      %5805 = vmatmul.f32.gmra.mxu0 %v5694
      %v5806 = vpop.f32.mrf.mxu0
      %v5807 = vadd.f32 0.0, %v5806
      %5808 = vmatmul.f32.gmra.mxu0 %v5697
      %v5809 = vpop.f32.mrf.mxu0
      %v5810 = vadd.f32 0.0, %v5809
      %5811 = vmatmul.f32.gmra.mxu0 %v5700
      %v5812 = vpop.f32.mrf.mxu0
      %v5813 = vadd.f32 0.0, %v5812
      %5814 = vmatmul.f32.gmra.mxu0 %v5703
      %v5815 = vpop.f32.mrf.mxu0
      %v5816 = vadd.f32 0.0, %v5815
      %5817 = vmatmul.f32.gmra.mxu0 %v5706
      %v5818 = vpop.f32.mrf.mxu0
      %v5819 = vadd.f32 0.0, %v5818
      %5820 = vmatmul.f32.gmra.mxu0 %v5709
      %v5821 = vpop.f32.mrf.mxu0
      %v5822 = vadd.f32 0.0, %v5821
      %5823 = vmatmul.f32.gmra.mxu0 %v5712
      %v5824 = vpop.f32.mrf.mxu0
      %v5825 = vadd.f32 0.0, %v5824
      %5826 = vmatmul.f32.gmra.mxu0 %v5715
      %v5827 = vpop.f32.mrf.mxu0
      %v5828 = vadd.f32 0.0, %v5827
      %5829 = vmatmul.f32.gmra.mxu0 %v5718
      %v5830 = vpop.f32.mrf.mxu0
      %v5831 = vadd.f32 0.0, %v5830
      %5832 = vmatmul.f32.gmra.mxu0 %v5721
      %v5833 = vpop.f32.mrf.mxu0
      %v5834 = vadd.f32 0.0, %v5833
      %5835 = vmatmul.f32.gmra.mxu0 %v5724
      %v5836 = vpop.f32.mrf.mxu0
      %v5837 = vadd.f32 0.0, %v5836
      %5838 = vmatmul.f32.gmra.mxu0 %v5727
      %v5839 = vpop.f32.mrf.mxu0
      %v5840 = vadd.f32 0.0, %v5839
      %5841 = vdwg.mxu0
      %v5842 = vld [vmem:[%s12] sm:$0x1]
      %v5844 = vperm.slane %v5842, 0
      %v5846 = vmul.f32 %v5747, %v5844
      %v5847 = vmul.f32 %v5750, %v5844
      %v5848 = vmul.f32 %v5753, %v5844
      %v5849 = vmul.f32 %v5756, %v5844
      %v5850 = vmul.f32 %v5759, %v5844
      %v5851 = vmul.f32 %v5762, %v5844
      %v5852 = vmul.f32 %v5765, %v5844
      %v5853 = vmul.f32 %v5768, %v5844
      %v5854 = vmul.f32 %v5771, %v5844
      %v5855 = vmul.f32 %v5774, %v5844
      %v5856 = vmul.f32 %v5777, %v5844
      %v5857 = vmul.f32 %v5780, %v5844
      %v5858 = vmul.f32 %v5783, %v5844
      %v5859 = vmul.f32 %v5786, %v5844
      %v5860 = vmul.f32 %v5789, %v5844
      %v5861 = vmul.f32 %v5792, %v5844
      %v5862 = vmul.f32 %v5795, %v5844
      %v5863 = vmul.f32 %v5798, %v5844
      %v5864 = vmul.f32 %v5801, %v5844
      %v5865 = vmul.f32 %v5804, %v5844
      %v5866 = vmul.f32 %v5807, %v5844
      %v5867 = vmul.f32 %v5810, %v5844
      %v5868 = vmul.f32 %v5813, %v5844
      %v5869 = vmul.f32 %v5816, %v5844
      %v5870 = vmul.f32 %v5819, %v5844
      %v5871 = vmul.f32 %v5822, %v5844
      %v5872 = vmul.f32 %v5825, %v5844
      %v5873 = vmul.f32 %v5828, %v5844
      %v5874 = vmul.f32 %v5831, %v5844
      %v5875 = vmul.f32 %v5834, %v5844
      %v5876 = vmul.f32 %v5837, %v5844
      %v5877 = vmul.f32 %v5840, %v5844
      %v5878 = vld [vmem:[%s13] sm:$0x1]
      %v5880 = vperm.slane %v5878, 0
      %v5882 = vadd.f32 %v5846, %v5880
      %v5883 = vadd.f32 %v5847, %v5880
      %v5884 = vadd.f32 %v5848, %v5880
      %v5885 = vadd.f32 %v5849, %v5880
      %v5886 = vadd.f32 %v5850, %v5880
      %v5887 = vadd.f32 %v5851, %v5880
      %v5888 = vadd.f32 %v5852, %v5880
      %v5889 = vadd.f32 %v5853, %v5880
      %v5890 = vadd.f32 %v5854, %v5880
      %v5891 = vadd.f32 %v5855, %v5880
      %v5892 = vadd.f32 %v5856, %v5880
      %v5893 = vadd.f32 %v5857, %v5880
      %v5894 = vadd.f32 %v5858, %v5880
      %v5895 = vadd.f32 %v5859, %v5880
      %v5896 = vadd.f32 %v5860, %v5880
      %v5897 = vadd.f32 %v5861, %v5880
      %v5898 = vadd.f32 %v5862, %v5880
      %v5899 = vadd.f32 %v5863, %v5880
      %v5900 = vadd.f32 %v5864, %v5880
      %v5901 = vadd.f32 %v5865, %v5880
      %v5902 = vadd.f32 %v5866, %v5880
      %v5903 = vadd.f32 %v5867, %v5880
      %v5904 = vadd.f32 %v5868, %v5880
      %v5905 = vadd.f32 %v5869, %v5880
      %v5906 = vadd.f32 %v5870, %v5880
      %v5907 = vadd.f32 %v5871, %v5880
      %v5908 = vadd.f32 %v5872, %v5880
      %v5909 = vadd.f32 %v5873, %v5880
      %v5910 = vadd.f32 %v5874, %v5880
      %v5911 = vadd.f32 %v5875, %v5880
      %v5912 = vadd.f32 %v5876, %v5880
      %v5913 = vadd.f32 %v5877, %v5880
      %v5914 = vld [vmem:[%s464] sm:$0xff]
      %v5915 = vld [vmem:[%s464 + $0x8] sm:$0xff]
      %v5916 = vld [vmem:[%s464 + $0x10] sm:$0xff]
      %v5917 = vld [vmem:[%s464 + $0x18] sm:$0xff]
      %v5918 = vld [vmem:[%s464 + $0x20] sm:$0xff]
      %v5919 = vld [vmem:[%s464 + $0x28] sm:$0xff]
      %v5920 = vld [vmem:[%s464 + $0x30] sm:$0xff]
      %v5921 = vld [vmem:[%s464 + $0x38] sm:$0xff]
      %v5922 = vld [vmem:[%s464 + $0x40] sm:$0xff]
      %v5923 = vld [vmem:[%s464 + $0x48] sm:$0xff]
      %v5924 = vld [vmem:[%s464 + $0x50] sm:$0xff]
      %v5925 = vld [vmem:[%s464 + $0x58] sm:$0xff]
      %v5926 = vld [vmem:[%s464 + $0x60] sm:$0xff]
      %v5927 = vld [vmem:[%s464 + $0x68] sm:$0xff]
      %v5928 = vld [vmem:[%s464 + $0x70] sm:$0xff]
      %v5929 = vld [vmem:[%s464 + $0x78] sm:$0xff]
      %v5930 = vld [vmem:[%s464 + $0x80] sm:$0xff]
      %v5931 = vld [vmem:[%s464 + $0x88] sm:$0xff]
      %v5932 = vld [vmem:[%s464 + $0x90] sm:$0xff]
      %v5933 = vld [vmem:[%s464 + $0x98] sm:$0xff]
      %v5934 = vld [vmem:[%s464 + $0xa0] sm:$0xff]
      %v5935 = vld [vmem:[%s464 + $0xa8] sm:$0xff]
      %v5936 = vld [vmem:[%s464 + $0xb0] sm:$0xff]
      %v5937 = vld [vmem:[%s464 + $0xb8] sm:$0xff]
      %v5938 = vld [vmem:[%s464 + $0xc0] sm:$0xff]
      %v5939 = vld [vmem:[%s464 + $0xc8] sm:$0xff]
      %v5940 = vld [vmem:[%s464 + $0xd0] sm:$0xff]
      %v5941 = vld [vmem:[%s464 + $0xd8] sm:$0xff]
      %v5942 = vld [vmem:[%s464 + $0xe0] sm:$0xff]
      %v5943 = vld [vmem:[%s464 + $0xe8] sm:$0xff]
      %v5944 = vld [vmem:[%s464 + $0xf0] sm:$0xff]
      %v5945 = vld [vmem:[%s464 + $0xf8] sm:$0xff]
      %v5946 = vadd.f32 %v5882, %v5914
      %v5947 = vadd.f32 %v5883, %v5915
      %v5948 = vadd.f32 %v5884, %v5916
      %v5949 = vadd.f32 %v5885, %v5917
      %v5950 = vadd.f32 %v5886, %v5918
      %v5951 = vadd.f32 %v5887, %v5919
      %v5952 = vadd.f32 %v5888, %v5920
      %v5953 = vadd.f32 %v5889, %v5921
      %v5954 = vadd.f32 %v5890, %v5922
      %v5955 = vadd.f32 %v5891, %v5923
      %v5956 = vadd.f32 %v5892, %v5924
      %v5957 = vadd.f32 %v5893, %v5925
      %v5958 = vadd.f32 %v5894, %v5926
      %v5959 = vadd.f32 %v5895, %v5927
      %v5960 = vadd.f32 %v5896, %v5928
      %v5961 = vadd.f32 %v5897, %v5929
      %v5962 = vadd.f32 %v5898, %v5930
      %v5963 = vadd.f32 %v5899, %v5931
      %v5964 = vadd.f32 %v5900, %v5932
      %v5965 = vadd.f32 %v5901, %v5933
      %v5966 = vadd.f32 %v5902, %v5934
      %v5967 = vadd.f32 %v5903, %v5935
      %v5968 = vadd.f32 %v5904, %v5936
      %v5969 = vadd.f32 %v5905, %v5937
      %v5970 = vadd.f32 %v5906, %v5938
      %v5971 = vadd.f32 %v5907, %v5939
      %v5972 = vadd.f32 %v5908, %v5940
      %v5973 = vadd.f32 %v5909, %v5941
      %v5974 = vadd.f32 %v5910, %v5942
      %v5975 = vadd.f32 %v5911, %v5943
      %v5976 = vadd.f32 %v5912, %v5944
      %v5977 = vadd.f32 %v5913, %v5945
      %5978 = vst.msk [vmem:[%s469] sm:$0xff] %vm470, %v5946
      %5979 = vst.msk [vmem:[%s469 + $0x8] sm:$0xff] %vm470, %v5947
      %5980 = vst.msk [vmem:[%s469 + $0x10] sm:$0xff] %vm470, %v5948
      %5981 = vst.msk [vmem:[%s469 + $0x18] sm:$0xff] %vm470, %v5949
      %5982 = vst.msk [vmem:[%s469 + $0x20] sm:$0xff] %vm470, %v5950
      %5983 = vst.msk [vmem:[%s469 + $0x28] sm:$0xff] %vm470, %v5951
      %5984 = vst.msk [vmem:[%s469 + $0x30] sm:$0xff] %vm470, %v5952
      %5985 = vst.msk [vmem:[%s469 + $0x38] sm:$0xff] %vm470, %v5953
      %5986 = vst.msk [vmem:[%s469 + $0x40] sm:$0xff] %vm470, %v5954
      %5987 = vst.msk [vmem:[%s469 + $0x48] sm:$0xff] %vm470, %v5955
      %5988 = vst.msk [vmem:[%s469 + $0x50] sm:$0xff] %vm470, %v5956
      %5989 = vst.msk [vmem:[%s469 + $0x58] sm:$0xff] %vm470, %v5957
      %5990 = vst.msk [vmem:[%s469 + $0x60] sm:$0xff] %vm470, %v5958
      %5991 = vst.msk [vmem:[%s469 + $0x68] sm:$0xff] %vm470, %v5959
      %5992 = vst.msk [vmem:[%s469 + $0x70] sm:$0xff] %vm470, %v5960
      %5993 = vst.msk [vmem:[%s469 + $0x78] sm:$0xff] %vm470, %v5961
      %5994 = vst.msk [vmem:[%s469 + $0x80] sm:$0xff] %vm470, %v5962
      %5995 = vst.msk [vmem:[%s469 + $0x88] sm:$0xff] %vm470, %v5963
      %5996 = vst.msk [vmem:[%s469 + $0x90] sm:$0xff] %vm470, %v5964
      %5997 = vst.msk [vmem:[%s469 + $0x98] sm:$0xff] %vm470, %v5965
      %5998 = vst.msk [vmem:[%s469 + $0xa0] sm:$0xff] %vm470, %v5966
      %5999 = vst.msk [vmem:[%s469 + $0xa8] sm:$0xff] %vm470, %v5967
      %6000 = vst.msk [vmem:[%s469 + $0xb0] sm:$0xff] %vm470, %v5968
      %6001 = vst.msk [vmem:[%s469 + $0xb8] sm:$0xff] %vm470, %v5969
      %6002 = vst.msk [vmem:[%s469 + $0xc0] sm:$0xff] %vm470, %v5970
      %6003 = vst.msk [vmem:[%s469 + $0xc8] sm:$0xff] %vm470, %v5971
      %6004 = vst.msk [vmem:[%s469 + $0xd0] sm:$0xff] %vm470, %v5972
      %6005 = vst.msk [vmem:[%s469 + $0xd8] sm:$0xff] %vm470, %v5973
      %6006 = vst.msk [vmem:[%s469 + $0xe0] sm:$0xff] %vm470, %v5974
      %6007 = vst.msk [vmem:[%s469 + $0xe8] sm:$0xff] %vm470, %v5975
      %6008 = vst.msk [vmem:[%s469 + $0xf0] sm:$0xff] %vm470, %v5976
      %6009 = vst.msk [vmem:[%s469 + $0xf8] sm:$0xff] %vm470, %v5977
      %p6010 = scmp.lt.s32.totalorder %s27, 1
      %s6011 = scalar_select %p6010, %s27, 1
      %s6012 = smul.addr %s6011, 32
      %s6013 = smul.addr %s6012, 8
      %s6014 = scalar_lea.vmem %s14, %s6013
      // Predicated region
      $region77: #{tpu_custom_call.1} parent=75 // pred_check
        %p6015 = pneg %p344
      $region78: #{tpu_custom_call.1} parent=75 // pred_check_branch
        %6017 = sbr.rel (%p6015) target = $region80
      $region79: #{tpu_custom_call.1} parent=75 // pred_region
        _
      $region80: #{tpu_custom_call.1} parent=75 // pred_fallthru
        _
    $region76: #{tpu_custom_call.1} parent=5 // pred_fallthru
      _
    %p6018 = scmp.le.s32.totalorder 2, %s22
    // Predicated region
    $region81: #{tpu_custom_call.1} parent=5 // pred_check
      %p6019 = pneg %p6018
    $region82: #{tpu_custom_call.1} parent=5 // pred_check_branch
      %6021 = sbr.rel (%p6019) target = $region84
    $region83: #{tpu_custom_call.1} parent=5 // pred_region
      %s6022 = ssub.s32 %s22, 2
      // Predicated region
      $region85: #{tpu_custom_call.1} parent=83 // pred_check
        %p6023 = pneg %p350
      $region86: #{tpu_custom_call.1} parent=83 // pred_check_branch
        %6025 = sbr.rel (%p6023) target = $region88
      $region87: #{tpu_custom_call.1} parent=83 // pred_region
        %p6026 = scmp.lt.s32.totalorder %s28, 1
        %s6027 = scalar_select %p6026, %s28, 1
        %s6028 = smul.addr %s6027, 32
        %s6029 = smul.addr %s6028, 8
        %s6030 = scalar_lea.vmem %s14, %s6029
      $region88: #{tpu_custom_call.1} parent=83 // pred_fallthru
        _
    $region84: #{tpu_custom_call.1} parent=5 // pred_fallthru
      _
  $region6: #{tpu_custom_call.1} parent=0 // loop_footer
    %s26 = sadd.s32 1, %s22
  $region7: #{tpu_custom_call.1} parent=0 // loop_footer_branch
    %21 = sbr.rel target = $region3
  $region8: #{tpu_custom_call.1} parent=0 // loop_exit
    _

</llo_original>
